<compile_context>
chip_gen: v6e
topology: v6e:2x2x1
jax: 0.10.0
libtpu: 0.0.40
codegen_flags: <defaults>
</compile_context>

<pallas_src>
import functools

import jax
import jax.numpy as jnp
from jax.experimental import pallas as pl
from jax.experimental.pallas import tpu as pltpu


# ----------------------------------------------------------------------------
# Kernel 1: fused encoder + re-encoder + L1 latent losses
# ----------------------------------------------------------------------------
def _encoder_rec_l1_kernel(xn_ref, xm_ref, xt_ref, xr_ref,
                           we_ref, be_ref, wr_ref, br_ref,
                           zn_ref, zm_ref, l1_ref):
    w_enc = we_ref[...]
    b_enc = be_ref[...]
    w_rec = wr_ref[...]
    b_rec = br_ref[...]

    def enc(x):
        return jnp.tanh(jnp.dot(x, w_enc, preferred_element_type=jnp.float32)
                        + b_enc)

    def rec(z):
        return jnp.tanh(jnp.dot(z, w_rec, preferred_element_type=jnp.float32)
                        + b_rec)

    # Encoders for the four streams (f32 on the tanh/L1 path).
    z_non = enc(xn_ref[...])
    z_mk = enc(xm_ref[...])
    z_tr = enc(xt_ref[...])        # z_transfer
    z_rm = enc(xr_ref[...])        # z_removal

    # Reconstruction / cycle latents (never leave VMEM).
    z_rec_non = rec(z_non)         # z_rec_non_makeup
    z_rec_mk = rec(z_mk)           # z_rec_makeup
    z_cyc_non = rec(z_tr)          # z_cycle_non_makeup
    z_cyc_mk = rec(z_rm)           # z_cycle_makeup

    # Only the latents needed for the correspondence maps are written out,
    # directly in bf16 (lane-dense, half the HBM bytes, bf16 MXU downstream).
    zn_ref[...] = z_non.astype(zn_ref.dtype)
    zm_ref[...] = z_mk.astype(zm_ref.dtype)

    # All four L1 terms, accumulated per-lane into the resident (1, D) output.
    diff = (jnp.abs(z_tr - z_rec_non) + jnp.abs(z_rm - z_rec_mk)
            + jnp.abs(z_cyc_non - z_non) + jnp.abs(z_cyc_mk - z_mk))
    part = jnp.sum(diff, axis=0, keepdims=True)          # (1, D)

    @pl.when(pl.program_id(0) == 0)
    def _():
        l1_ref[...] = jnp.zeros_like(l1_ref)

    l1_ref[...] += part


def fused_encoder_rec_l1(x_non, x_mk, x_tr, x_rm,
                         w_enc, b_enc, w_rec, b_rec, *, tm=256):
    M, cin = x_non.shape
    D = w_enc.shape[1]
    tm = min(tm, M)
    assert M % tm == 0, "B*H*W must be a multiple of the row tile"

    row_spec = pl.BlockSpec((tm, cin), lambda i: (i, 0))

    def full(shape):
        return pl.BlockSpec(shape, lambda i: (0, 0))

    return pl.pallas_call(
        _encoder_rec_l1_kernel,
        out_shape=(
            jax.ShapeDtypeStruct((M, D), jnp.bfloat16),   # z_non
            jax.ShapeDtypeStruct((M, D), jnp.bfloat16),   # z_mk
            jax.ShapeDtypeStruct((1, D), jnp.float32),    # L1 per-lane partials
        ),
        grid=(M // tm,),
        in_specs=[
            row_spec, row_spec, row_spec, row_spec,
            full((cin, D)), full((1, D)), full((D, D)), full((1, D)),
        ],
        out_specs=(
            pl.BlockSpec((tm, D), lambda i: (i, 0)),
            pl.BlockSpec((tm, D), lambda i: (i, 0)),
            pl.BlockSpec((1, D), lambda i: (0, 0)),       # resident accumulator
        ),
        compiler_params=pltpu.CompilerParams(
            dimension_semantics=("arbitrary",),           # resident L1 output
            vmem_limit_bytes=32 * 1024 * 1024,
        ),
    )(x_non, x_mk, x_tr, x_rm, w_enc, b_enc, w_rec, b_rec)


# ----------------------------------------------------------------------------
# Kernel 2: fused correspondence-map bmm + abs-sum reduction
#   (the HW x HW map never touches HBM; contraction is on the last axis of
#    both operands so no pre-kernel transpose is needed)
# ----------------------------------------------------------------------------
def _bmm_abs_sum_kernel(q_ref, k_ref, acc_ref):
    @pl.when(pl.program_id(0) + pl.program_id(1) + pl.program_id(2) == 0)
    def _():
        acc_ref[...] = jnp.zeros_like(acc_ref)

    q = q_ref[0]                                          # (tq, D) bf16
    k = k_ref[0]                                          # (tk, D) bf16
    s = jax.lax.dot_general(q, k, (((1,), (1,)), ((), ())),
                            preferred_element_type=jnp.float32)   # (tq, tk)
    acc_ref[...] += jnp.sum(jnp.abs(s), axis=0, keepdims=True)    # (1, tk)


def fused_bmm_abs_sum(z_a, z_b, *, tq=128, tk=128):
    # z_a, z_b: (B, HW, D);  returns per-lane partials of sum_b |z_a[b] @ z_b[b]^T|
    B, HW, D = z_a.shape
    tq = min(tq, HW)
    tk = min(tk, HW)
    assert HW % tq == 0 and HW % tk == 0

    return pl.pallas_call(
        _bmm_abs_sum_kernel,
        out_shape=jax.ShapeDtypeStruct((1, tk), jnp.float32),
        grid=(B, HW // tq, HW // tk),
        in_specs=[
            pl.BlockSpec((1, tq, D), lambda b, qi, ki: (b, qi, 0)),
            pl.BlockSpec((1, tk, D), lambda b, qi, ki: (b, ki, 0)),
        ],
        out_specs=pl.BlockSpec((1, tk), lambda b, qi, ki: (0, 0)),
        compiler_params=pltpu.CompilerParams(
            dimension_semantics=("arbitrary", "arbitrary", "arbitrary"),
            vmem_limit_bytes=32 * 1024 * 1024,
        ),
    )(z_a, z_b)


# ----------------------------------------------------------------------------
# Synthetic wrapped "network" + LossModule.forward
# ----------------------------------------------------------------------------
def _flatten_nhwc(img_nchw, parse_nchw):
    B, _, H, W = img_nchw.shape
    x = jnp.concatenate([img_nchw, parse_nchw], axis=1)           # (B, C+P, H, W)
    return jnp.transpose(x, (0, 2, 3, 1)).reshape(B * H * W, -1)  # (B*H*W, C+P)


def loss_module_forward(params, non_makeup, makeup, transfer, removal,
                        non_makeup_parse, makeup_parse):
    """Mirrors LossModule.forward: runs the (synthetic) network and returns lg."""
    B, _, H, W = non_makeup.shape
    D = params["w_rec"].shape[0]
    HW = H * W
    M = B * HW

    x_non = _flatten_nhwc(non_makeup, non_makeup_parse)
    x_mk = _flatten_nhwc(makeup, makeup_parse)
    x_tr = _flatten_nhwc(transfer, non_makeup_parse)
    x_rm = _flatten_nhwc(removal, makeup_parse)

    # One fused Pallas launch: encoders, re-encoders and all four L1 terms.
    z_non, z_mk, l1_part = fused_encoder_rec_l1(
        x_non, x_mk, x_tr, x_rm,
        params["w_enc"], params["b_enc"], params["w_rec"], params["b_rec"])
    latent_loss = jnp.sum(l1_part) / (M * D)

    # One fused Pallas launch: map abs-sum without materializing the maps.
    abs_sum = jnp.sum(fused_bmm_abs_sum(z_non.reshape(B, HW, D),
                                        z_mk.reshape(B, HW, D)))
    # mapY[b] == mapX[b]^T, so mean|mapY| == mean|mapX|  ->  0.1 + 0.1 = 0.2
    map_loss = 0.2 * abs_sum / (B * HW * HW)

    return latent_loss + map_loss


def loss_module_forward_ref(params, non_makeup, makeup, transfer, removal,
                            non_makeup_parse, makeup_parse):
    """Pure-jnp reference of the same synthetic network (for validation)."""
    B, _, H, W = non_makeup.shape
    D = params["w_rec"].shape[0]
    HW = H * W

    def enc(x):
        return jnp.tanh(x @ params["w_enc"] + params["b_enc"])

    def rec(z):
        return jnp.tanh(z @ params["w_rec"] + params["b_rec"])

    z_non = enc(_flatten_nhwc(non_makeup, non_makeup_parse))
    z_mk = enc(_flatten_nhwc(makeup, makeup_parse))
    z_tr = enc(_flatten_nhwc(transfer, non_makeup_parse))
    z_rm = enc(_flatten_nhwc(removal, makeup_parse))

    l1 = lambda a, b: jnp.mean(jnp.abs(a - b))
    latent = (l1(z_tr, rec(z_non)) + l1(z_rm, rec(z_mk))
              + l1(rec(z_tr), z_non) + l1(rec(z_rm), z_mk))

    zn = z_non.astype(jnp.bfloat16).reshape(B, HW, D)
    zm = z_mk.astype(jnp.bfloat16).reshape(B, HW, D)
    mapX = jnp.einsum('bqd,bkd->bqk', zn, zm,
                      preferred_element_type=jnp.float32)
    return latent + 0.2 * jnp.mean(jnp.abs(mapX))


# ----------------------------------------------------------------------------
# Parameter init + driver
# ----------------------------------------------------------------------------
def init_params(c_img, c_parse, d_lat, key):
    k1, k2, k3, k4 = jax.random.split(key, 4)
    cin = c_img + c_parse
    return {
        "w_enc": 0.1 * jax.random.normal(k1, (cin, d_lat), jnp.float32),
        "b_enc": 0.01 * jax.random.normal(k2, (1, d_lat), jnp.float32),
        "w_rec": 0.1 * jax.random.normal(k3, (d_lat, d_lat), jnp.float32),
        "b_rec": 0.01 * jax.random.normal(k4, (1, d_lat), jnp.float32),
    }


if __name__ == "__main__":
    # D = 128 keeps every matmul output / store lane-dense.
    B, C, P, H, W, D = 2, 4, 4, 16, 16, 128

    key = jax.random.PRNGKey(0)
    ks = jax.random.split(key, 7)
    non_makeup = jax.random.normal(ks[0], (B, C, H, W), jnp.float32)       # NCHW
    makeup = jax.random.normal(ks[1], (B, C, H, W), jnp.float32)
    transfer = jax.random.normal(ks[2], (B, C, H, W), jnp.float32)
    removal = jax.random.normal(ks[3], (B, C, H, W), jnp.float32)
    non_makeup_parse = jax.random.normal(ks[4], (B, P, H, W), jnp.float32)
    makeup_parse = jax.random.normal(ks[5], (B, P, H, W), jnp.float32)

    params = init_params(C, P, D, ks[6])

    fwd = jax.jit(functools.partial(loss_module_forward, params))
    lg = fwd(non_makeup, makeup, transfer, removal,
             non_makeup_parse, makeup_parse)
    lg = jax.block_until_ready(lg)

    lg_ref = loss_module_forward_ref(params, non_makeup, makeup, transfer,
                                     removal, non_makeup_parse, makeup_parse)

    assert lg.shape == () and jnp.isfinite(lg)
    assert abs(float(lg) - float(lg_ref)) <= 2e-2 * abs(float(lg_ref)) + 2e-3
    # TODO(synk): the wrapped `network` is not specified in the PyTorch source;
    # a deterministic synthetic encoder/attention/loss network is used here.
    print("KERNEL_OK")
</pallas_src>

<mosaic_0001>
module attributes {stable_mosaic.version = 11 : i64} {
  func.func @_encoder_rec_l1_kernel(%arg0: i32, %arg1: memref<256x8xf32, #tpu.memory_space<vmem>>, %arg2: memref<256x8xf32, #tpu.memory_space<vmem>>, %arg3: memref<256x8xf32, #tpu.memory_space<vmem>>, %arg4: memref<256x8xf32, #tpu.memory_space<vmem>>, %arg5: memref<8x128xf32, #tpu.memory_space<vmem>>, %arg6: memref<1x128xf32, #tpu.memory_space<vmem>>, %arg7: memref<128x128xf32, #tpu.memory_space<vmem>>, %arg8: memref<1x128xf32, #tpu.memory_space<vmem>>, %arg9: memref<256x128xbf16, #tpu.memory_space<vmem>>, %arg10: memref<256x128xbf16, #tpu.memory_space<vmem>>, %arg11: memref<1x128xf32, #tpu.memory_space<vmem>>) attributes {dimension_semantics = [#tpu.dimension_semantics<arbitrary>], iteration_bounds = array<i64: 2>, scalar_prefetch = 0 : i64, scratch_operands = 0 : i64, tpu.core_type = #tpu.core_type<tc>, window_params = [{transform_indices = @transform_0, window_bounds = array<i64: 256, 8>}, {transform_indices = @transform_1, window_bounds = array<i64: 256, 8>}, {transform_indices = @transform_2, window_bounds = array<i64: 256, 8>}, {transform_indices = @transform_3, window_bounds = array<i64: 256, 8>}, {pipeline_mode = #tpu.pipeline_mode<synchronous>, transform_indices = @transform_4, window_bounds = array<i64: 8, 128>}, {pipeline_mode = #tpu.pipeline_mode<synchronous>, transform_indices = @transform_5, window_bounds = array<i64: 1, 128>}, {pipeline_mode = #tpu.pipeline_mode<synchronous>, transform_indices = @transform_6, window_bounds = array<i64: 128, 128>}, {pipeline_mode = #tpu.pipeline_mode<synchronous>, transform_indices = @transform_7, window_bounds = array<i64: 1, 128>}, {transform_indices = @transform_8, window_bounds = array<i64: 256, 128>}, {transform_indices = @transform_9, window_bounds = array<i64: 256, 128>}, {pipeline_mode = #tpu.pipeline_mode<synchronous>, transform_indices = @transform_10, window_bounds = array<i64: 1, 128>}]} {
    %c0 = arith.constant 0 : index
    %c0_0 = arith.constant 0 : index
    %0 = vector.load %arg5[%c0, %c0_0] : memref<8x128xf32, #tpu.memory_space<vmem>>, vector<8x128xf32>
    %c0_1 = arith.constant 0 : index
    %c0_2 = arith.constant 0 : index
    %1 = vector.load %arg6[%c0_1, %c0_2] : memref<1x128xf32, #tpu.memory_space<vmem>>, vector<1x128xf32>
    %c0_3 = arith.constant 0 : index
    %c0_4 = arith.constant 0 : index
    %2 = vector.load %arg7[%c0_3, %c0_4] : memref<128x128xf32, #tpu.memory_space<vmem>>, vector<128x128xf32>
    %c0_5 = arith.constant 0 : index
    %c0_6 = arith.constant 0 : index
    %3 = vector.load %arg8[%c0_5, %c0_6] : memref<1x128xf32, #tpu.memory_space<vmem>>, vector<1x128xf32>
    %c0_7 = arith.constant 0 : index
    %c0_8 = arith.constant 0 : index
    %4 = vector.load %arg1[%c0_7, %c0_8] : memref<256x8xf32, #tpu.memory_space<vmem>>, vector<256x8xf32>
    %cst = arith.constant dense<0.000000e+00> : vector<256x128xf32>
    %5 = tpu.matmul %4, %0, %cst {dimension_numbers = #tpu.dot_dimension_numbers<[1], [0], [0], [1], [0, 0, 1, 1], [], []>} : vector<256x8xf32>, vector<8x128xf32>, vector<256x128xf32> -> vector<256x128xf32>
    %6 = vector.broadcast %1 : vector<1x128xf32> to vector<256x128xf32>
    %7 = arith.addf %5, %6 : vector<256x128xf32>
    %8 = math.tanh %7 : vector<256x128xf32>
    %c0_9 = arith.constant 0 : index
    %c0_10 = arith.constant 0 : index
    %9 = vector.load %arg2[%c0_9, %c0_10] : memref<256x8xf32, #tpu.memory_space<vmem>>, vector<256x8xf32>
    %cst_11 = arith.constant dense<0.000000e+00> : vector<256x128xf32>
    %10 = tpu.matmul %9, %0, %cst_11 {dimension_numbers = #tpu.dot_dimension_numbers<[1], [0], [0], [1], [0, 0, 1, 1], [], []>} : vector<256x8xf32>, vector<8x128xf32>, vector<256x128xf32> -> vector<256x128xf32>
    %11 = vector.broadcast %1 : vector<1x128xf32> to vector<256x128xf32>
    %12 = arith.addf %10, %11 : vector<256x128xf32>
    %13 = math.tanh %12 : vector<256x128xf32>
    %c0_12 = arith.constant 0 : index
    %c0_13 = arith.constant 0 : index
    %14 = vector.load %arg3[%c0_12, %c0_13] : memref<256x8xf32, #tpu.memory_space<vmem>>, vector<256x8xf32>
    %cst_14 = arith.constant dense<0.000000e+00> : vector<256x128xf32>
    %15 = tpu.matmul %14, %0, %cst_14 {dimension_numbers = #tpu.dot_dimension_numbers<[1], [0], [0], [1], [0, 0, 1, 1], [], []>} : vector<256x8xf32>, vector<8x128xf32>, vector<256x128xf32> -> vector<256x128xf32>
    %16 = vector.broadcast %1 : vector<1x128xf32> to vector<256x128xf32>
    %17 = arith.addf %15, %16 : vector<256x128xf32>
    %18 = math.tanh %17 : vector<256x128xf32>
    %c0_15 = arith.constant 0 : index
    %c0_16 = arith.constant 0 : index
    %19 = vector.load %arg4[%c0_15, %c0_16] : memref<256x8xf32, #tpu.memory_space<vmem>>, vector<256x8xf32>
    %cst_17 = arith.constant dense<0.000000e+00> : vector<256x128xf32>
    %20 = tpu.matmul %19, %0, %cst_17 {dimension_numbers = #tpu.dot_dimension_numbers<[1], [0], [0], [1], [0, 0, 1, 1], [], []>} : vector<256x8xf32>, vector<8x128xf32>, vector<256x128xf32> -> vector<256x128xf32>
    %21 = vector.broadcast %1 : vector<1x128xf32> to vector<256x128xf32>
    %22 = arith.addf %20, %21 : vector<256x128xf32>
    %23 = math.tanh %22 : vector<256x128xf32>
    %cst_18 = arith.constant dense<0.000000e+00> : vector<256x128xf32>
    %24 = tpu.matmul %8, %2, %cst_18 {dimension_numbers = #tpu.dot_dimension_numbers<[1], [0], [0], [1], [0, 0, 1, 1], [], []>} : vector<256x128xf32>, vector<128x128xf32>, vector<256x128xf32> -> vector<256x128xf32>
    %25 = vector.broadcast %3 : vector<1x128xf32> to vector<256x128xf32>
    %26 = arith.addf %24, %25 : vector<256x128xf32>
    %27 = math.tanh %26 : vector<256x128xf32>
    %cst_19 = arith.constant dense<0.000000e+00> : vector<256x128xf32>
    %28 = tpu.matmul %13, %2, %cst_19 {dimension_numbers = #tpu.dot_dimension_numbers<[1], [0], [0], [1], [0, 0, 1, 1], [], []>} : vector<256x128xf32>, vector<128x128xf32>, vector<256x128xf32> -> vector<256x128xf32>
    %29 = vector.broadcast %3 : vector<1x128xf32> to vector<256x128xf32>
    %30 = arith.addf %28, %29 : vector<256x128xf32>
    %31 = math.tanh %30 : vector<256x128xf32>
    %cst_20 = arith.constant dense<0.000000e+00> : vector<256x128xf32>
    %32 = tpu.matmul %18, %2, %cst_20 {dimension_numbers = #tpu.dot_dimension_numbers<[1], [0], [0], [1], [0, 0, 1, 1], [], []>} : vector<256x128xf32>, vector<128x128xf32>, vector<256x128xf32> -> vector<256x128xf32>
    %33 = vector.broadcast %3 : vector<1x128xf32> to vector<256x128xf32>
    %34 = arith.addf %32, %33 : vector<256x128xf32>
    %35 = math.tanh %34 : vector<256x128xf32>
    %cst_21 = arith.constant dense<0.000000e+00> : vector<256x128xf32>
    %36 = tpu.matmul %23, %2, %cst_21 {dimension_numbers = #tpu.dot_dimension_numbers<[1], [0], [0], [1], [0, 0, 1, 1], [], []>} : vector<256x128xf32>, vector<128x128xf32>, vector<256x128xf32> -> vector<256x128xf32>
    %37 = vector.broadcast %3 : vector<1x128xf32> to vector<256x128xf32>
    %38 = arith.addf %36, %37 : vector<256x128xf32>
    %39 = math.tanh %38 : vector<256x128xf32>
    %40 = arith.truncf %8 : vector<256x128xf32> to vector<256x128xbf16>
    %c0_22 = arith.constant 0 : index
    %c0_23 = arith.constant 0 : index
    %41 = vector.load %arg9[%c0_22, %c0_23] : memref<256x128xbf16, #tpu.memory_space<vmem>>, vector<256x128xbf16>
    tpu.vector_store %arg9[%c0_22, %c0_23], %40 {strides = array<i32>} : memref<256x128xbf16, #tpu.memory_space<vmem>>, vector<256x128xbf16>,
    %42 = arith.truncf %13 : vector<256x128xf32> to vector<256x128xbf16>
    %c0_24 = arith.constant 0 : index
    %c0_25 = arith.constant 0 : index
    %43 = vector.load %arg10[%c0_24, %c0_25] : memref<256x128xbf16, #tpu.memory_space<vmem>>, vector<256x128xbf16>
    tpu.vector_store %arg10[%c0_24, %c0_25], %42 {strides = array<i32>} : memref<256x128xbf16, #tpu.memory_space<vmem>>, vector<256x128xbf16>,
    %44 = arith.subf %18, %27 : vector<256x128xf32>
    %45 = math.absf %44 : vector<256x128xf32>
    %46 = arith.subf %23, %31 : vector<256x128xf32>
    %47 = math.absf %46 : vector<256x128xf32>
    %48 = arith.addf %45, %47 : vector<256x128xf32>
    %49 = arith.subf %35, %8 : vector<256x128xf32>
    %50 = math.absf %49 : vector<256x128xf32>
    %51 = arith.addf %48, %50 : vector<256x128xf32>
    %52 = arith.subf %39, %13 : vector<256x128xf32>
    %53 = math.absf %52 : vector<256x128xf32>
    %54 = arith.addf %51, %53 : vector<256x128xf32>
    %cst_26 = arith.constant dense<0.000000e+00> : vector<128xf32>
    %55 = vector.multi_reduction <add>, %54, %cst_26 [0] : vector<256x128xf32> to vector<128xf32>
    %56 = vector.shape_cast %55 : vector<128xf32> to vector<1x128xf32>
    %c0_i32 = arith.constant 0 : i32
    %57 = arith.cmpi eq, %arg0, %c0_i32 : i32
    %58 = arith.extui %57 : i1 to i32
    %c0_i32_27 = arith.constant 0 : i32
    %59 = arith.cmpi ne, %58, %c0_i32_27 : i32
    scf.if %59 {
      %cst_32 = arith.constant 0.000000e+00 : f32
      %63 = vector.broadcast %cst_32 : f32 to vector<1x128xf32>
      %c0_33 = arith.constant 0 : index
      %c0_34 = arith.constant 0 : index
      %64 = vector.load %arg11[%c0_33, %c0_34] : memref<1x128xf32, #tpu.memory_space<vmem>>, vector<1x128xf32>
      tpu.vector_store %arg11[%c0_33, %c0_34], %63 {strides = array<i32>} : memref<1x128xf32, #tpu.memory_space<vmem>>, vector<1x128xf32>,
    } else {
    }
    %c0_28 = arith.constant 0 : index
    %c0_29 = arith.constant 0 : index
    %60 = vector.load %arg11[%c0_28, %c0_29] : memref<1x128xf32, #tpu.memory_space<vmem>>, vector<1x128xf32>
    %61 = arith.addf %60, %56 : vector<1x128xf32>
    %c0_30 = arith.constant 0 : index
    %c0_31 = arith.constant 0 : index
    %62 = vector.load %arg11[%c0_30, %c0_31] : memref<1x128xf32, #tpu.memory_space<vmem>>, vector<1x128xf32>
    tpu.vector_store %arg11[%c0_30, %c0_31], %61 {strides = array<i32>} : memref<1x128xf32, #tpu.memory_space<vmem>>, vector<1x128xf32>,
    return
  }
  func.func @transform_0(%arg0: i32) -> (i32, i32) {
    %c0_i32 = arith.constant 0 : i32
    %c0_i32_0 = arith.constant 0 : i32
    return %arg0, %c0_i32 : i32, i32
  }
  func.func @transform_1(%arg0: i32) -> (i32, i32) {
    %c0_i32 = arith.constant 0 : i32
    %c0_i32_0 = arith.constant 0 : i32
    return %arg0, %c0_i32 : i32, i32
  }
  func.func @transform_2(%arg0: i32) -> (i32, i32) {
    %c0_i32 = arith.constant 0 : i32
    %c0_i32_0 = arith.constant 0 : i32
    return %arg0, %c0_i32 : i32, i32
  }
  func.func @transform_3(%arg0: i32) -> (i32, i32) {
    %c0_i32 = arith.constant 0 : i32
    %c0_i32_0 = arith.constant 0 : i32
    return %arg0, %c0_i32 : i32, i32
  }
  func.func @transform_4(%arg0: i32) -> (i32, i32) {
    %c0_i32 = arith.constant 0 : i32
    %c0_i32_0 = arith.constant 0 : i32
    %c0_i32_1 = arith.constant 0 : i32
    return %c0_i32, %c0_i32_0 : i32, i32
  }
  func.func @transform_5(%arg0: i32) -> (i32, i32) {
    %c0_i32 = arith.constant 0 : i32
    %c0_i32_0 = arith.constant 0 : i32
    %c0_i32_1 = arith.constant 0 : i32
    return %c0_i32, %c0_i32_0 : i32, i32
  }
  func.func @transform_6(%arg0: i32) -> (i32, i32) {
    %c0_i32 = arith.constant 0 : i32
    %c0_i32_0 = arith.constant 0 : i32
    %c0_i32_1 = arith.constant 0 : i32
    return %c0_i32, %c0_i32_0 : i32, i32
  }
  func.func @transform_7(%arg0: i32) -> (i32, i32) {
    %c0_i32 = arith.constant 0 : i32
    %c0_i32_0 = arith.constant 0 : i32
    %c0_i32_1 = arith.constant 0 : i32
    return %c0_i32, %c0_i32_0 : i32, i32
  }
  func.func @transform_8(%arg0: i32) -> (i32, i32) {
    %c0_i32 = arith.constant 0 : i32
    %c0_i32_0 = arith.constant 0 : i32
    return %arg0, %c0_i32 : i32, i32
  }
  func.func @transform_9(%arg0: i32) -> (i32, i32) {
    %c0_i32 = arith.constant 0 : i32
    %c0_i32_0 = arith.constant 0 : i32
    return %arg0, %c0_i32 : i32, i32
  }
  func.func @transform_10(%arg0: i32) -> (i32, i32) {
    %c0_i32 = arith.constant 0 : i32
    %c0_i32_0 = arith.constant 0 : i32
    %c0_i32_1 = arith.constant 0 : i32
    return %c0_i32, %c0_i32_0 : i32, i32
  }
}

module attributes {stable_mosaic.version = 11 : i64} {
  func.func @_bmm_abs_sum_kernel(%arg0: i32, %arg1: i32, %arg2: i32, %arg3: memref<1x128x128xbf16, #tpu.memory_space<vmem>>, %arg4: memref<1x128x128xbf16, #tpu.memory_space<vmem>>, %arg5: memref<1x128xf32, #tpu.memory_space<vmem>>) attributes {dimension_semantics = [#tpu.dimension_semantics<arbitrary>, #tpu.dimension_semantics<arbitrary>, #tpu.dimension_semantics<arbitrary>], iteration_bounds = array<i64: 2, 2, 2>, scalar_prefetch = 0 : i64, scratch_operands = 0 : i64, tpu.core_type = #tpu.core_type<tc>, window_params = [{transform_indices = @transform_0, window_bounds = array<i64: 1, 128, 128>}, {transform_indices = @transform_1, window_bounds = array<i64: 1, 128, 128>}, {pipeline_mode = #tpu.pipeline_mode<synchronous>, transform_indices = @transform_2, window_bounds = array<i64: 1, 128>}]} {
    %0 = arith.addi %arg0, %arg1 : i32
    %1 = arith.addi %0, %arg2 : i32
    %c0_i32 = arith.constant 0 : i32
    %2 = arith.cmpi eq, %1, %c0_i32 : i32
    %3 = arith.extui %2 : i1 to i32
    %c0_i32_0 = arith.constant 0 : i32
    %4 = arith.cmpi ne, %3, %c0_i32_0 : i32
    scf.if %4 {
      %cst_11 = arith.constant 0.000000e+00 : f32
      %16 = vector.broadcast %cst_11 : f32 to vector<1x128xf32>
      %c0_12 = arith.constant 0 : index
      %c0_13 = arith.constant 0 : index
      %17 = vector.load %arg5[%c0_12, %c0_13] : memref<1x128xf32, #tpu.memory_space<vmem>>, vector<1x128xf32>
      tpu.vector_store %arg5[%c0_12, %c0_13], %16 {strides = array<i32>} : memref<1x128xf32, #tpu.memory_space<vmem>>, vector<1x128xf32>,
    } else {
    }
    %c0 = arith.constant 0 : index
    %c0_1 = arith.constant 0 : index
    %c0_2 = arith.constant 0 : index
    %5 = vector.load %arg3[%c0, %c0_1, %c0_2] : memref<1x128x128xbf16, #tpu.memory_space<vmem>>, vector<1x128x128xbf16>
    %6 = vector.shape_cast %5 : vector<1x128x128xbf16> to vector<128x128xbf16>
    %c0_3 = arith.constant 0 : index
    %c0_4 = arith.constant 0 : index
    %c0_5 = arith.constant 0 : index
    %7 = vector.load %arg4[%c0_3, %c0_4, %c0_5] : memref<1x128x128xbf16, #tpu.memory_space<vmem>>, vector<1x128x128xbf16>
    %8 = vector.shape_cast %7 : vector<1x128x128xbf16> to vector<128x128xbf16>
    %cst = arith.constant dense<0.000000e+00> : vector<128x128xf32>
    %9 = tpu.matmul %6, %8, %cst {dimension_numbers = #tpu.dot_dimension_numbers<[1], [1], [0], [0], [0, 0, 1, 0], [], []>} : vector<128x128xbf16>, vector<128x128xbf16>, vector<128x128xf32> -> vector<128x128xf32>
    %c0_6 = arith.constant 0 : index
    %c0_7 = arith.constant 0 : index
    %10 = vector.load %arg5[%c0_6, %c0_7] : memref<1x128xf32, #tpu.memory_space<vmem>>, vector<1x128xf32>
    %11 = math.absf %9 : vector<128x128xf32>
    %cst_8 = arith.constant dense<0.000000e+00> : vector<128xf32>
    %12 = vector.multi_reduction <add>, %11, %cst_8 [0] : vector<128x128xf32> to vector<128xf32>
    %13 = vector.shape_cast %12 : vector<128xf32> to vector<1x128xf32>
    %14 = arith.addf %10, %13 : vector<1x128xf32>
    %c0_9 = arith.constant 0 : index
    %c0_10 = arith.constant 0 : index
    %15 = vector.load %arg5[%c0_9, %c0_10] : memref<1x128xf32, #tpu.memory_space<vmem>>, vector<1x128xf32>
    tpu.vector_store %arg5[%c0_9, %c0_10], %14 {strides = array<i32>} : memref<1x128xf32, #tpu.memory_space<vmem>>, vector<1x128xf32>,
    return
  }
  func.func @transform_0(%arg0: i32, %arg1: i32, %arg2: i32) -> (i32, i32, i32) {
    %c0_i32 = arith.constant 0 : i32
    %c0_i32_0 = arith.constant 0 : i32
    return %arg0, %arg1, %c0_i32 : i32, i32, i32
  }
  func.func @transform_1(%arg0: i32, %arg1: i32, %arg2: i32) -> (i32, i32, i32) {
    %c0_i32 = arith.constant 0 : i32
    %c0_i32_0 = arith.constant 0 : i32
    return %arg0, %arg2, %c0_i32 : i32, i32, i32
  }
  func.func @transform_2(%arg0: i32, %arg1: i32, %arg2: i32) -> (i32, i32) {
    %c0_i32 = arith.constant 0 : i32
    %c0_i32_0 = arith.constant 0 : i32
    %c0_i32_1 = arith.constant 0 : i32
    return %c0_i32, %c0_i32_0 : i32, i32
  }
}

</mosaic_0001>

<llo_original>
// kernel: loss_module_forward.3
$region0: #{loss_module_forward.3}
  #allocation0 [shape = 'u32[]', space=smem, size = 0x4, offset = 0x4, fixed_abs, tag = 'smem constant byte address 0x4 - core index']
  #allocation1 [shape = 'u32[144,128]{1,0:T(1,128)}', space=vmem, size = 0x12000, scoped, tag = 'internal scratch']
  %s0 = inlined_call_operand.vmem [shape: bf16[2,256,128], index: 0, kind: input, shape index: {}]
  %s1 = inlined_call_operand.vmem [shape: bf16[2,256,128], index: 1, kind: input, shape index: {}]
  %s2 = inlined_call_operand.vmem [shape: f32[1,128], index: 2, kind: output, shape index: {}]
  %s3 = sld [smem:[#allocation0]]
  $region45: #{loss_module_forward.3} parent=0
    _
  %s5 = ssub.s32 1, %s3
  %s6 = scalar_select 0, %s5, %s3
  loop: start=0, step=1, limit=10
  $region2: #{loss_module_forward.3} parent=0 // loop_pre_header
    _
  $region3: #{loss_module_forward.3} parent=0 // loop_header
    %s8 = sphi 0, %s12
    %p9 = scmp.ge.s32.totalorder %s8, 10
    %s15 = sphi 0, %s34
    %s16 = sphi 0, %s30
    %s17 = sphi 0, %s26
    %s18 = sphi 0, %s15
    %s19 = sphi 0, %s16
    %s20 = sphi 0, %s17
    %s21 = sphi 0, %s18
    %s22 = sphi 0, %s19
    %s23 = sphi 0, %s20
    %s39 = sphi 0, %s41
    %s42 = sphi 0, %s39
    %s43 = sphi 0, %s42
    %s59 = sphi 0, %s43
    %s67 = sphi 0, %s69
    %s70 = sphi 0, %s67
    %s71 = sphi 0, %s70
    %s87 = sphi 0, %s71
    %s91 = sphi 0, %s91
    %s93 = sphi 0, %s91
    %s94 = sphi 0, %s93
    %s108 = sphi 0, %s94
  $region4: #{loss_module_forward.3} parent=0 // loop_header_branch
    %11 = sbr.rel (%p9) target = $region8
  $region5: #{loss_module_forward.3} parent=0 // loop_body
    %s13 = ssub.s32 %s8, 1
    %s14 = ssub.s32 %s8, 2
    %s24 = sadd.s32 1, %s17
    %p25 = scmp.ge.s32.totalorder %s24, 2
    %s26 = scalar_select %p25, 0, %s24
    %s27 = sadd.s32 1, %s16
    %s28 = scalar_select %p25, %s27, %s16
    %p29 = scmp.ge.s32.totalorder %s28, 2
    %s30 = scalar_select %p29, 0, %s28
    %s31 = sadd.s32 1, %s15
    %s32 = scalar_select %p29, %s31, %s15
    %p33 = scmp.ge.s32.totalorder %s32, 2
    %s34 = scalar_select %p33, 0, %s32
    %s35 = ssub.s32 %s15, %s34
    %s36 = ssub.s32 %s16, %s30
    %s37 = sor.u32 %s35, %s36
    %p38 = scmp.eq.s32.totalorder %s37, 0
    %s40 = sadd.s32 %s39, 1
    %s41 = scalar_select %p38, %s39, %s40
    %p44 = pneg %p38
    %p45 = scmp.eq.s32.totalorder %s8, 7
    %p46 = por %p44, %p45
    %p47 = scmp.ne.s32.totalorder %s39, %s42
    %p48 = scmp.eq.s32.totalorder %s8, 0
    %p49 = por %p47, %p48
    %p50 = scmp.ne.s32.totalorder %s39, %s42
    %p51 = scmp.eq.s32.totalorder %s13, 7
    %p52 = por %p50, %p51
    %p53 = scmp.ne.s32.totalorder %s42, %s43
    %p54 = scmp.eq.s32.totalorder %s13, 0
    %p55 = por %p53, %p54
    %p56 = scmp.ne.s32.totalorder %s42, %s43
    %p57 = scmp.eq.s32.totalorder %s14, 7
    %p58 = por %p56, %p57
    %p60 = scmp.ne.s32.totalorder %s43, %s59
    %p61 = scmp.eq.s32.totalorder %s14, 0
    %p62 = por %p60, %p61
    %s63 = ssub.s32 %s15, %s34
    %s64 = ssub.s32 %s17, %s26
    %s65 = sor.u32 %s63, %s64
    %p66 = scmp.eq.s32.totalorder %s65, 0
    %s68 = sadd.s32 %s67, 1
    %s69 = scalar_select %p66, %s67, %s68
    %p72 = pneg %p66
    %p73 = scmp.eq.s32.totalorder %s8, 7
    %p74 = por %p72, %p73
    %p75 = scmp.ne.s32.totalorder %s67, %s70
    %p76 = scmp.eq.s32.totalorder %s8, 0
    %p77 = por %p75, %p76
    %p78 = scmp.ne.s32.totalorder %s67, %s70
    %p79 = scmp.eq.s32.totalorder %s13, 7
    %p80 = por %p78, %p79
    %p81 = scmp.ne.s32.totalorder %s70, %s71
    %p82 = scmp.eq.s32.totalorder %s13, 0
    %p83 = por %p81, %p82
    %p84 = scmp.ne.s32.totalorder %s70, %s71
    %p85 = scmp.eq.s32.totalorder %s14, 7
    %p86 = por %p84, %p85
    %p88 = scmp.ne.s32.totalorder %s71, %s87
    %p89 = scmp.eq.s32.totalorder %s14, 0
    %p90 = por %p88, %p89
    %s92 = sadd.s32 %s91, 1
    %p95 = scmp.eq.s32.totalorder %s8, 7
    %p96 = scmp.ne.s32.totalorder %s91, %s93
    %p97 = scmp.eq.s32.totalorder %s8, 0
    %p98 = por %p96, %p97
    %p99 = scmp.ne.s32.totalorder %s91, %s93
    %p100 = scmp.eq.s32.totalorder %s13, 7
    %p101 = por %p99, %p100
    %p102 = scmp.ne.s32.totalorder %s93, %s94
    %p103 = scmp.eq.s32.totalorder %s13, 0
    %p104 = por %p102, %p103
    %p105 = scmp.ne.s32.totalorder %s93, %s94
    %p106 = scmp.eq.s32.totalorder %s14, 7
    %p107 = por %p105, %p106
    %p109 = scmp.ne.s32.totalorder %s94, %s108
    %p110 = scmp.eq.s32.totalorder %s14, 0
    %p111 = por %p109, %p110
    %p112 = scmp.le.s32.totalorder 1, %s8
    %p113 = scmp.lt.s32.totalorder %s8, 9
    %p114 = pnand %p112, %p113
    %p115 = pneg %p114
    // Predicated region
    $region9: #{loss_module_forward.3} parent=5 // pred_check
      _
    $region10: #{loss_module_forward.3} parent=5 // pred_check_branch
      %117 = sbr.rel (%p114) target = $region12
    $region11: #{loss_module_forward.3} parent=5 // pred_region
      %s118 = ssub.s32 %s8, 1
    $region12: #{loss_module_forward.3} parent=5 // pred_fallthru
      _
    %p119 = scmp.lt.s32.totalorder %s8, 8
    // Predicated region
    $region13: #{loss_module_forward.3} parent=5 // pred_check
      %p120 = pneg %p119
    $region14: #{loss_module_forward.3} parent=5 // pred_check_branch
      %122 = sbr.rel (%p120) target = $region16
    $region15: #{loss_module_forward.3} parent=5 // pred_region
      // Predicated region
      $region17: #{loss_module_forward.3} parent=15 // pred_check
        %p123 = pneg %p49
      $region18: #{loss_module_forward.3} parent=15 // pred_check_branch
        %125 = sbr.rel (%p123) target = $region20
      $region19: #{loss_module_forward.3} parent=15 // pred_region
        %s126 = smul.u32 16, %s16
        %p127 = scmp.lt.s32.totalorder %s15, 1
        %s128 = scalar_select %p127, %s15, 1
        %p129 = scmp.lt.s32.totalorder %s126, 31
        %s130 = scalar_select %p129, %s126, 31
        %s131 = smul.addr %s128, 32
        %s132 = sadd.s32 %s130, %s131
        %s133 = smul.addr %s132, 4
        %s134 = scalar_lea.vmem %s0, %s133
        %s135 = smul.u32 16, %s16
      $region20: #{loss_module_forward.3} parent=15 // pred_fallthru
        _
      // Predicated region
      $region21: #{loss_module_forward.3} parent=15 // pred_check
        %p136 = pneg %p77
      $region22: #{loss_module_forward.3} parent=15 // pred_check_branch
        %138 = sbr.rel (%p136) target = $region24
      $region23: #{loss_module_forward.3} parent=15 // pred_region
        %s139 = smul.u32 16, %s17
        %p140 = scmp.lt.s32.totalorder %s15, 1
        %s141 = scalar_select %p140, %s15, 1
        %p142 = scmp.lt.s32.totalorder %s139, 31
        %s143 = scalar_select %p142, %s139, 31
        %s144 = smul.addr %s141, 32
        %s145 = sadd.s32 %s143, %s144
        %s146 = smul.addr %s145, 4
        %s147 = scalar_lea.vmem %s1, %s146
        %s148 = smul.u32 16, %s17
      $region24: #{loss_module_forward.3} parent=15 // pred_fallthru
        _
    $region16: #{loss_module_forward.3} parent=5 // pred_fallthru
      _
    %p149 = scmp.le.s32.totalorder 1, %s8
    %p150 = scmp.lt.s32.totalorder %s8, 9
    %p151 = pnand %p149, %p150
    %p152 = pneg %p151
    // Predicated region
    $region25: #{loss_module_forward.3} parent=5 // pred_check
      _
    $region26: #{loss_module_forward.3} parent=5 // pred_check_branch
      %154 = sbr.rel (%p151) target = $region28
    $region27: #{loss_module_forward.3} parent=5 // pred_region
      %s155 = ssub.s32 %s8, 1
      %s156 = smul.u32 16, %s19
      %p157 = scmp.lt.s32.totalorder %s18, 1
      %s158 = scalar_select %p157, %s18, 1
      %p159 = scmp.lt.s32.totalorder %s156, 31
      %s160 = scalar_select %p159, %s156, 31
      %s161 = smul.addr %s158, 32
      %s162 = sadd.s32 %s160, %s161
      %s163 = smul.addr %s162, 4
      %s164 = scalar_lea.vmem %s0, %s163
      %p165 = pneg %p55
      %p166 = pneg %p52
      %s167 = smul.u32 16, %s20
      %p168 = scmp.lt.s32.totalorder %s18, 1
      %s169 = scalar_select %p168, %s18, 1
      %p170 = scmp.lt.s32.totalorder %s167, 31
      %s171 = scalar_select %p170, %s167, 31
      %s172 = smul.addr %s169, 32
      %s173 = sadd.s32 %s171, %s172
      %s174 = smul.addr %s173, 4
      %s175 = scalar_lea.vmem %s1, %s174
      %p176 = pneg %p83
      %p177 = pneg %p80
      %p178 = pneg %p104
      %p179 = pneg %p101
      %s180 = smul.u32 16, %s19
      %p181 = scmp.lt.s32.totalorder %s18, 1
      %s182 = scalar_select %p181, %s18, 1
      %p183 = scmp.lt.s32.totalorder %s180, 31
      %s184 = scalar_select %p183, %s180, 31
      %s185 = smul.addr %s182, 32
      %s186 = sadd.s32 %s184, %s185
      %s187 = smul.addr %s186, 4
      %s188 = scalar_lea.vmem %s0, %s187
      %s189 = smul.u32 16, %s19
      %s190 = smul.u32 16, %s20
      %p191 = scmp.lt.s32.totalorder %s18, 1
      %s192 = scalar_select %p191, %s18, 1
      %p193 = scmp.lt.s32.totalorder %s190, 31
      %s194 = scalar_select %p193, %s190, 31
      %s195 = smul.addr %s192, 32
      %s196 = sadd.s32 %s194, %s195
      %s197 = smul.addr %s196, 4
      %s198 = scalar_lea.vmem %s1, %s197
      %s199 = smul.u32 16, %s20
      %s201 = sadd.s32 %s18, %s19
      %s202 = sadd.s32 %s201, %s20
      %p203 = scmp.eq.s32.totalorder %s202, 0
      // Predicated region
      $region29: #{loss_module_forward.3} parent=27 // pred_check
        %p204 = pneg %p203
      $region30: #{loss_module_forward.3} parent=27 // pred_check_branch
        %206 = sbr.rel (%p204) target = $region32
      $region31: #{loss_module_forward.3} parent=27 // pred_region
        %207 = vst [vmem:[%s2] sm:$0x1] 0.0
      $region32: #{loss_module_forward.3} parent=27 // pred_fallthru
        _
      %v208 = vld [vmem:[%s188] sm:$0xf]
      %v209 = vld [vmem:[%s188 + $0x4] sm:$0xf]
      %v210 = vld [vmem:[%s188 + $0x8] sm:$0xf]
      %v211 = vld [vmem:[%s188 + $0xc] sm:$0xf]
      %v212 = vld [vmem:[%s188 + $0x10] sm:$0xf]
      %v213 = vld [vmem:[%s188 + $0x14] sm:$0xf]
      %v214 = vld [vmem:[%s188 + $0x18] sm:$0xf]
      %v215 = vld [vmem:[%s188 + $0x1c] sm:$0xf]
      %v216 = vld [vmem:[%s188 + $0x20] sm:$0xf]
      %v217 = vld [vmem:[%s188 + $0x24] sm:$0xf]
      %v218 = vld [vmem:[%s188 + $0x28] sm:$0xf]
      %v219 = vld [vmem:[%s188 + $0x2c] sm:$0xf]
      %v220 = vld [vmem:[%s188 + $0x30] sm:$0xf]
      %v221 = vld [vmem:[%s188 + $0x34] sm:$0xf]
      %v222 = vld [vmem:[%s188 + $0x38] sm:$0xf]
      %v223 = vld [vmem:[%s188 + $0x3c] sm:$0xf]
      %v224 = vld [vmem:[%s198] sm:$0xf]
      %v225 = vld [vmem:[%s198 + $0x4] sm:$0xf]
      %v226 = vld [vmem:[%s198 + $0x8] sm:$0xf]
      %v227 = vld [vmem:[%s198 + $0xc] sm:$0xf]
      %v228 = vld [vmem:[%s198 + $0x10] sm:$0xf]
      %v229 = vld [vmem:[%s198 + $0x14] sm:$0xf]
      %v230 = vld [vmem:[%s198 + $0x18] sm:$0xf]
      %v231 = vld [vmem:[%s198 + $0x1c] sm:$0xf]
      %v232 = vld [vmem:[%s198 + $0x20] sm:$0xf]
      %v233 = vld [vmem:[%s198 + $0x24] sm:$0xf]
      %v234 = vld [vmem:[%s198 + $0x28] sm:$0xf]
      %v235 = vld [vmem:[%s198 + $0x2c] sm:$0xf]
      %v236 = vld [vmem:[%s198 + $0x30] sm:$0xf]
      %v237 = vld [vmem:[%s198 + $0x34] sm:$0xf]
      %v238 = vld [vmem:[%s198 + $0x38] sm:$0xf]
      %v239 = vld [vmem:[%s198 + $0x3c] sm:$0xf]
      %v256 = vunpack.c.l.b16 %v208
      %v257 = vunpack.c.l.b16 %v209
      %v258 = vunpack.c.l.b16 %v210
      %v259 = vunpack.c.l.b16 %v211
      %v260 = vunpack.c.l.b16 %v212
      %v261 = vunpack.c.l.b16 %v213
      %v262 = vunpack.c.l.b16 %v214
      %v263 = vunpack.c.l.b16 %v215
      %v264 = vunpack.c.l.b16 %v216
      %v265 = vunpack.c.l.b16 %v217
      %v266 = vunpack.c.l.b16 %v218
      %v267 = vunpack.c.l.b16 %v219
      %v268 = vunpack.c.l.b16 %v220
      %v269 = vunpack.c.l.b16 %v221
      %v270 = vunpack.c.l.b16 %v222
      %v271 = vunpack.c.l.b16 %v223
      %v272 = vpack.c.b16 %v257, %v256
      %v273 = vpack.c.b16 %v259, %v258
      %v274 = vpack.c.b16 %v261, %v260
      %v275 = vpack.c.b16 %v263, %v262
      %v276 = vpack.c.b16 %v265, %v264
      %v277 = vpack.c.b16 %v267, %v266
      %v278 = vpack.c.b16 %v269, %v268
      %v279 = vpack.c.b16 %v271, %v270
      %v304 = vunpack.c.l.b16 %v224
      %v305 = vunpack.c.l.b16 %v225
      %v306 = vunpack.c.l.b16 %v226
      %v307 = vunpack.c.l.b16 %v227
      %v308 = vunpack.c.l.b16 %v228
      %v309 = vunpack.c.l.b16 %v229
      %v310 = vunpack.c.l.b16 %v230
      %v311 = vunpack.c.l.b16 %v231
      %v312 = vunpack.c.l.b16 %v232
      %v313 = vunpack.c.l.b16 %v233
      %v314 = vunpack.c.l.b16 %v234
      %v315 = vunpack.c.l.b16 %v235
      %v316 = vunpack.c.l.b16 %v236
      %v317 = vunpack.c.l.b16 %v237
      %v318 = vunpack.c.l.b16 %v238
      %v319 = vunpack.c.l.b16 %v239
      %v320 = vpack.c.b16 %v305, %v304
      %v321 = vpack.c.b16 %v307, %v306
      %v322 = vpack.c.b16 %v309, %v308
      %v323 = vpack.c.b16 %v311, %v310
      %v324 = vpack.c.b16 %v313, %v312
      %v325 = vpack.c.b16 %v315, %v314
      %v326 = vpack.c.b16 %v317, %v316
      %v327 = vpack.c.b16 %v319, %v318
      %336 = vmatprep.subr.bf16.mxu0 0
      %337 = vmatpush1.bf16.xpose.msra.mxu0 %v327
      %338 = vmatprep.subr.bf16.mxu0 0
      %339 = vmatpush1.bf16.xpose.msra.mxu0 %v326
      %340 = vmatprep.subr.bf16.mxu0 0
      %341 = vmatpush1.bf16.xpose.msra.mxu0 %v325
      %342 = vmatprep.subr.bf16.mxu0 0
      %343 = vmatpush1.bf16.xpose.msra.mxu0 %v324
      %344 = vmatprep.subr.bf16.mxu0 0
      %345 = vmatpush1.bf16.xpose.msra.mxu0 %v323
      %346 = vmatprep.subr.bf16.mxu0 0
      %347 = vmatpush1.bf16.xpose.msra.mxu0 %v322
      %348 = vmatprep.subr.bf16.mxu0 0
      %349 = vmatpush1.bf16.xpose.msra.mxu0 %v321
      %350 = vmatprep.subr.bf16.mxu0 0
      %351 = vmatpush1.bf16.xpose.msra.mxu0 %v320
      %352 = vmatprep.subr.bf16.mxu0 0
      %353 = vmatpush2.bf16.xpose.msra.mxu0 0
      %354 = vmatprep.subr.bf16.mxu0 0
      %355 = vmatpush2.bf16.xpose.msra.mxu0 0
      %356 = vmatprep.subr.bf16.mxu0 0
      %357 = vmatpush2.bf16.xpose.msra.mxu0 0
      %358 = vmatprep.subr.bf16.mxu0 0
      %359 = vmatpush2.bf16.xpose.msra.mxu0 0
      %360 = vmatprep.subr.bf16.mxu0 0
      %361 = vmatpush2.bf16.xpose.msra.mxu0 0
      %362 = vmatprep.subr.bf16.mxu0 0
      %363 = vmatpush2.bf16.xpose.msra.mxu0 0
      %364 = vmatprep.subr.bf16.mxu0 0
      %365 = vmatpush2.bf16.xpose.msra.mxu0 0
      %366 = vmatprep.subr.bf16.mxu0 0
      %367 = vmatpush2.bf16.xpose.msra.mxu0 0
      %368 = vmatprep.mubr.bf16.mxu0 0
      %369 = vmatmul.mubr.bf16.gmra.mxu0 %v272
      %v370 = vpop.f32.mrf.mxu0
      %v371 = vadd.f32 0.0, %v370
      %v372 = vpop.f32.mrf.mxu0
      %v373 = vpop.f32.mrf.mxu0
      %v374 = vadd.f32 0.0, %v373
      %v375 = vpop.f32.mrf.mxu0
      %376 = vmatprep.mubr.bf16.mxu0 0
      %377 = vmatmul.mubr.bf16.gmra.mxu0 %v273
      %v378 = vpop.f32.mrf.mxu0
      %v379 = vadd.f32 0.0, %v378
      %v380 = vpop.f32.mrf.mxu0
      %v381 = vpop.f32.mrf.mxu0
      %v382 = vadd.f32 0.0, %v381
      %v383 = vpop.f32.mrf.mxu0
      %384 = vmatprep.mubr.bf16.mxu0 0
      %385 = vmatmul.mubr.bf16.gmra.mxu0 %v274
      %v386 = vpop.f32.mrf.mxu0
      %v387 = vadd.f32 0.0, %v386
      %v388 = vpop.f32.mrf.mxu0
      %v389 = vpop.f32.mrf.mxu0
      %v390 = vadd.f32 0.0, %v389
      %v391 = vpop.f32.mrf.mxu0
      %392 = vmatprep.mubr.bf16.mxu0 0
      %393 = vmatmul.mubr.bf16.gmra.mxu0 %v275
      %v394 = vpop.f32.mrf.mxu0
      %v395 = vadd.f32 0.0, %v394
      %v396 = vpop.f32.mrf.mxu0
      %v397 = vpop.f32.mrf.mxu0
      %v398 = vadd.f32 0.0, %v397
      %v399 = vpop.f32.mrf.mxu0
      %400 = vmatprep.mubr.bf16.mxu0 0
      %401 = vmatmul.mubr.bf16.gmra.mxu0 %v276
      %v402 = vpop.f32.mrf.mxu0
      %v403 = vadd.f32 0.0, %v402
      %v404 = vpop.f32.mrf.mxu0
      %v405 = vpop.f32.mrf.mxu0
      %v406 = vadd.f32 0.0, %v405
      %v407 = vpop.f32.mrf.mxu0
      %408 = vmatprep.mubr.bf16.mxu0 0
      %409 = vmatmul.mubr.bf16.gmra.mxu0 %v277
      %v410 = vpop.f32.mrf.mxu0
      %v411 = vadd.f32 0.0, %v410
      %v412 = vpop.f32.mrf.mxu0
      %v413 = vpop.f32.mrf.mxu0
      %v414 = vadd.f32 0.0, %v413
      %v415 = vpop.f32.mrf.mxu0
      %416 = vmatprep.mubr.bf16.mxu0 0
      %417 = vmatmul.mubr.bf16.gmra.mxu0 %v278
      %v418 = vpop.f32.mrf.mxu0
      %v419 = vadd.f32 0.0, %v418
      %v420 = vpop.f32.mrf.mxu0
      %v421 = vpop.f32.mrf.mxu0
      %v422 = vadd.f32 0.0, %v421
      %v423 = vpop.f32.mrf.mxu0
      %424 = vmatprep.mubr.bf16.mxu0 0
      %425 = vmatmul.mubr.bf16.gmra.mxu0 %v279
      %v426 = vpop.f32.mrf.mxu0
      %v427 = vadd.f32 0.0, %v426
      %v428 = vpop.f32.mrf.mxu0
      %v429 = vpop.f32.mrf.mxu0
      %v430 = vadd.f32 0.0, %v429
      %v431 = vpop.f32.mrf.mxu0
      %432 = vdwg.mxu0
      %v433 = vld [vmem:[%s2] sm:$0x1]
      %v434 = vand.u32 2147483647, %v371
      %v435 = vand.u32 2147483647, %v374
      %v436 = vand.u32 2147483647, %v379
      %v437 = vand.u32 2147483647, %v382
      %v438 = vand.u32 2147483647, %v387
      %v439 = vand.u32 2147483647, %v390
      %v440 = vand.u32 2147483647, %v395
      %v441 = vand.u32 2147483647, %v398
      %v442 = vand.u32 2147483647, %v403
      %v443 = vand.u32 2147483647, %v406
      %v444 = vand.u32 2147483647, %v411
      %v445 = vand.u32 2147483647, %v414
      %v446 = vand.u32 2147483647, %v419
      %v447 = vand.u32 2147483647, %v422
      %v448 = vand.u32 2147483647, %v427
      %v449 = vand.u32 2147483647, %v430
      %v450 = vadd.f32 %v434, %v435
      %v451 = vadd.f32 %v450, %v436
      %v452 = vadd.f32 %v451, %v437
      %v453 = vadd.f32 %v452, %v438
      %v454 = vadd.f32 %v453, %v439
      %v455 = vadd.f32 %v454, %v440
      %v456 = vadd.f32 %v455, %v441
      %v457 = vadd.f32 %v456, %v442
      %v458 = vadd.f32 %v457, %v443
      %v459 = vadd.f32 %v458, %v444
      %v460 = vadd.f32 %v459, %v445
      %v461 = vadd.f32 %v460, %v446
      %v462 = vadd.f32 %v461, %v447
      %v463 = vadd.f32 %v462, %v448
      %v464 = vadd.f32 %v463, %v449
      %v465 = vrot.slane %v464, 4
      %v466 = vadd.f32 %v464, %v465
      %v467 = vrot.slane %v466, 2
      %v468 = vadd.f32 %v466, %v467
      %v469 = vrot.slane %v468, 1
      %v470 = vadd.f32 %v468, %v469
      %v471 = vadd.f32 %v433, %v470
      %472 = vst [vmem:[%s2] sm:$0x1] %v471
      // Predicated region
      $region33: #{loss_module_forward.3} parent=27 // pred_check
        %p473 = pneg %p101
      $region34: #{loss_module_forward.3} parent=27 // pred_check_branch
        %475 = sbr.rel (%p473) target = $region36
      $region35: #{loss_module_forward.3} parent=27 // pred_region
        _
      $region36: #{loss_module_forward.3} parent=27 // pred_fallthru
        _
      // Predicated region
      $region37: #{loss_module_forward.3} parent=27 // pred_check
        %p476 = pneg %p101
      $region38: #{loss_module_forward.3} parent=27 // pred_check_branch
        %478 = sbr.rel (%p476) target = $region40
      $region39: #{loss_module_forward.3} parent=27 // pred_region
        _
      $region40: #{loss_module_forward.3} parent=27 // pred_fallthru
        _
    $region28: #{loss_module_forward.3} parent=5 // pred_fallthru
      _
    %p479 = scmp.le.s32.totalorder 2, %s8
    // Predicated region
    $region41: #{loss_module_forward.3} parent=5 // pred_check
      %p480 = pneg %p479
    $region42: #{loss_module_forward.3} parent=5 // pred_check_branch
      %482 = sbr.rel (%p480) target = $region44
    $region43: #{loss_module_forward.3} parent=5 // pred_region
      %s483 = ssub.s32 %s8, 2
    $region44: #{loss_module_forward.3} parent=5 // pred_fallthru
      _
  $region6: #{loss_module_forward.3} parent=0 // loop_footer
    %s12 = sadd.s32 1, %s8
  $region7: #{loss_module_forward.3} parent=0 // loop_footer_branch
    %7 = sbr.rel target = $region3
  $region8: #{loss_module_forward.3} parent=0 // loop_exit
    _

// kernel: loss_module_forward.2
$region0: #{loss_module_forward.2}
  #allocation0 [shape = 'u32[]', space=smem, size = 0x4, offset = 0x4, fixed_abs, tag = 'smem constant byte address 0x4 - core index']
  #allocation1 [shape = 'u32[144,128]{1,0:T(1,128)}', space=vmem, size = 0x12000, scoped, tag = 'internal scratch']
  %s0 = inlined_call_operand.vmem [shape: f32[512,8], index: 0, kind: input, shape index: {}]
  %s1 = inlined_call_operand.vmem [shape: f32[512,8], index: 1, kind: input, shape index: {}]
  %s2 = inlined_call_operand.vmem [shape: f32[512,8], index: 2, kind: input, shape index: {}]
  %s3 = inlined_call_operand.vmem [shape: f32[512,8], index: 3, kind: input, shape index: {}]
  %s4 = inlined_call_operand.vmem [shape: f32[8,128], index: 4, kind: input, shape index: {}]
  %s5 = inlined_call_operand.vmem [shape: f32[1,128], index: 5, kind: input, shape index: {}]
  %s6 = inlined_call_operand.vmem [shape: f32[128,128], index: 6, kind: input, shape index: {}]
  %s7 = inlined_call_operand.vmem [shape: f32[1,128], index: 7, kind: input, shape index: {}]
  %s8 = inlined_call_operand.vmem [shape: bf16[512,128], index: 8, kind: output, shape index: {0}]
  %s9 = inlined_call_operand.vmem [shape: bf16[512,128], index: 9, kind: output, shape index: {1}]
  %s10 = inlined_call_operand.vmem [shape: f32[1,128], index: 10, kind: output, shape index: {2}]
  %11 = xla_tuple %s8, %s9, %s10
  %s12 = sld [smem:[#allocation0]]
  $region85: #{loss_module_forward.2} parent=0
    _
  %s14 = ssub.s32 1, %s12
  %s15 = scalar_select 0, %s14, %s12
  loop: start=0, step=1, limit=4
  $region2: #{loss_module_forward.2} parent=0 // loop_pre_header
    _
  $region3: #{loss_module_forward.2} parent=0 // loop_header
    %s17 = sphi 0, %s21
    %p18 = scmp.ge.s32.totalorder %s17, 4
    %s27 = sphi 0, %s29
    %s30 = sphi 0, %s27
    %s31 = sphi 0, %s30
    %s47 = sphi 0, %s31
    %s53 = sphi 0, %s55
    %s56 = sphi 0, %s53
    %s57 = sphi 0, %s56
    %s73 = sphi 0, %s57
    %s79 = sphi 0, %s81
    %s82 = sphi 0, %s79
    %s83 = sphi 0, %s82
    %s99 = sphi 0, %s83
    %s105 = sphi 0, %s107
    %s108 = sphi 0, %s105
    %s109 = sphi 0, %s108
    %s125 = sphi 0, %s109
    %s129 = sphi 0, %s129
    %s131 = sphi 0, %s129
    %s132 = sphi 0, %s131
    %s146 = sphi 0, %s132
    %s150 = sphi 0, %s150
    %s152 = sphi 0, %s150
    %s153 = sphi 0, %s152
    %s167 = sphi 0, %s153
    %s171 = sphi 0, %s171
    %s173 = sphi 0, %s171
    %s174 = sphi 0, %s173
    %s188 = sphi 0, %s174
    %s192 = sphi 0, %s192
    %s194 = sphi 0, %s192
    %s195 = sphi 0, %s194
    %s209 = sphi 0, %s195
    %s215 = sphi 0, %s217
    %s218 = sphi 0, %s215
    %s219 = sphi 0, %s218
    %s235 = sphi 0, %s219
    %s241 = sphi 0, %s243
    %s244 = sphi 0, %s241
    %s245 = sphi 0, %s244
    %s261 = sphi 0, %s245
    %s265 = sphi 0, %s265
    %s267 = sphi 0, %s265
    %s268 = sphi 0, %s267
    %s282 = sphi 0, %s268
  $region4: #{loss_module_forward.2} parent=0 // loop_header_branch
    %20 = sbr.rel (%p18) target = $region8
  $region5: #{loss_module_forward.2} parent=0 // loop_body
    %s22 = ssub.s32 %s17, 1
    %s23 = ssub.s32 %s17, 2
    %s24 = sadd.s32 %s17, 1
    %s25 = ssub.s32 %s17, %s24
    %p26 = scmp.eq.s32.totalorder %s25, 0
    %s28 = sadd.s32 %s27, 1
    %s29 = scalar_select %p26, %s27, %s28
    %p32 = pneg %p26
    %p33 = scmp.eq.s32.totalorder %s17, 1
    %p34 = por %p32, %p33
    %p35 = scmp.ne.s32.totalorder %s27, %s30
    %p36 = scmp.eq.s32.totalorder %s17, 0
    %p37 = por %p35, %p36
    %p38 = scmp.ne.s32.totalorder %s27, %s30
    %p39 = scmp.eq.s32.totalorder %s22, 1
    %p40 = por %p38, %p39
    %p41 = scmp.ne.s32.totalorder %s30, %s31
    %p42 = scmp.eq.s32.totalorder %s22, 0
    %p43 = por %p41, %p42
    %p44 = scmp.ne.s32.totalorder %s30, %s31
    %p45 = scmp.eq.s32.totalorder %s23, 1
    %p46 = por %p44, %p45
    %p48 = scmp.ne.s32.totalorder %s31, %s47
    %p49 = scmp.eq.s32.totalorder %s23, 0
    %p50 = por %p48, %p49
    %s51 = ssub.s32 %s17, %s24
    %p52 = scmp.eq.s32.totalorder %s51, 0
    %s54 = sadd.s32 %s53, 1
    %s55 = scalar_select %p52, %s53, %s54
    %p58 = pneg %p52
    %p59 = scmp.eq.s32.totalorder %s17, 1
    %p60 = por %p58, %p59
    %p61 = scmp.ne.s32.totalorder %s53, %s56
    %p62 = scmp.eq.s32.totalorder %s17, 0
    %p63 = por %p61, %p62
    %p64 = scmp.ne.s32.totalorder %s53, %s56
    %p65 = scmp.eq.s32.totalorder %s22, 1
    %p66 = por %p64, %p65
    %p67 = scmp.ne.s32.totalorder %s56, %s57
    %p68 = scmp.eq.s32.totalorder %s22, 0
    %p69 = por %p67, %p68
    %p70 = scmp.ne.s32.totalorder %s56, %s57
    %p71 = scmp.eq.s32.totalorder %s23, 1
    %p72 = por %p70, %p71
    %p74 = scmp.ne.s32.totalorder %s57, %s73
    %p75 = scmp.eq.s32.totalorder %s23, 0
    %p76 = por %p74, %p75
    %s77 = ssub.s32 %s17, %s24
    %p78 = scmp.eq.s32.totalorder %s77, 0
    %s80 = sadd.s32 %s79, 1
    %s81 = scalar_select %p78, %s79, %s80
    %p84 = pneg %p78
    %p85 = scmp.eq.s32.totalorder %s17, 1
    %p86 = por %p84, %p85
    %p87 = scmp.ne.s32.totalorder %s79, %s82
    %p88 = scmp.eq.s32.totalorder %s17, 0
    %p89 = por %p87, %p88
    %p90 = scmp.ne.s32.totalorder %s79, %s82
    %p91 = scmp.eq.s32.totalorder %s22, 1
    %p92 = por %p90, %p91
    %p93 = scmp.ne.s32.totalorder %s82, %s83
    %p94 = scmp.eq.s32.totalorder %s22, 0
    %p95 = por %p93, %p94
    %p96 = scmp.ne.s32.totalorder %s82, %s83
    %p97 = scmp.eq.s32.totalorder %s23, 1
    %p98 = por %p96, %p97
    %p100 = scmp.ne.s32.totalorder %s83, %s99
    %p101 = scmp.eq.s32.totalorder %s23, 0
    %p102 = por %p100, %p101
    %s103 = ssub.s32 %s17, %s24
    %p104 = scmp.eq.s32.totalorder %s103, 0
    %s106 = sadd.s32 %s105, 1
    %s107 = scalar_select %p104, %s105, %s106
    %p110 = pneg %p104
    %p111 = scmp.eq.s32.totalorder %s17, 1
    %p112 = por %p110, %p111
    %p113 = scmp.ne.s32.totalorder %s105, %s108
    %p114 = scmp.eq.s32.totalorder %s17, 0
    %p115 = por %p113, %p114
    %p116 = scmp.ne.s32.totalorder %s105, %s108
    %p117 = scmp.eq.s32.totalorder %s22, 1
    %p118 = por %p116, %p117
    %p119 = scmp.ne.s32.totalorder %s108, %s109
    %p120 = scmp.eq.s32.totalorder %s22, 0
    %p121 = por %p119, %p120
    %p122 = scmp.ne.s32.totalorder %s108, %s109
    %p123 = scmp.eq.s32.totalorder %s23, 1
    %p124 = por %p122, %p123
    %p126 = scmp.ne.s32.totalorder %s109, %s125
    %p127 = scmp.eq.s32.totalorder %s23, 0
    %p128 = por %p126, %p127
    %s130 = sadd.s32 %s129, 1
    %p133 = scmp.eq.s32.totalorder %s17, 1
    %p134 = scmp.ne.s32.totalorder %s129, %s131
    %p135 = scmp.eq.s32.totalorder %s17, 0
    %p136 = por %p134, %p135
    %p137 = scmp.ne.s32.totalorder %s129, %s131
    %p138 = scmp.eq.s32.totalorder %s22, 1
    %p139 = por %p137, %p138
    %p140 = scmp.ne.s32.totalorder %s131, %s132
    %p141 = scmp.eq.s32.totalorder %s22, 0
    %p142 = por %p140, %p141
    %p143 = scmp.ne.s32.totalorder %s131, %s132
    %p144 = scmp.eq.s32.totalorder %s23, 1
    %p145 = por %p143, %p144
    %p147 = scmp.ne.s32.totalorder %s132, %s146
    %p148 = scmp.eq.s32.totalorder %s23, 0
    %p149 = por %p147, %p148
    %s151 = sadd.s32 %s150, 1
    %p154 = scmp.eq.s32.totalorder %s17, 1
    %p155 = scmp.ne.s32.totalorder %s150, %s152
    %p156 = scmp.eq.s32.totalorder %s17, 0
    %p157 = por %p155, %p156
    %p158 = scmp.ne.s32.totalorder %s150, %s152
    %p159 = scmp.eq.s32.totalorder %s22, 1
    %p160 = por %p158, %p159
    %p161 = scmp.ne.s32.totalorder %s152, %s153
    %p162 = scmp.eq.s32.totalorder %s22, 0
    %p163 = por %p161, %p162
    %p164 = scmp.ne.s32.totalorder %s152, %s153
    %p165 = scmp.eq.s32.totalorder %s23, 1
    %p166 = por %p164, %p165
    %p168 = scmp.ne.s32.totalorder %s153, %s167
    %p169 = scmp.eq.s32.totalorder %s23, 0
    %p170 = por %p168, %p169
    %s172 = sadd.s32 %s171, 1
    %p175 = scmp.eq.s32.totalorder %s17, 1
    %p176 = scmp.ne.s32.totalorder %s171, %s173
    %p177 = scmp.eq.s32.totalorder %s17, 0
    %p178 = por %p176, %p177
    %p179 = scmp.ne.s32.totalorder %s171, %s173
    %p180 = scmp.eq.s32.totalorder %s22, 1
    %p181 = por %p179, %p180
    %p182 = scmp.ne.s32.totalorder %s173, %s174
    %p183 = scmp.eq.s32.totalorder %s22, 0
    %p184 = por %p182, %p183
    %p185 = scmp.ne.s32.totalorder %s173, %s174
    %p186 = scmp.eq.s32.totalorder %s23, 1
    %p187 = por %p185, %p186
    %p189 = scmp.ne.s32.totalorder %s174, %s188
    %p190 = scmp.eq.s32.totalorder %s23, 0
    %p191 = por %p189, %p190
    %s193 = sadd.s32 %s192, 1
    %p196 = scmp.eq.s32.totalorder %s17, 1
    %p197 = scmp.ne.s32.totalorder %s192, %s194
    %p198 = scmp.eq.s32.totalorder %s17, 0
    %p199 = por %p197, %p198
    %p200 = scmp.ne.s32.totalorder %s192, %s194
    %p201 = scmp.eq.s32.totalorder %s22, 1
    %p202 = por %p200, %p201
    %p203 = scmp.ne.s32.totalorder %s194, %s195
    %p204 = scmp.eq.s32.totalorder %s22, 0
    %p205 = por %p203, %p204
    %p206 = scmp.ne.s32.totalorder %s194, %s195
    %p207 = scmp.eq.s32.totalorder %s23, 1
    %p208 = por %p206, %p207
    %p210 = scmp.ne.s32.totalorder %s195, %s209
    %p211 = scmp.eq.s32.totalorder %s23, 0
    %p212 = por %p210, %p211
    %s213 = ssub.s32 %s17, %s24
    %p214 = scmp.eq.s32.totalorder %s213, 0
    %s216 = sadd.s32 %s215, 1
    %s217 = scalar_select %p214, %s215, %s216
    %p220 = pneg %p214
    %p221 = scmp.eq.s32.totalorder %s17, 1
    %p222 = por %p220, %p221
    %p223 = scmp.ne.s32.totalorder %s215, %s218
    %p224 = scmp.eq.s32.totalorder %s17, 0
    %p225 = por %p223, %p224
    %p226 = scmp.ne.s32.totalorder %s215, %s218
    %p227 = scmp.eq.s32.totalorder %s22, 1
    %p228 = por %p226, %p227
    %p229 = scmp.ne.s32.totalorder %s218, %s219
    %p230 = scmp.eq.s32.totalorder %s22, 0
    %p231 = por %p229, %p230
    %p232 = scmp.ne.s32.totalorder %s218, %s219
    %p233 = scmp.eq.s32.totalorder %s23, 1
    %p234 = por %p232, %p233
    %p236 = scmp.ne.s32.totalorder %s219, %s235
    %p237 = scmp.eq.s32.totalorder %s23, 0
    %p238 = por %p236, %p237
    %s239 = ssub.s32 %s17, %s24
    %p240 = scmp.eq.s32.totalorder %s239, 0
    %s242 = sadd.s32 %s241, 1
    %s243 = scalar_select %p240, %s241, %s242
    %p246 = pneg %p240
    %p247 = scmp.eq.s32.totalorder %s17, 1
    %p248 = por %p246, %p247
    %p249 = scmp.ne.s32.totalorder %s241, %s244
    %p250 = scmp.eq.s32.totalorder %s17, 0
    %p251 = por %p249, %p250
    %p252 = scmp.ne.s32.totalorder %s241, %s244
    %p253 = scmp.eq.s32.totalorder %s22, 1
    %p254 = por %p252, %p253
    %p255 = scmp.ne.s32.totalorder %s244, %s245
    %p256 = scmp.eq.s32.totalorder %s22, 0
    %p257 = por %p255, %p256
    %p258 = scmp.ne.s32.totalorder %s244, %s245
    %p259 = scmp.eq.s32.totalorder %s23, 1
    %p260 = por %p258, %p259
    %p262 = scmp.ne.s32.totalorder %s245, %s261
    %p263 = scmp.eq.s32.totalorder %s23, 0
    %p264 = por %p262, %p263
    %s266 = sadd.s32 %s265, 1
    %p269 = scmp.eq.s32.totalorder %s17, 1
    %p270 = scmp.ne.s32.totalorder %s265, %s267
    %p271 = scmp.eq.s32.totalorder %s17, 0
    %p272 = por %p270, %p271
    %p273 = scmp.ne.s32.totalorder %s265, %s267
    %p274 = scmp.eq.s32.totalorder %s22, 1
    %p275 = por %p273, %p274
    %p276 = scmp.ne.s32.totalorder %s267, %s268
    %p277 = scmp.eq.s32.totalorder %s22, 0
    %p278 = por %p276, %p277
    %p279 = scmp.ne.s32.totalorder %s267, %s268
    %p280 = scmp.eq.s32.totalorder %s23, 1
    %p281 = por %p279, %p280
    %p283 = scmp.ne.s32.totalorder %s268, %s282
    %p284 = scmp.eq.s32.totalorder %s23, 0
    %p285 = por %p283, %p284
    %p286 = scmp.le.s32.totalorder 1, %s17
    %p287 = scmp.lt.s32.totalorder %s17, 3
    %p288 = pnand %p286, %p287
    %p289 = pneg %p288
    // Predicated region
    $region9: #{loss_module_forward.2} parent=5 // pred_check
      _
    $region10: #{loss_module_forward.2} parent=5 // pred_check_branch
      %291 = sbr.rel (%p288) target = $region12
    $region11: #{loss_module_forward.2} parent=5 // pred_region
      %s292 = ssub.s32 %s17, 1
      // Predicated region
      $region13: #{loss_module_forward.2} parent=11 // pred_check
        %p293 = pneg %p142
      $region14: #{loss_module_forward.2} parent=11 // pred_check_branch
        %295 = sbr.rel (%p293) target = $region16
      $region15: #{loss_module_forward.2} parent=11 // pred_region
        _
      $region16: #{loss_module_forward.2} parent=11 // pred_fallthru
        _
      // Predicated region
      $region17: #{loss_module_forward.2} parent=11 // pred_check
        %p296 = pneg %p163
      $region18: #{loss_module_forward.2} parent=11 // pred_check_branch
        %298 = sbr.rel (%p296) target = $region20
      $region19: #{loss_module_forward.2} parent=11 // pred_region
        _
      $region20: #{loss_module_forward.2} parent=11 // pred_fallthru
        _
      // Predicated region
      $region21: #{loss_module_forward.2} parent=11 // pred_check
        %p299 = pneg %p184
      $region22: #{loss_module_forward.2} parent=11 // pred_check_branch
        %301 = sbr.rel (%p299) target = $region24
      $region23: #{loss_module_forward.2} parent=11 // pred_region
        _
      $region24: #{loss_module_forward.2} parent=11 // pred_fallthru
        _
      // Predicated region
      $region25: #{loss_module_forward.2} parent=11 // pred_check
        %p302 = pneg %p205
      $region26: #{loss_module_forward.2} parent=11 // pred_check_branch
        %304 = sbr.rel (%p302) target = $region28
      $region27: #{loss_module_forward.2} parent=11 // pred_region
        _
      $region28: #{loss_module_forward.2} parent=11 // pred_fallthru
        _
    $region12: #{loss_module_forward.2} parent=5 // pred_fallthru
      _
    %p305 = scmp.lt.s32.totalorder %s17, 2
    // Predicated region
    $region29: #{loss_module_forward.2} parent=5 // pred_check
      %p306 = pneg %p305
    $region30: #{loss_module_forward.2} parent=5 // pred_check_branch
      %308 = sbr.rel (%p306) target = $region32
    $region31: #{loss_module_forward.2} parent=5 // pred_region
      // Predicated region
      $region33: #{loss_module_forward.2} parent=31 // pred_check
        %p309 = pneg %p37
      $region34: #{loss_module_forward.2} parent=31 // pred_check_branch
        %311 = sbr.rel (%p309) target = $region36
      $region35: #{loss_module_forward.2} parent=31 // pred_region
        %s312 = smul.u32 32, %s17
        %p313 = scmp.lt.s32.totalorder %s312, 63
        %s314 = scalar_select %p313, %s312, 63
        %s315 = smul.addr %s314, 8
        %s316 = scalar_lea.vmem %s0, %s315
        %s317 = smul.u32 32, %s17
      $region36: #{loss_module_forward.2} parent=31 // pred_fallthru
        _
      // Predicated region
      $region37: #{loss_module_forward.2} parent=31 // pred_check
        %p318 = pneg %p63
      $region38: #{loss_module_forward.2} parent=31 // pred_check_branch
        %320 = sbr.rel (%p318) target = $region40
      $region39: #{loss_module_forward.2} parent=31 // pred_region
        %s321 = smul.u32 32, %s17
        %p322 = scmp.lt.s32.totalorder %s321, 63
        %s323 = scalar_select %p322, %s321, 63
        %s324 = smul.addr %s323, 8
        %s325 = scalar_lea.vmem %s1, %s324
        %s326 = smul.u32 32, %s17
      $region40: #{loss_module_forward.2} parent=31 // pred_fallthru
        _
      // Predicated region
      $region41: #{loss_module_forward.2} parent=31 // pred_check
        %p327 = pneg %p89
      $region42: #{loss_module_forward.2} parent=31 // pred_check_branch
        %329 = sbr.rel (%p327) target = $region44
      $region43: #{loss_module_forward.2} parent=31 // pred_region
        %s330 = smul.u32 32, %s17
        %p331 = scmp.lt.s32.totalorder %s330, 63
        %s332 = scalar_select %p331, %s330, 63
        %s333 = smul.addr %s332, 8
        %s334 = scalar_lea.vmem %s2, %s333
        %s335 = smul.u32 32, %s17
      $region44: #{loss_module_forward.2} parent=31 // pred_fallthru
        _
      // Predicated region
      $region45: #{loss_module_forward.2} parent=31 // pred_check
        %p336 = pneg %p115
      $region46: #{loss_module_forward.2} parent=31 // pred_check_branch
        %338 = sbr.rel (%p336) target = $region48
      $region47: #{loss_module_forward.2} parent=31 // pred_region
        %s339 = smul.u32 32, %s17
        %p340 = scmp.lt.s32.totalorder %s339, 63
        %s341 = scalar_select %p340, %s339, 63
        %s342 = smul.addr %s341, 8
        %s343 = scalar_lea.vmem %s3, %s342
        %s344 = smul.u32 32, %s17
      $region48: #{loss_module_forward.2} parent=31 // pred_fallthru
        _
    $region32: #{loss_module_forward.2} parent=5 // pred_fallthru
      _
    %p345 = scmp.le.s32.totalorder 1, %s17
    %p346 = scmp.lt.s32.totalorder %s17, 3
    %p347 = pnand %p345, %p346
    %p348 = pneg %p347
    // Predicated region
    $region49: #{loss_module_forward.2} parent=5 // pred_check
      _
    $region50: #{loss_module_forward.2} parent=5 // pred_check_branch
      %350 = sbr.rel (%p347) target = $region52
    $region51: #{loss_module_forward.2} parent=5 // pred_region
      %s351 = ssub.s32 %s17, 1
      %s352 = smul.u32 32, %s22
      %p353 = scmp.lt.s32.totalorder %s352, 63
      %s354 = scalar_select %p353, %s352, 63
      %s355 = smul.addr %s354, 8
      %s356 = scalar_lea.vmem %s0, %s355
      %p357 = pneg %p43
      %p358 = pneg %p40
      %s359 = smul.u32 32, %s22
      %p360 = scmp.lt.s32.totalorder %s359, 63
      %s361 = scalar_select %p360, %s359, 63
      %s362 = smul.addr %s361, 8
      %s363 = scalar_lea.vmem %s1, %s362
      %p364 = pneg %p69
      %p365 = pneg %p66
      %s366 = smul.u32 32, %s22
      %p367 = scmp.lt.s32.totalorder %s366, 63
      %s368 = scalar_select %p367, %s366, 63
      %s369 = smul.addr %s368, 8
      %s370 = scalar_lea.vmem %s2, %s369
      %p371 = pneg %p95
      %p372 = pneg %p92
      %s373 = smul.u32 32, %s22
      %p374 = scmp.lt.s32.totalorder %s373, 63
      %s375 = scalar_select %p374, %s373, 63
      %s376 = smul.addr %s375, 8
      %s377 = scalar_lea.vmem %s3, %s376
      %p378 = pneg %p121
      %p379 = pneg %p118
      %p380 = pneg %p142
      %p381 = pneg %p139
      %p382 = pneg %p163
      %p383 = pneg %p160
      %p384 = pneg %p184
      %p385 = pneg %p181
      %p386 = pneg %p205
      %p387 = pneg %p202
      %p388 = pneg %p231
      %p389 = pneg %p228
      %s390 = smul.u32 32, %s22
      %p391 = scmp.lt.s32.totalorder %s390, 63
      %s392 = scalar_select %p391, %s390, 63
      %s393 = smul.addr %s392, 4
      %s394 = scalar_lea.vmem %s8, %s393
      %p395 = pneg %p257
      %p396 = pneg %p254
      %s397 = smul.u32 32, %s22
      %p398 = scmp.lt.s32.totalorder %s397, 63
      %s399 = scalar_select %p398, %s397, 63
      %s400 = smul.addr %s399, 4
      %s401 = scalar_lea.vmem %s9, %s400
      %p402 = pneg %p278
      %p403 = pneg %p275
      %s404 = smul.u32 32, %s22
      %p405 = scmp.lt.s32.totalorder %s404, 63
      %s406 = scalar_select %p405, %s404, 63
      %s407 = smul.addr %s406, 8
      %s408 = scalar_lea.vmem %s0, %s407
      %s409 = smul.u32 32, %s22
      %s410 = smul.u32 32, %s22
      %p411 = scmp.lt.s32.totalorder %s410, 63
      %s412 = scalar_select %p411, %s410, 63
      %s413 = smul.addr %s412, 8
      %s414 = scalar_lea.vmem %s1, %s413
      %s415 = smul.u32 32, %s22
      %s416 = smul.u32 32, %s22
      %p417 = scmp.lt.s32.totalorder %s416, 63
      %s418 = scalar_select %p417, %s416, 63
      %s419 = smul.addr %s418, 8
      %s420 = scalar_lea.vmem %s2, %s419
      %s421 = smul.u32 32, %s22
      %s422 = smul.u32 32, %s22
      %p423 = scmp.lt.s32.totalorder %s422, 63
      %s424 = scalar_select %p423, %s422, 63
      %s425 = smul.addr %s424, 8
      %s426 = scalar_lea.vmem %s3, %s425
      %s427 = smul.u32 32, %s22
      %s428 = smul.u32 32, %s22
      %p429 = scmp.lt.s32.totalorder %s428, 63
      %s430 = scalar_select %p429, %s428, 63
      %s431 = smul.addr %s430, 4
      %s432 = scalar_lea.vmem %s8, %s431
      %s433 = smul.u32 32, %s22
      %s434 = smul.u32 32, %s22
      %p435 = scmp.lt.s32.totalorder %s434, 63
      %s436 = scalar_select %p435, %s434, 63
      %s437 = smul.addr %s436, 4
      %s438 = scalar_lea.vmem %s9, %s437
      %s439 = smul.u32 32, %s22
      %v440 = vld [vmem:[%s4] sm:$0xff]
      %v441 = vld [vmem:[%s5] sm:$0x1]
      %v442 = vld [vmem:[%s6] sm:$0xff]
      %v443 = vld [vmem:[%s6 + $0x8] sm:$0xff]
      %v444 = vld [vmem:[%s6 + $0x10] sm:$0xff]
      %v445 = vld [vmem:[%s6 + $0x18] sm:$0xff]
      %v446 = vld [vmem:[%s6 + $0x20] sm:$0xff]
      %v447 = vld [vmem:[%s6 + $0x28] sm:$0xff]
      %v448 = vld [vmem:[%s6 + $0x30] sm:$0xff]
      %v449 = vld [vmem:[%s6 + $0x38] sm:$0xff]
      %v450 = vld [vmem:[%s6 + $0x40] sm:$0xff]
      %v451 = vld [vmem:[%s6 + $0x48] sm:$0xff]
      %v452 = vld [vmem:[%s6 + $0x50] sm:$0xff]
      %v453 = vld [vmem:[%s6 + $0x58] sm:$0xff]
      %v454 = vld [vmem:[%s6 + $0x60] sm:$0xff]
      %v455 = vld [vmem:[%s6 + $0x68] sm:$0xff]
      %v456 = vld [vmem:[%s6 + $0x70] sm:$0xff]
      %v457 = vld [vmem:[%s6 + $0x78] sm:$0xff]
      %v458 = vld [vmem:[%s7] sm:$0x1]
      %v459 = vld [vmem:[%s408] sm:$0xff]
      %v460 = vld [vmem:[%s408 + $0x8] sm:$0xff]
      %v461 = vld [vmem:[%s408 + $0x10] sm:$0xff]
      %v462 = vld [vmem:[%s408 + $0x18] sm:$0xff]
      %v463 = vld [vmem:[%s408 + $0x20] sm:$0xff]
      %v464 = vld [vmem:[%s408 + $0x28] sm:$0xff]
      %v465 = vld [vmem:[%s408 + $0x30] sm:$0xff]
      %v466 = vld [vmem:[%s408 + $0x38] sm:$0xff]
      %v467 = vld [vmem:[%s408 + $0x40] sm:$0xff]
      %v468 = vld [vmem:[%s408 + $0x48] sm:$0xff]
      %v469 = vld [vmem:[%s408 + $0x50] sm:$0xff]
      %v470 = vld [vmem:[%s408 + $0x58] sm:$0xff]
      %v471 = vld [vmem:[%s408 + $0x60] sm:$0xff]
      %v472 = vld [vmem:[%s408 + $0x68] sm:$0xff]
      %v473 = vld [vmem:[%s408 + $0x70] sm:$0xff]
      %v474 = vld [vmem:[%s408 + $0x78] sm:$0xff]
      %v475 = vld [vmem:[%s408 + $0x80] sm:$0xff]
      %v476 = vld [vmem:[%s408 + $0x88] sm:$0xff]
      %v477 = vld [vmem:[%s408 + $0x90] sm:$0xff]
      %v478 = vld [vmem:[%s408 + $0x98] sm:$0xff]
      %v479 = vld [vmem:[%s408 + $0xa0] sm:$0xff]
      %v480 = vld [vmem:[%s408 + $0xa8] sm:$0xff]
      %v481 = vld [vmem:[%s408 + $0xb0] sm:$0xff]
      %v482 = vld [vmem:[%s408 + $0xb8] sm:$0xff]
      %v483 = vld [vmem:[%s408 + $0xc0] sm:$0xff]
      %v484 = vld [vmem:[%s408 + $0xc8] sm:$0xff]
      %v485 = vld [vmem:[%s408 + $0xd0] sm:$0xff]
      %v486 = vld [vmem:[%s408 + $0xd8] sm:$0xff]
      %v487 = vld [vmem:[%s408 + $0xe0] sm:$0xff]
      %v488 = vld [vmem:[%s408 + $0xe8] sm:$0xff]
      %v489 = vld [vmem:[%s408 + $0xf0] sm:$0xff]
      %v490 = vld [vmem:[%s408 + $0xf8] sm:$0xff]
      %v492 = vlaneseq
      %v493 = vshrl.u32 %v492, 7
      %v494 = vsub.s32 0, %v493
      %v495 = vrot.slane %v441, %v494
      %vm497 = vcmask 64512
      %v499 = vsel %vm497, %v459, 0
      %v502 = vsel %vm497, %v460, 0
      %v505 = vsel %vm497, %v461, 0
      %v508 = vsel %vm497, %v462, 0
      %v511 = vsel %vm497, %v463, 0
      %v514 = vsel %vm497, %v464, 0
      %v517 = vsel %vm497, %v465, 0
      %v520 = vsel %vm497, %v466, 0
      %v523 = vsel %vm497, %v467, 0
      %v526 = vsel %vm497, %v468, 0
      %v529 = vsel %vm497, %v469, 0
      %v532 = vsel %vm497, %v470, 0
      %v535 = vsel %vm497, %v471, 0
      %v538 = vsel %vm497, %v472, 0
      %v541 = vsel %vm497, %v473, 0
      %v544 = vsel %vm497, %v474, 0
      %v547 = vsel %vm497, %v475, 0
      %v550 = vsel %vm497, %v476, 0
      %v553 = vsel %vm497, %v477, 0
      %v556 = vsel %vm497, %v478, 0
      %v559 = vsel %vm497, %v479, 0
      %v562 = vsel %vm497, %v480, 0
      %v565 = vsel %vm497, %v481, 0
      %v568 = vsel %vm497, %v482, 0
      %v571 = vsel %vm497, %v483, 0
      %v574 = vsel %vm497, %v484, 0
      %v577 = vsel %vm497, %v485, 0
      %v580 = vsel %vm497, %v486, 0
      %v583 = vsel %vm497, %v487, 0
      %v586 = vsel %vm497, %v488, 0
      %v589 = vsel %vm497, %v489, 0
      %v592 = vsel %vm497, %v490, 0
      %594 = vmatprep.subr.mxu0 0.0
      %595 = vmatpush1.msra.mxu0 0.0
      %596 = vmatprep.subr.mxu0 0.0
      %597 = vmatpush1.msra.mxu0 0.0
      %598 = vmatprep.subr.mxu0 0.0
      %599 = vmatpush1.msra.mxu0 0.0
      %600 = vmatprep.subr.mxu0 0.0
      %601 = vmatpush1.msra.mxu0 0.0
      %602 = vmatprep.subr.mxu0 0.0
      %603 = vmatpush1.msra.mxu0 0.0
      %604 = vmatprep.subr.mxu0 0.0
      %605 = vmatpush1.msra.mxu0 0.0
      %606 = vmatprep.subr.mxu0 0.0
      %607 = vmatpush1.msra.mxu0 0.0
      %608 = vmatprep.subr.mxu0 0.0
      %609 = vmatpush1.msra.mxu0 0.0
      %610 = vmatprep.subr.mxu0 0.0
      %611 = vmatpush1.msra.mxu0 0.0
      %612 = vmatprep.subr.mxu0 0.0
      %613 = vmatpush1.msra.mxu0 0.0
      %614 = vmatprep.subr.mxu0 0.0
      %615 = vmatpush1.msra.mxu0 0.0
      %616 = vmatprep.subr.mxu0 0.0
      %617 = vmatpush1.msra.mxu0 0.0
      %618 = vmatprep.subr.mxu0 0.0
      %619 = vmatpush1.msra.mxu0 0.0
      %620 = vmatprep.subr.mxu0 0.0
      %621 = vmatpush1.msra.mxu0 0.0
      %622 = vmatprep.subr.mxu0 0.0
      %623 = vmatpush1.msra.mxu0 0.0
      %624 = vmatprep.subr.mxu0 0.0
      %625 = vmatpush1.msra.mxu0 %v440
      %626 = vmatprep.subr.mxu0 0.0
      %627 = vmatpush2.msra.mxu0 0.0
      %628 = vmatprep.subr.mxu0 0.0
      %629 = vmatpush2.msra.mxu0 0.0
      %630 = vmatprep.subr.mxu0 0.0
      %631 = vmatpush2.msra.mxu0 0.0
      %632 = vmatprep.subr.mxu0 0.0
      %633 = vmatpush2.msra.mxu0 0.0
      %634 = vmatprep.subr.mxu0 0.0
      %635 = vmatpush2.msra.mxu0 0.0
      %636 = vmatprep.subr.mxu0 0.0
      %637 = vmatpush2.msra.mxu0 0.0
      %638 = vmatprep.subr.mxu0 0.0
      %639 = vmatpush2.msra.mxu0 0.0
      %640 = vmatprep.subr.mxu0 0.0
      %641 = vmatpush2.msra.mxu0 0.0
      %642 = vmatprep.subr.mxu0 0.0
      %643 = vmatpush2.msra.mxu0 0.0
      %644 = vmatprep.subr.mxu0 0.0
      %645 = vmatpush2.msra.mxu0 0.0
      %646 = vmatprep.subr.mxu0 0.0
      %647 = vmatpush2.msra.mxu0 0.0
      %648 = vmatprep.subr.mxu0 0.0
      %649 = vmatpush2.msra.mxu0 0.0
      %650 = vmatprep.subr.mxu0 0.0
      %651 = vmatpush2.msra.mxu0 0.0
      %652 = vmatprep.subr.mxu0 0.0
      %653 = vmatpush2.msra.mxu0 0.0
      %654 = vmatprep.subr.mxu0 0.0
      %655 = vmatpush2.msra.mxu0 0.0
      %656 = vmatprep.subr.mxu0 0.0
      %657 = vmatpush2.msra.mxu0 0.0
      %658 = vmatprep.mubr.f32.mxu0 0.0
      %659 = vmatmul.mubr.f32.gmra.mxu0 %v499
      %v660 = vpop.f32.mrf.mxu0
      %v661 = vadd.f32 %v495, %v660
      %v662 = vpop.f32.mrf.mxu0
      %663 = vmatprep.mubr.f32.mxu0 0.0
      %664 = vmatmul.mubr.f32.gmra.mxu0 %v502
      %v665 = vpop.f32.mrf.mxu0
      %v666 = vadd.f32 %v495, %v665
      %v667 = vpop.f32.mrf.mxu0
      %668 = vmatprep.mubr.f32.mxu0 0.0
      %669 = vmatmul.mubr.f32.gmra.mxu0 %v505
      %v670 = vpop.f32.mrf.mxu0
      %v671 = vadd.f32 %v495, %v670
      %v672 = vpop.f32.mrf.mxu0
      %673 = vmatprep.mubr.f32.mxu0 0.0
      %674 = vmatmul.mubr.f32.gmra.mxu0 %v508
      %v675 = vpop.f32.mrf.mxu0
      %v676 = vadd.f32 %v495, %v675
      %v677 = vpop.f32.mrf.mxu0
      %678 = vmatprep.mubr.f32.mxu0 0.0
      %679 = vmatmul.mubr.f32.gmra.mxu0 %v511
      %v680 = vpop.f32.mrf.mxu0
      %v681 = vadd.f32 %v495, %v680
      %v682 = vpop.f32.mrf.mxu0
      %683 = vmatprep.mubr.f32.mxu0 0.0
      %684 = vmatmul.mubr.f32.gmra.mxu0 %v514
      %v685 = vpop.f32.mrf.mxu0
      %v686 = vadd.f32 %v495, %v685
      %v687 = vpop.f32.mrf.mxu0
      %688 = vmatprep.mubr.f32.mxu0 0.0
      %689 = vmatmul.mubr.f32.gmra.mxu0 %v517
      %v690 = vpop.f32.mrf.mxu0
      %v691 = vadd.f32 %v495, %v690
      %v692 = vpop.f32.mrf.mxu0
      %693 = vmatprep.mubr.f32.mxu0 0.0
      %694 = vmatmul.mubr.f32.gmra.mxu0 %v520
      %v695 = vpop.f32.mrf.mxu0
      %v696 = vadd.f32 %v495, %v695
      %v697 = vpop.f32.mrf.mxu0
      %698 = vmatprep.mubr.f32.mxu0 0.0
      %699 = vmatmul.mubr.f32.gmra.mxu0 %v523
      %v700 = vpop.f32.mrf.mxu0
      %v701 = vadd.f32 %v495, %v700
      %v702 = vpop.f32.mrf.mxu0
      %703 = vmatprep.mubr.f32.mxu0 0.0
      %704 = vmatmul.mubr.f32.gmra.mxu0 %v526
      %v705 = vpop.f32.mrf.mxu0
      %v706 = vadd.f32 %v495, %v705
      %v707 = vpop.f32.mrf.mxu0
      %708 = vmatprep.mubr.f32.mxu0 0.0
      %709 = vmatmul.mubr.f32.gmra.mxu0 %v529
      %v710 = vpop.f32.mrf.mxu0
      %v711 = vadd.f32 %v495, %v710
      %v712 = vpop.f32.mrf.mxu0
      %713 = vmatprep.mubr.f32.mxu0 0.0
      %714 = vmatmul.mubr.f32.gmra.mxu0 %v532
      %v715 = vpop.f32.mrf.mxu0
      %v716 = vadd.f32 %v495, %v715
      %v717 = vpop.f32.mrf.mxu0
      %718 = vmatprep.mubr.f32.mxu0 0.0
      %719 = vmatmul.mubr.f32.gmra.mxu0 %v535
      %v720 = vpop.f32.mrf.mxu0
      %v721 = vadd.f32 %v495, %v720
      %v722 = vpop.f32.mrf.mxu0
      %723 = vmatprep.mubr.f32.mxu0 0.0
      %724 = vmatmul.mubr.f32.gmra.mxu0 %v538
      %v725 = vpop.f32.mrf.mxu0
      %v726 = vadd.f32 %v495, %v725
      %v727 = vpop.f32.mrf.mxu0
      %728 = vmatprep.mubr.f32.mxu0 0.0
      %729 = vmatmul.mubr.f32.gmra.mxu0 %v541
      %v730 = vpop.f32.mrf.mxu0
      %v731 = vadd.f32 %v495, %v730
      %v732 = vpop.f32.mrf.mxu0
      %733 = vmatprep.mubr.f32.mxu0 0.0
      %734 = vmatmul.mubr.f32.gmra.mxu0 %v544
      %v735 = vpop.f32.mrf.mxu0
      %v736 = vadd.f32 %v495, %v735
      %v737 = vpop.f32.mrf.mxu0
      %738 = vmatprep.mubr.f32.mxu0 0.0
      %739 = vmatmul.mubr.f32.gmra.mxu0 %v547
      %v740 = vpop.f32.mrf.mxu0
      %v741 = vadd.f32 %v495, %v740
      %v742 = vpop.f32.mrf.mxu0
      %743 = vmatprep.mubr.f32.mxu0 0.0
      %744 = vmatmul.mubr.f32.gmra.mxu0 %v550
      %v745 = vpop.f32.mrf.mxu0
      %v746 = vadd.f32 %v495, %v745
      %v747 = vpop.f32.mrf.mxu0
      %748 = vmatprep.mubr.f32.mxu0 0.0
      %749 = vmatmul.mubr.f32.gmra.mxu0 %v553
      %v750 = vpop.f32.mrf.mxu0
      %v751 = vadd.f32 %v495, %v750
      %v752 = vpop.f32.mrf.mxu0
      %753 = vmatprep.mubr.f32.mxu0 0.0
      %754 = vmatmul.mubr.f32.gmra.mxu0 %v556
      %v755 = vpop.f32.mrf.mxu0
      %v756 = vadd.f32 %v495, %v755
      %v757 = vpop.f32.mrf.mxu0
      %758 = vmatprep.mubr.f32.mxu0 0.0
      %759 = vmatmul.mubr.f32.gmra.mxu0 %v559
      %v760 = vpop.f32.mrf.mxu0
      %v761 = vadd.f32 %v495, %v760
      %v762 = vpop.f32.mrf.mxu0
      %763 = vmatprep.mubr.f32.mxu0 0.0
      %764 = vmatmul.mubr.f32.gmra.mxu0 %v562
      %v765 = vpop.f32.mrf.mxu0
      %v766 = vadd.f32 %v495, %v765
      %v767 = vpop.f32.mrf.mxu0
      %768 = vmatprep.mubr.f32.mxu0 0.0
      %769 = vmatmul.mubr.f32.gmra.mxu0 %v565
      %v770 = vpop.f32.mrf.mxu0
      %v771 = vadd.f32 %v495, %v770
      %v772 = vpop.f32.mrf.mxu0
      %773 = vmatprep.mubr.f32.mxu0 0.0
      %774 = vmatmul.mubr.f32.gmra.mxu0 %v568
      %v775 = vpop.f32.mrf.mxu0
      %v776 = vadd.f32 %v495, %v775
      %v777 = vpop.f32.mrf.mxu0
      %778 = vmatprep.mubr.f32.mxu0 0.0
      %779 = vmatmul.mubr.f32.gmra.mxu0 %v571
      %v780 = vpop.f32.mrf.mxu0
      %v781 = vadd.f32 %v495, %v780
      %v782 = vpop.f32.mrf.mxu0
      %783 = vmatprep.mubr.f32.mxu0 0.0
      %784 = vmatmul.mubr.f32.gmra.mxu0 %v574
      %v785 = vpop.f32.mrf.mxu0
      %v786 = vadd.f32 %v495, %v785
      %v787 = vpop.f32.mrf.mxu0
      %788 = vmatprep.mubr.f32.mxu0 0.0
      %789 = vmatmul.mubr.f32.gmra.mxu0 %v577
      %v790 = vpop.f32.mrf.mxu0
      %v791 = vadd.f32 %v495, %v790
      %v792 = vpop.f32.mrf.mxu0
      %793 = vmatprep.mubr.f32.mxu0 0.0
      %794 = vmatmul.mubr.f32.gmra.mxu0 %v580
      %v795 = vpop.f32.mrf.mxu0
      %v796 = vadd.f32 %v495, %v795
      %v797 = vpop.f32.mrf.mxu0
      %798 = vmatprep.mubr.f32.mxu0 0.0
      %799 = vmatmul.mubr.f32.gmra.mxu0 %v583
      %v800 = vpop.f32.mrf.mxu0
      %v801 = vadd.f32 %v495, %v800
      %v802 = vpop.f32.mrf.mxu0
      %803 = vmatprep.mubr.f32.mxu0 0.0
      %804 = vmatmul.mubr.f32.gmra.mxu0 %v586
      %v805 = vpop.f32.mrf.mxu0
      %v806 = vadd.f32 %v495, %v805
      %v807 = vpop.f32.mrf.mxu0
      %808 = vmatprep.mubr.f32.mxu0 0.0
      %809 = vmatmul.mubr.f32.gmra.mxu0 %v589
      %v810 = vpop.f32.mrf.mxu0
      %v811 = vadd.f32 %v495, %v810
      %v812 = vpop.f32.mrf.mxu0
      %813 = vmatprep.mubr.f32.mxu0 0.0
      %814 = vmatmul.mubr.f32.gmra.mxu0 %v592
      %v815 = vpop.f32.mrf.mxu0
      %v816 = vadd.f32 %v495, %v815
      %v817 = vpop.f32.mrf.mxu0
      %818 = vdwg.mxu0
      %v819 = vtanh.pop %v661
      %v820 = vtanh.pop %v666
      %v821 = vtanh.pop %v671
      %v822 = vtanh.pop %v676
      %v823 = vtanh.pop %v681
      %v824 = vtanh.pop %v686
      %v825 = vtanh.pop %v691
      %v826 = vtanh.pop %v696
      %v827 = vtanh.pop %v701
      %v828 = vtanh.pop %v706
      %v829 = vtanh.pop %v711
      %v830 = vtanh.pop %v716
      %v831 = vtanh.pop %v721
      %v832 = vtanh.pop %v726
      %v833 = vtanh.pop %v731
      %v834 = vtanh.pop %v736
      %v835 = vtanh.pop %v741
      %v836 = vtanh.pop %v746
      %v837 = vtanh.pop %v751
      %v838 = vtanh.pop %v756
      %v839 = vtanh.pop %v761
      %v840 = vtanh.pop %v766
      %v841 = vtanh.pop %v771
      %v842 = vtanh.pop %v776
      %v843 = vtanh.pop %v781
      %v844 = vtanh.pop %v786
      %v845 = vtanh.pop %v791
      %v846 = vtanh.pop %v796
      %v847 = vtanh.pop %v801
      %v848 = vtanh.pop %v806
      %v849 = vtanh.pop %v811
      %v850 = vtanh.pop %v816
      %v851 = vld [vmem:[%s414] sm:$0xff]
      %v852 = vld [vmem:[%s414 + $0x8] sm:$0xff]
      %v853 = vld [vmem:[%s414 + $0x10] sm:$0xff]
      %v854 = vld [vmem:[%s414 + $0x18] sm:$0xff]
      %v855 = vld [vmem:[%s414 + $0x20] sm:$0xff]
      %v856 = vld [vmem:[%s414 + $0x28] sm:$0xff]
      %v857 = vld [vmem:[%s414 + $0x30] sm:$0xff]
      %v858 = vld [vmem:[%s414 + $0x38] sm:$0xff]
      %v859 = vld [vmem:[%s414 + $0x40] sm:$0xff]
      %v860 = vld [vmem:[%s414 + $0x48] sm:$0xff]
      %v861 = vld [vmem:[%s414 + $0x50] sm:$0xff]
      %v862 = vld [vmem:[%s414 + $0x58] sm:$0xff]
      %v863 = vld [vmem:[%s414 + $0x60] sm:$0xff]
      %v864 = vld [vmem:[%s414 + $0x68] sm:$0xff]
      %v865 = vld [vmem:[%s414 + $0x70] sm:$0xff]
      %v866 = vld [vmem:[%s414 + $0x78] sm:$0xff]
      %v867 = vld [vmem:[%s414 + $0x80] sm:$0xff]
      %v868 = vld [vmem:[%s414 + $0x88] sm:$0xff]
      %v869 = vld [vmem:[%s414 + $0x90] sm:$0xff]
      %v870 = vld [vmem:[%s414 + $0x98] sm:$0xff]
      %v871 = vld [vmem:[%s414 + $0xa0] sm:$0xff]
      %v872 = vld [vmem:[%s414 + $0xa8] sm:$0xff]
      %v873 = vld [vmem:[%s414 + $0xb0] sm:$0xff]
      %v874 = vld [vmem:[%s414 + $0xb8] sm:$0xff]
      %v875 = vld [vmem:[%s414 + $0xc0] sm:$0xff]
      %v876 = vld [vmem:[%s414 + $0xc8] sm:$0xff]
      %v877 = vld [vmem:[%s414 + $0xd0] sm:$0xff]
      %v878 = vld [vmem:[%s414 + $0xd8] sm:$0xff]
      %v879 = vld [vmem:[%s414 + $0xe0] sm:$0xff]
      %v880 = vld [vmem:[%s414 + $0xe8] sm:$0xff]
      %v881 = vld [vmem:[%s414 + $0xf0] sm:$0xff]
      %v882 = vld [vmem:[%s414 + $0xf8] sm:$0xff]
      %v884 = vsel %vm497, %v851, 0
      %v887 = vsel %vm497, %v852, 0
      %v890 = vsel %vm497, %v853, 0
      %v893 = vsel %vm497, %v854, 0
      %v896 = vsel %vm497, %v855, 0
      %v899 = vsel %vm497, %v856, 0
      %v902 = vsel %vm497, %v857, 0
      %v905 = vsel %vm497, %v858, 0
      %v908 = vsel %vm497, %v859, 0
      %v911 = vsel %vm497, %v860, 0
      %v914 = vsel %vm497, %v861, 0
      %v917 = vsel %vm497, %v862, 0
      %v920 = vsel %vm497, %v863, 0
      %v923 = vsel %vm497, %v864, 0
      %v926 = vsel %vm497, %v865, 0
      %v929 = vsel %vm497, %v866, 0
      %v932 = vsel %vm497, %v867, 0
      %v935 = vsel %vm497, %v868, 0
      %v938 = vsel %vm497, %v869, 0
      %v941 = vsel %vm497, %v870, 0
      %v944 = vsel %vm497, %v871, 0
      %v947 = vsel %vm497, %v872, 0
      %v950 = vsel %vm497, %v873, 0
      %v953 = vsel %vm497, %v874, 0
      %v956 = vsel %vm497, %v875, 0
      %v959 = vsel %vm497, %v876, 0
      %v962 = vsel %vm497, %v877, 0
      %v965 = vsel %vm497, %v878, 0
      %v968 = vsel %vm497, %v879, 0
      %v971 = vsel %vm497, %v880, 0
      %v974 = vsel %vm497, %v881, 0
      %v977 = vsel %vm497, %v882, 0
      %979 = vmatprep.subr.mxu0 0.0
      %980 = vmatpush1.msra.mxu0 0.0
      %981 = vmatprep.subr.mxu0 0.0
      %982 = vmatpush1.msra.mxu0 0.0
      %983 = vmatprep.subr.mxu0 0.0
      %984 = vmatpush1.msra.mxu0 0.0
      %985 = vmatprep.subr.mxu0 0.0
      %986 = vmatpush1.msra.mxu0 0.0
      %987 = vmatprep.subr.mxu0 0.0
      %988 = vmatpush1.msra.mxu0 0.0
      %989 = vmatprep.subr.mxu0 0.0
      %990 = vmatpush1.msra.mxu0 0.0
      %991 = vmatprep.subr.mxu0 0.0
      %992 = vmatpush1.msra.mxu0 0.0
      %993 = vmatprep.subr.mxu0 0.0
      %994 = vmatpush1.msra.mxu0 0.0
      %995 = vmatprep.subr.mxu0 0.0
      %996 = vmatpush1.msra.mxu0 0.0
      %997 = vmatprep.subr.mxu0 0.0
      %998 = vmatpush1.msra.mxu0 0.0
      %999 = vmatprep.subr.mxu0 0.0
      %1000 = vmatpush1.msra.mxu0 0.0
      %1001 = vmatprep.subr.mxu0 0.0
      %1002 = vmatpush1.msra.mxu0 0.0
      %1003 = vmatprep.subr.mxu0 0.0
      %1004 = vmatpush1.msra.mxu0 0.0
      %1005 = vmatprep.subr.mxu0 0.0
      %1006 = vmatpush1.msra.mxu0 0.0
      %1007 = vmatprep.subr.mxu0 0.0
      %1008 = vmatpush1.msra.mxu0 0.0
      %1009 = vmatprep.subr.mxu0 0.0
      %1010 = vmatpush1.msra.mxu0 %v440
      %1011 = vmatprep.subr.mxu0 0.0
      %1012 = vmatpush2.msra.mxu0 0.0
      %1013 = vmatprep.subr.mxu0 0.0
      %1014 = vmatpush2.msra.mxu0 0.0
      %1015 = vmatprep.subr.mxu0 0.0
      %1016 = vmatpush2.msra.mxu0 0.0
      %1017 = vmatprep.subr.mxu0 0.0
      %1018 = vmatpush2.msra.mxu0 0.0
      %1019 = vmatprep.subr.mxu0 0.0
      %1020 = vmatpush2.msra.mxu0 0.0
      %1021 = vmatprep.subr.mxu0 0.0
      %1022 = vmatpush2.msra.mxu0 0.0
      %1023 = vmatprep.subr.mxu0 0.0
      %1024 = vmatpush2.msra.mxu0 0.0
      %1025 = vmatprep.subr.mxu0 0.0
      %1026 = vmatpush2.msra.mxu0 0.0
      %1027 = vmatprep.subr.mxu0 0.0
      %1028 = vmatpush2.msra.mxu0 0.0
      %1029 = vmatprep.subr.mxu0 0.0
      %1030 = vmatpush2.msra.mxu0 0.0
      %1031 = vmatprep.subr.mxu0 0.0
      %1032 = vmatpush2.msra.mxu0 0.0
      %1033 = vmatprep.subr.mxu0 0.0
      %1034 = vmatpush2.msra.mxu0 0.0
      %1035 = vmatprep.subr.mxu0 0.0
      %1036 = vmatpush2.msra.mxu0 0.0
      %1037 = vmatprep.subr.mxu0 0.0
      %1038 = vmatpush2.msra.mxu0 0.0
      %1039 = vmatprep.subr.mxu0 0.0
      %1040 = vmatpush2.msra.mxu0 0.0
      %1041 = vmatprep.subr.mxu0 0.0
      %1042 = vmatpush2.msra.mxu0 0.0
      %1043 = vmatprep.mubr.f32.mxu0 0.0
      %1044 = vmatmul.mubr.f32.gmra.mxu0 %v884
      %v1045 = vpop.f32.mrf.mxu0
      %v1046 = vadd.f32 %v495, %v1045
      %v1047 = vpop.f32.mrf.mxu0
      %1048 = vmatprep.mubr.f32.mxu0 0.0
      %1049 = vmatmul.mubr.f32.gmra.mxu0 %v887
      %v1050 = vpop.f32.mrf.mxu0
      %v1051 = vadd.f32 %v495, %v1050
      %v1052 = vpop.f32.mrf.mxu0
      %1053 = vmatprep.mubr.f32.mxu0 0.0
      %1054 = vmatmul.mubr.f32.gmra.mxu0 %v890
      %v1055 = vpop.f32.mrf.mxu0
      %v1056 = vadd.f32 %v495, %v1055
      %v1057 = vpop.f32.mrf.mxu0
      %1058 = vmatprep.mubr.f32.mxu0 0.0
      %1059 = vmatmul.mubr.f32.gmra.mxu0 %v893
      %v1060 = vpop.f32.mrf.mxu0
      %v1061 = vadd.f32 %v495, %v1060
      %v1062 = vpop.f32.mrf.mxu0
      %1063 = vmatprep.mubr.f32.mxu0 0.0
      %1064 = vmatmul.mubr.f32.gmra.mxu0 %v896
      %v1065 = vpop.f32.mrf.mxu0
      %v1066 = vadd.f32 %v495, %v1065
      %v1067 = vpop.f32.mrf.mxu0
      %1068 = vmatprep.mubr.f32.mxu0 0.0
      %1069 = vmatmul.mubr.f32.gmra.mxu0 %v899
      %v1070 = vpop.f32.mrf.mxu0
      %v1071 = vadd.f32 %v495, %v1070
      %v1072 = vpop.f32.mrf.mxu0
      %1073 = vmatprep.mubr.f32.mxu0 0.0
      %1074 = vmatmul.mubr.f32.gmra.mxu0 %v902
      %v1075 = vpop.f32.mrf.mxu0
      %v1076 = vadd.f32 %v495, %v1075
      %v1077 = vpop.f32.mrf.mxu0
      %1078 = vmatprep.mubr.f32.mxu0 0.0
      %1079 = vmatmul.mubr.f32.gmra.mxu0 %v905
      %v1080 = vpop.f32.mrf.mxu0
      %v1081 = vadd.f32 %v495, %v1080
      %v1082 = vpop.f32.mrf.mxu0
      %1083 = vmatprep.mubr.f32.mxu0 0.0
      %1084 = vmatmul.mubr.f32.gmra.mxu0 %v908
      %v1085 = vpop.f32.mrf.mxu0
      %v1086 = vadd.f32 %v495, %v1085
      %v1087 = vpop.f32.mrf.mxu0
      %1088 = vmatprep.mubr.f32.mxu0 0.0
      %1089 = vmatmul.mubr.f32.gmra.mxu0 %v911
      %v1090 = vpop.f32.mrf.mxu0
      %v1091 = vadd.f32 %v495, %v1090
      %v1092 = vpop.f32.mrf.mxu0
      %1093 = vmatprep.mubr.f32.mxu0 0.0
      %1094 = vmatmul.mubr.f32.gmra.mxu0 %v914
      %v1095 = vpop.f32.mrf.mxu0
      %v1096 = vadd.f32 %v495, %v1095
      %v1097 = vpop.f32.mrf.mxu0
      %1098 = vmatprep.mubr.f32.mxu0 0.0
      %1099 = vmatmul.mubr.f32.gmra.mxu0 %v917
      %v1100 = vpop.f32.mrf.mxu0
      %v1101 = vadd.f32 %v495, %v1100
      %v1102 = vpop.f32.mrf.mxu0
      %1103 = vmatprep.mubr.f32.mxu0 0.0
      %1104 = vmatmul.mubr.f32.gmra.mxu0 %v920
      %v1105 = vpop.f32.mrf.mxu0
      %v1106 = vadd.f32 %v495, %v1105
      %v1107 = vpop.f32.mrf.mxu0
      %1108 = vmatprep.mubr.f32.mxu0 0.0
      %1109 = vmatmul.mubr.f32.gmra.mxu0 %v923
      %v1110 = vpop.f32.mrf.mxu0
      %v1111 = vadd.f32 %v495, %v1110
      %v1112 = vpop.f32.mrf.mxu0
      %1113 = vmatprep.mubr.f32.mxu0 0.0
      %1114 = vmatmul.mubr.f32.gmra.mxu0 %v926
      %v1115 = vpop.f32.mrf.mxu0
      %v1116 = vadd.f32 %v495, %v1115
      %v1117 = vpop.f32.mrf.mxu0
      %1118 = vmatprep.mubr.f32.mxu0 0.0
      %1119 = vmatmul.mubr.f32.gmra.mxu0 %v929
      %v1120 = vpop.f32.mrf.mxu0
      %v1121 = vadd.f32 %v495, %v1120
      %v1122 = vpop.f32.mrf.mxu0
      %1123 = vmatprep.mubr.f32.mxu0 0.0
      %1124 = vmatmul.mubr.f32.gmra.mxu0 %v932
      %v1125 = vpop.f32.mrf.mxu0
      %v1126 = vadd.f32 %v495, %v1125
      %v1127 = vpop.f32.mrf.mxu0
      %1128 = vmatprep.mubr.f32.mxu0 0.0
      %1129 = vmatmul.mubr.f32.gmra.mxu0 %v935
      %v1130 = vpop.f32.mrf.mxu0
      %v1131 = vadd.f32 %v495, %v1130
      %v1132 = vpop.f32.mrf.mxu0
      %1133 = vmatprep.mubr.f32.mxu0 0.0
      %1134 = vmatmul.mubr.f32.gmra.mxu0 %v938
      %v1135 = vpop.f32.mrf.mxu0
      %v1136 = vadd.f32 %v495, %v1135
      %v1137 = vpop.f32.mrf.mxu0
      %1138 = vmatprep.mubr.f32.mxu0 0.0
      %1139 = vmatmul.mubr.f32.gmra.mxu0 %v941
      %v1140 = vpop.f32.mrf.mxu0
      %v1141 = vadd.f32 %v495, %v1140
      %v1142 = vpop.f32.mrf.mxu0
      %1143 = vmatprep.mubr.f32.mxu0 0.0
      %1144 = vmatmul.mubr.f32.gmra.mxu0 %v944
      %v1145 = vpop.f32.mrf.mxu0
      %v1146 = vadd.f32 %v495, %v1145
      %v1147 = vpop.f32.mrf.mxu0
      %1148 = vmatprep.mubr.f32.mxu0 0.0
      %1149 = vmatmul.mubr.f32.gmra.mxu0 %v947
      %v1150 = vpop.f32.mrf.mxu0
      %v1151 = vadd.f32 %v495, %v1150
      %v1152 = vpop.f32.mrf.mxu0
      %1153 = vmatprep.mubr.f32.mxu0 0.0
      %1154 = vmatmul.mubr.f32.gmra.mxu0 %v950
      %v1155 = vpop.f32.mrf.mxu0
      %v1156 = vadd.f32 %v495, %v1155
      %v1157 = vpop.f32.mrf.mxu0
      %1158 = vmatprep.mubr.f32.mxu0 0.0
      %1159 = vmatmul.mubr.f32.gmra.mxu0 %v953
      %v1160 = vpop.f32.mrf.mxu0
      %v1161 = vadd.f32 %v495, %v1160
      %v1162 = vpop.f32.mrf.mxu0
      %1163 = vmatprep.mubr.f32.mxu0 0.0
      %1164 = vmatmul.mubr.f32.gmra.mxu0 %v956
      %v1165 = vpop.f32.mrf.mxu0
      %v1166 = vadd.f32 %v495, %v1165
      %v1167 = vpop.f32.mrf.mxu0
      %1168 = vmatprep.mubr.f32.mxu0 0.0
      %1169 = vmatmul.mubr.f32.gmra.mxu0 %v959
      %v1170 = vpop.f32.mrf.mxu0
      %v1171 = vadd.f32 %v495, %v1170
      %v1172 = vpop.f32.mrf.mxu0
      %1173 = vmatprep.mubr.f32.mxu0 0.0
      %1174 = vmatmul.mubr.f32.gmra.mxu0 %v962
      %v1175 = vpop.f32.mrf.mxu0
      %v1176 = vadd.f32 %v495, %v1175
      %v1177 = vpop.f32.mrf.mxu0
      %1178 = vmatprep.mubr.f32.mxu0 0.0
      %1179 = vmatmul.mubr.f32.gmra.mxu0 %v965
      %v1180 = vpop.f32.mrf.mxu0
      %v1181 = vadd.f32 %v495, %v1180
      %v1182 = vpop.f32.mrf.mxu0
      %1183 = vmatprep.mubr.f32.mxu0 0.0
      %1184 = vmatmul.mubr.f32.gmra.mxu0 %v968
      %v1185 = vpop.f32.mrf.mxu0
      %v1186 = vadd.f32 %v495, %v1185
      %v1187 = vpop.f32.mrf.mxu0
      %1188 = vmatprep.mubr.f32.mxu0 0.0
      %1189 = vmatmul.mubr.f32.gmra.mxu0 %v971
      %v1190 = vpop.f32.mrf.mxu0
      %v1191 = vadd.f32 %v495, %v1190
      %v1192 = vpop.f32.mrf.mxu0
      %1193 = vmatprep.mubr.f32.mxu0 0.0
      %1194 = vmatmul.mubr.f32.gmra.mxu0 %v974
      %v1195 = vpop.f32.mrf.mxu0
      %v1196 = vadd.f32 %v495, %v1195
      %v1197 = vpop.f32.mrf.mxu0
      %1198 = vmatprep.mubr.f32.mxu0 0.0
      %1199 = vmatmul.mubr.f32.gmra.mxu0 %v977
      %v1200 = vpop.f32.mrf.mxu0
      %v1201 = vadd.f32 %v495, %v1200
      %v1202 = vpop.f32.mrf.mxu0
      %1203 = vdwg.mxu0
      %v1204 = vtanh.pop %v1046
      %v1205 = vtanh.pop %v1051
      %v1206 = vtanh.pop %v1056
      %v1207 = vtanh.pop %v1061
      %v1208 = vtanh.pop %v1066
      %v1209 = vtanh.pop %v1071
      %v1210 = vtanh.pop %v1076
      %v1211 = vtanh.pop %v1081
      %v1212 = vtanh.pop %v1086
      %v1213 = vtanh.pop %v1091
      %v1214 = vtanh.pop %v1096
      %v1215 = vtanh.pop %v1101
      %v1216 = vtanh.pop %v1106
      %v1217 = vtanh.pop %v1111
      %v1218 = vtanh.pop %v1116
      %v1219 = vtanh.pop %v1121
      %v1220 = vtanh.pop %v1126
      %v1221 = vtanh.pop %v1131
      %v1222 = vtanh.pop %v1136
      %v1223 = vtanh.pop %v1141
      %v1224 = vtanh.pop %v1146
      %v1225 = vtanh.pop %v1151
      %v1226 = vtanh.pop %v1156
      %v1227 = vtanh.pop %v1161
      %v1228 = vtanh.pop %v1166
      %v1229 = vtanh.pop %v1171
      %v1230 = vtanh.pop %v1176
      %v1231 = vtanh.pop %v1181
      %v1232 = vtanh.pop %v1186
      %v1233 = vtanh.pop %v1191
      %v1234 = vtanh.pop %v1196
      %v1235 = vtanh.pop %v1201
      %v1236 = vld [vmem:[%s420] sm:$0xff]
      %v1237 = vld [vmem:[%s420 + $0x8] sm:$0xff]
      %v1238 = vld [vmem:[%s420 + $0x10] sm:$0xff]
      %v1239 = vld [vmem:[%s420 + $0x18] sm:$0xff]
      %v1240 = vld [vmem:[%s420 + $0x20] sm:$0xff]
      %v1241 = vld [vmem:[%s420 + $0x28] sm:$0xff]
      %v1242 = vld [vmem:[%s420 + $0x30] sm:$0xff]
      %v1243 = vld [vmem:[%s420 + $0x38] sm:$0xff]
      %v1244 = vld [vmem:[%s420 + $0x40] sm:$0xff]
      %v1245 = vld [vmem:[%s420 + $0x48] sm:$0xff]
      %v1246 = vld [vmem:[%s420 + $0x50] sm:$0xff]
      %v1247 = vld [vmem:[%s420 + $0x58] sm:$0xff]
      %v1248 = vld [vmem:[%s420 + $0x60] sm:$0xff]
      %v1249 = vld [vmem:[%s420 + $0x68] sm:$0xff]
      %v1250 = vld [vmem:[%s420 + $0x70] sm:$0xff]
      %v1251 = vld [vmem:[%s420 + $0x78] sm:$0xff]
      %v1252 = vld [vmem:[%s420 + $0x80] sm:$0xff]
      %v1253 = vld [vmem:[%s420 + $0x88] sm:$0xff]
      %v1254 = vld [vmem:[%s420 + $0x90] sm:$0xff]
      %v1255 = vld [vmem:[%s420 + $0x98] sm:$0xff]
      %v1256 = vld [vmem:[%s420 + $0xa0] sm:$0xff]
      %v1257 = vld [vmem:[%s420 + $0xa8] sm:$0xff]
      %v1258 = vld [vmem:[%s420 + $0xb0] sm:$0xff]
      %v1259 = vld [vmem:[%s420 + $0xb8] sm:$0xff]
      %v1260 = vld [vmem:[%s420 + $0xc0] sm:$0xff]
      %v1261 = vld [vmem:[%s420 + $0xc8] sm:$0xff]
      %v1262 = vld [vmem:[%s420 + $0xd0] sm:$0xff]
      %v1263 = vld [vmem:[%s420 + $0xd8] sm:$0xff]
      %v1264 = vld [vmem:[%s420 + $0xe0] sm:$0xff]
      %v1265 = vld [vmem:[%s420 + $0xe8] sm:$0xff]
      %v1266 = vld [vmem:[%s420 + $0xf0] sm:$0xff]
      %v1267 = vld [vmem:[%s420 + $0xf8] sm:$0xff]
      %v1269 = vsel %vm497, %v1236, 0
      %v1272 = vsel %vm497, %v1237, 0
      %v1275 = vsel %vm497, %v1238, 0
      %v1278 = vsel %vm497, %v1239, 0
      %v1281 = vsel %vm497, %v1240, 0
      %v1284 = vsel %vm497, %v1241, 0
      %v1287 = vsel %vm497, %v1242, 0
      %v1290 = vsel %vm497, %v1243, 0
      %v1293 = vsel %vm497, %v1244, 0
      %v1296 = vsel %vm497, %v1245, 0
      %v1299 = vsel %vm497, %v1246, 0
      %v1302 = vsel %vm497, %v1247, 0
      %v1305 = vsel %vm497, %v1248, 0
      %v1308 = vsel %vm497, %v1249, 0
      %v1311 = vsel %vm497, %v1250, 0
      %v1314 = vsel %vm497, %v1251, 0
      %v1317 = vsel %vm497, %v1252, 0
      %v1320 = vsel %vm497, %v1253, 0
      %v1323 = vsel %vm497, %v1254, 0
      %v1326 = vsel %vm497, %v1255, 0
      %v1329 = vsel %vm497, %v1256, 0
      %v1332 = vsel %vm497, %v1257, 0
      %v1335 = vsel %vm497, %v1258, 0
      %v1338 = vsel %vm497, %v1259, 0
      %v1341 = vsel %vm497, %v1260, 0
      %v1344 = vsel %vm497, %v1261, 0
      %v1347 = vsel %vm497, %v1262, 0
      %v1350 = vsel %vm497, %v1263, 0
      %v1353 = vsel %vm497, %v1264, 0
      %v1356 = vsel %vm497, %v1265, 0
      %v1359 = vsel %vm497, %v1266, 0
      %v1362 = vsel %vm497, %v1267, 0
      %1364 = vmatprep.subr.mxu0 0.0
      %1365 = vmatpush1.msra.mxu0 0.0
      %1366 = vmatprep.subr.mxu0 0.0
      %1367 = vmatpush1.msra.mxu0 0.0
      %1368 = vmatprep.subr.mxu0 0.0
      %1369 = vmatpush1.msra.mxu0 0.0
      %1370 = vmatprep.subr.mxu0 0.0
      %1371 = vmatpush1.msra.mxu0 0.0
      %1372 = vmatprep.subr.mxu0 0.0
      %1373 = vmatpush1.msra.mxu0 0.0
      %1374 = vmatprep.subr.mxu0 0.0
      %1375 = vmatpush1.msra.mxu0 0.0
      %1376 = vmatprep.subr.mxu0 0.0
      %1377 = vmatpush1.msra.mxu0 0.0
      %1378 = vmatprep.subr.mxu0 0.0
      %1379 = vmatpush1.msra.mxu0 0.0
      %1380 = vmatprep.subr.mxu0 0.0
      %1381 = vmatpush1.msra.mxu0 0.0
      %1382 = vmatprep.subr.mxu0 0.0
      %1383 = vmatpush1.msra.mxu0 0.0
      %1384 = vmatprep.subr.mxu0 0.0
      %1385 = vmatpush1.msra.mxu0 0.0
      %1386 = vmatprep.subr.mxu0 0.0
      %1387 = vmatpush1.msra.mxu0 0.0
      %1388 = vmatprep.subr.mxu0 0.0
      %1389 = vmatpush1.msra.mxu0 0.0
      %1390 = vmatprep.subr.mxu0 0.0
      %1391 = vmatpush1.msra.mxu0 0.0
      %1392 = vmatprep.subr.mxu0 0.0
      %1393 = vmatpush1.msra.mxu0 0.0
      %1394 = vmatprep.subr.mxu0 0.0
      %1395 = vmatpush1.msra.mxu0 %v440
      %1396 = vmatprep.subr.mxu0 0.0
      %1397 = vmatpush2.msra.mxu0 0.0
      %1398 = vmatprep.subr.mxu0 0.0
      %1399 = vmatpush2.msra.mxu0 0.0
      %1400 = vmatprep.subr.mxu0 0.0
      %1401 = vmatpush2.msra.mxu0 0.0
      %1402 = vmatprep.subr.mxu0 0.0
      %1403 = vmatpush2.msra.mxu0 0.0
      %1404 = vmatprep.subr.mxu0 0.0
      %1405 = vmatpush2.msra.mxu0 0.0
      %1406 = vmatprep.subr.mxu0 0.0
      %1407 = vmatpush2.msra.mxu0 0.0
      %1408 = vmatprep.subr.mxu0 0.0
      %1409 = vmatpush2.msra.mxu0 0.0
      %1410 = vmatprep.subr.mxu0 0.0
      %1411 = vmatpush2.msra.mxu0 0.0
      %1412 = vmatprep.subr.mxu0 0.0
      %1413 = vmatpush2.msra.mxu0 0.0
      %1414 = vmatprep.subr.mxu0 0.0
      %1415 = vmatpush2.msra.mxu0 0.0
      %1416 = vmatprep.subr.mxu0 0.0
      %1417 = vmatpush2.msra.mxu0 0.0
      %1418 = vmatprep.subr.mxu0 0.0
      %1419 = vmatpush2.msra.mxu0 0.0
      %1420 = vmatprep.subr.mxu0 0.0
      %1421 = vmatpush2.msra.mxu0 0.0
      %1422 = vmatprep.subr.mxu0 0.0
      %1423 = vmatpush2.msra.mxu0 0.0
      %1424 = vmatprep.subr.mxu0 0.0
      %1425 = vmatpush2.msra.mxu0 0.0
      %1426 = vmatprep.subr.mxu0 0.0
      %1427 = vmatpush2.msra.mxu0 0.0
      %1428 = vmatprep.mubr.f32.mxu0 0.0
      %1429 = vmatmul.mubr.f32.gmra.mxu0 %v1269
      %v1430 = vpop.f32.mrf.mxu0
      %v1431 = vadd.f32 %v495, %v1430
      %v1432 = vpop.f32.mrf.mxu0
      %1433 = vmatprep.mubr.f32.mxu0 0.0
      %1434 = vmatmul.mubr.f32.gmra.mxu0 %v1272
      %v1435 = vpop.f32.mrf.mxu0
      %v1436 = vadd.f32 %v495, %v1435
      %v1437 = vpop.f32.mrf.mxu0
      %1438 = vmatprep.mubr.f32.mxu0 0.0
      %1439 = vmatmul.mubr.f32.gmra.mxu0 %v1275
      %v1440 = vpop.f32.mrf.mxu0
      %v1441 = vadd.f32 %v495, %v1440
      %v1442 = vpop.f32.mrf.mxu0
      %1443 = vmatprep.mubr.f32.mxu0 0.0
      %1444 = vmatmul.mubr.f32.gmra.mxu0 %v1278
      %v1445 = vpop.f32.mrf.mxu0
      %v1446 = vadd.f32 %v495, %v1445
      %v1447 = vpop.f32.mrf.mxu0
      %1448 = vmatprep.mubr.f32.mxu0 0.0
      %1449 = vmatmul.mubr.f32.gmra.mxu0 %v1281
      %v1450 = vpop.f32.mrf.mxu0
      %v1451 = vadd.f32 %v495, %v1450
      %v1452 = vpop.f32.mrf.mxu0
      %1453 = vmatprep.mubr.f32.mxu0 0.0
      %1454 = vmatmul.mubr.f32.gmra.mxu0 %v1284
      %v1455 = vpop.f32.mrf.mxu0
      %v1456 = vadd.f32 %v495, %v1455
      %v1457 = vpop.f32.mrf.mxu0
      %1458 = vmatprep.mubr.f32.mxu0 0.0
      %1459 = vmatmul.mubr.f32.gmra.mxu0 %v1287
      %v1460 = vpop.f32.mrf.mxu0
      %v1461 = vadd.f32 %v495, %v1460
      %v1462 = vpop.f32.mrf.mxu0
      %1463 = vmatprep.mubr.f32.mxu0 0.0
      %1464 = vmatmul.mubr.f32.gmra.mxu0 %v1290
      %v1465 = vpop.f32.mrf.mxu0
      %v1466 = vadd.f32 %v495, %v1465
      %v1467 = vpop.f32.mrf.mxu0
      %1468 = vmatprep.mubr.f32.mxu0 0.0
      %1469 = vmatmul.mubr.f32.gmra.mxu0 %v1293
      %v1470 = vpop.f32.mrf.mxu0
      %v1471 = vadd.f32 %v495, %v1470
      %v1472 = vpop.f32.mrf.mxu0
      %1473 = vmatprep.mubr.f32.mxu0 0.0
      %1474 = vmatmul.mubr.f32.gmra.mxu0 %v1296
      %v1475 = vpop.f32.mrf.mxu0
      %v1476 = vadd.f32 %v495, %v1475
      %v1477 = vpop.f32.mrf.mxu0
      %1478 = vmatprep.mubr.f32.mxu0 0.0
      %1479 = vmatmul.mubr.f32.gmra.mxu0 %v1299
      %v1480 = vpop.f32.mrf.mxu0
      %v1481 = vadd.f32 %v495, %v1480
      %v1482 = vpop.f32.mrf.mxu0
      %1483 = vmatprep.mubr.f32.mxu0 0.0
      %1484 = vmatmul.mubr.f32.gmra.mxu0 %v1302
      %v1485 = vpop.f32.mrf.mxu0
      %v1486 = vadd.f32 %v495, %v1485
      %v1487 = vpop.f32.mrf.mxu0
      %1488 = vmatprep.mubr.f32.mxu0 0.0
      %1489 = vmatmul.mubr.f32.gmra.mxu0 %v1305
      %v1490 = vpop.f32.mrf.mxu0
      %v1491 = vadd.f32 %v495, %v1490
      %v1492 = vpop.f32.mrf.mxu0
      %1493 = vmatprep.mubr.f32.mxu0 0.0
      %1494 = vmatmul.mubr.f32.gmra.mxu0 %v1308
      %v1495 = vpop.f32.mrf.mxu0
      %v1496 = vadd.f32 %v495, %v1495
      %v1497 = vpop.f32.mrf.mxu0
      %1498 = vmatprep.mubr.f32.mxu0 0.0
      %1499 = vmatmul.mubr.f32.gmra.mxu0 %v1311
      %v1500 = vpop.f32.mrf.mxu0
      %v1501 = vadd.f32 %v495, %v1500
      %v1502 = vpop.f32.mrf.mxu0
      %1503 = vmatprep.mubr.f32.mxu0 0.0
      %1504 = vmatmul.mubr.f32.gmra.mxu0 %v1314
      %v1505 = vpop.f32.mrf.mxu0
      %v1506 = vadd.f32 %v495, %v1505
      %v1507 = vpop.f32.mrf.mxu0
      %1508 = vmatprep.mubr.f32.mxu0 0.0
      %1509 = vmatmul.mubr.f32.gmra.mxu0 %v1317
      %v1510 = vpop.f32.mrf.mxu0
      %v1511 = vadd.f32 %v495, %v1510
      %v1512 = vpop.f32.mrf.mxu0
      %1513 = vmatprep.mubr.f32.mxu0 0.0
      %1514 = vmatmul.mubr.f32.gmra.mxu0 %v1320
      %v1515 = vpop.f32.mrf.mxu0
      %v1516 = vadd.f32 %v495, %v1515
      %v1517 = vpop.f32.mrf.mxu0
      %1518 = vmatprep.mubr.f32.mxu0 0.0
      %1519 = vmatmul.mubr.f32.gmra.mxu0 %v1323
      %v1520 = vpop.f32.mrf.mxu0
      %v1521 = vadd.f32 %v495, %v1520
      %v1522 = vpop.f32.mrf.mxu0
      %1523 = vmatprep.mubr.f32.mxu0 0.0
      %1524 = vmatmul.mubr.f32.gmra.mxu0 %v1326
      %v1525 = vpop.f32.mrf.mxu0
      %v1526 = vadd.f32 %v495, %v1525
      %v1527 = vpop.f32.mrf.mxu0
      %1528 = vmatprep.mubr.f32.mxu0 0.0
      %1529 = vmatmul.mubr.f32.gmra.mxu0 %v1329
      %v1530 = vpop.f32.mrf.mxu0
      %v1531 = vadd.f32 %v495, %v1530
      %v1532 = vpop.f32.mrf.mxu0
      %1533 = vmatprep.mubr.f32.mxu0 0.0
      %1534 = vmatmul.mubr.f32.gmra.mxu0 %v1332
      %v1535 = vpop.f32.mrf.mxu0
      %v1536 = vadd.f32 %v495, %v1535
      %v1537 = vpop.f32.mrf.mxu0
      %1538 = vmatprep.mubr.f32.mxu0 0.0
      %1539 = vmatmul.mubr.f32.gmra.mxu0 %v1335
      %v1540 = vpop.f32.mrf.mxu0
      %v1541 = vadd.f32 %v495, %v1540
      %v1542 = vpop.f32.mrf.mxu0
      %1543 = vmatprep.mubr.f32.mxu0 0.0
      %1544 = vmatmul.mubr.f32.gmra.mxu0 %v1338
      %v1545 = vpop.f32.mrf.mxu0
      %v1546 = vadd.f32 %v495, %v1545
      %v1547 = vpop.f32.mrf.mxu0
      %1548 = vmatprep.mubr.f32.mxu0 0.0
      %1549 = vmatmul.mubr.f32.gmra.mxu0 %v1341
      %v1550 = vpop.f32.mrf.mxu0
      %v1551 = vadd.f32 %v495, %v1550
      %v1552 = vpop.f32.mrf.mxu0
      %1553 = vmatprep.mubr.f32.mxu0 0.0
      %1554 = vmatmul.mubr.f32.gmra.mxu0 %v1344
      %v1555 = vpop.f32.mrf.mxu0
      %v1556 = vadd.f32 %v495, %v1555
      %v1557 = vpop.f32.mrf.mxu0
      %1558 = vmatprep.mubr.f32.mxu0 0.0
      %1559 = vmatmul.mubr.f32.gmra.mxu0 %v1347
      %v1560 = vpop.f32.mrf.mxu0
      %v1561 = vadd.f32 %v495, %v1560
      %v1562 = vpop.f32.mrf.mxu0
      %1563 = vmatprep.mubr.f32.mxu0 0.0
      %1564 = vmatmul.mubr.f32.gmra.mxu0 %v1350
      %v1565 = vpop.f32.mrf.mxu0
      %v1566 = vadd.f32 %v495, %v1565
      %v1567 = vpop.f32.mrf.mxu0
      %1568 = vmatprep.mubr.f32.mxu0 0.0
      %1569 = vmatmul.mubr.f32.gmra.mxu0 %v1353
      %v1570 = vpop.f32.mrf.mxu0
      %v1571 = vadd.f32 %v495, %v1570
      %v1572 = vpop.f32.mrf.mxu0
      %1573 = vmatprep.mubr.f32.mxu0 0.0
      %1574 = vmatmul.mubr.f32.gmra.mxu0 %v1356
      %v1575 = vpop.f32.mrf.mxu0
      %v1576 = vadd.f32 %v495, %v1575
      %v1577 = vpop.f32.mrf.mxu0
      %1578 = vmatprep.mubr.f32.mxu0 0.0
      %1579 = vmatmul.mubr.f32.gmra.mxu0 %v1359
      %v1580 = vpop.f32.mrf.mxu0
      %v1581 = vadd.f32 %v495, %v1580
      %v1582 = vpop.f32.mrf.mxu0
      %1583 = vmatprep.mubr.f32.mxu0 0.0
      %1584 = vmatmul.mubr.f32.gmra.mxu0 %v1362
      %v1585 = vpop.f32.mrf.mxu0
      %v1586 = vadd.f32 %v495, %v1585
      %v1587 = vpop.f32.mrf.mxu0
      %1588 = vdwg.mxu0
      %v1589 = vtanh.pop %v1431
      %v1590 = vtanh.pop %v1436
      %v1591 = vtanh.pop %v1441
      %v1592 = vtanh.pop %v1446
      %v1593 = vtanh.pop %v1451
      %v1594 = vtanh.pop %v1456
      %v1595 = vtanh.pop %v1461
      %v1596 = vtanh.pop %v1466
      %v1597 = vtanh.pop %v1471
      %v1598 = vtanh.pop %v1476
      %v1599 = vtanh.pop %v1481
      %v1600 = vtanh.pop %v1486
      %v1601 = vtanh.pop %v1491
      %v1602 = vtanh.pop %v1496
      %v1603 = vtanh.pop %v1501
      %v1604 = vtanh.pop %v1506
      %v1605 = vtanh.pop %v1511
      %v1606 = vtanh.pop %v1516
      %v1607 = vtanh.pop %v1521
      %v1608 = vtanh.pop %v1526
      %v1609 = vtanh.pop %v1531
      %v1610 = vtanh.pop %v1536
      %v1611 = vtanh.pop %v1541
      %v1612 = vtanh.pop %v1546
      %v1613 = vtanh.pop %v1551
      %v1614 = vtanh.pop %v1556
      %v1615 = vtanh.pop %v1561
      %v1616 = vtanh.pop %v1566
      %v1617 = vtanh.pop %v1571
      %v1618 = vtanh.pop %v1576
      %v1619 = vtanh.pop %v1581
      %v1620 = vtanh.pop %v1586
      %v1621 = vld [vmem:[%s426] sm:$0xff]
      %v1622 = vld [vmem:[%s426 + $0x8] sm:$0xff]
      %v1623 = vld [vmem:[%s426 + $0x10] sm:$0xff]
      %v1624 = vld [vmem:[%s426 + $0x18] sm:$0xff]
      %v1625 = vld [vmem:[%s426 + $0x20] sm:$0xff]
      %v1626 = vld [vmem:[%s426 + $0x28] sm:$0xff]
      %v1627 = vld [vmem:[%s426 + $0x30] sm:$0xff]
      %v1628 = vld [vmem:[%s426 + $0x38] sm:$0xff]
      %v1629 = vld [vmem:[%s426 + $0x40] sm:$0xff]
      %v1630 = vld [vmem:[%s426 + $0x48] sm:$0xff]
      %v1631 = vld [vmem:[%s426 + $0x50] sm:$0xff]
      %v1632 = vld [vmem:[%s426 + $0x58] sm:$0xff]
      %v1633 = vld [vmem:[%s426 + $0x60] sm:$0xff]
      %v1634 = vld [vmem:[%s426 + $0x68] sm:$0xff]
      %v1635 = vld [vmem:[%s426 + $0x70] sm:$0xff]
      %v1636 = vld [vmem:[%s426 + $0x78] sm:$0xff]
      %v1637 = vld [vmem:[%s426 + $0x80] sm:$0xff]
      %v1638 = vld [vmem:[%s426 + $0x88] sm:$0xff]
      %v1639 = vld [vmem:[%s426 + $0x90] sm:$0xff]
      %v1640 = vld [vmem:[%s426 + $0x98] sm:$0xff]
      %v1641 = vld [vmem:[%s426 + $0xa0] sm:$0xff]
      %v1642 = vld [vmem:[%s426 + $0xa8] sm:$0xff]
      %v1643 = vld [vmem:[%s426 + $0xb0] sm:$0xff]
      %v1644 = vld [vmem:[%s426 + $0xb8] sm:$0xff]
      %v1645 = vld [vmem:[%s426 + $0xc0] sm:$0xff]
      %v1646 = vld [vmem:[%s426 + $0xc8] sm:$0xff]
      %v1647 = vld [vmem:[%s426 + $0xd0] sm:$0xff]
      %v1648 = vld [vmem:[%s426 + $0xd8] sm:$0xff]
      %v1649 = vld [vmem:[%s426 + $0xe0] sm:$0xff]
      %v1650 = vld [vmem:[%s426 + $0xe8] sm:$0xff]
      %v1651 = vld [vmem:[%s426 + $0xf0] sm:$0xff]
      %v1652 = vld [vmem:[%s426 + $0xf8] sm:$0xff]
      %v1654 = vsel %vm497, %v1621, 0
      %v1657 = vsel %vm497, %v1622, 0
      %v1660 = vsel %vm497, %v1623, 0
      %v1663 = vsel %vm497, %v1624, 0
      %v1666 = vsel %vm497, %v1625, 0
      %v1669 = vsel %vm497, %v1626, 0
      %v1672 = vsel %vm497, %v1627, 0
      %v1675 = vsel %vm497, %v1628, 0
      %v1678 = vsel %vm497, %v1629, 0
      %v1681 = vsel %vm497, %v1630, 0
      %v1684 = vsel %vm497, %v1631, 0
      %v1687 = vsel %vm497, %v1632, 0
      %v1690 = vsel %vm497, %v1633, 0
      %v1693 = vsel %vm497, %v1634, 0
      %v1696 = vsel %vm497, %v1635, 0
      %v1699 = vsel %vm497, %v1636, 0
      %v1702 = vsel %vm497, %v1637, 0
      %v1705 = vsel %vm497, %v1638, 0
      %v1708 = vsel %vm497, %v1639, 0
      %v1711 = vsel %vm497, %v1640, 0
      %v1714 = vsel %vm497, %v1641, 0
      %v1717 = vsel %vm497, %v1642, 0
      %v1720 = vsel %vm497, %v1643, 0
      %v1723 = vsel %vm497, %v1644, 0
      %v1726 = vsel %vm497, %v1645, 0
      %v1729 = vsel %vm497, %v1646, 0
      %v1732 = vsel %vm497, %v1647, 0
      %v1735 = vsel %vm497, %v1648, 0
      %v1738 = vsel %vm497, %v1649, 0
      %v1741 = vsel %vm497, %v1650, 0
      %v1744 = vsel %vm497, %v1651, 0
      %v1747 = vsel %vm497, %v1652, 0
      %1749 = vmatprep.subr.mxu0 0.0
      %1750 = vmatpush1.msra.mxu0 0.0
      %1751 = vmatprep.subr.mxu0 0.0
      %1752 = vmatpush1.msra.mxu0 0.0
      %1753 = vmatprep.subr.mxu0 0.0
      %1754 = vmatpush1.msra.mxu0 0.0
      %1755 = vmatprep.subr.mxu0 0.0
      %1756 = vmatpush1.msra.mxu0 0.0
      %1757 = vmatprep.subr.mxu0 0.0
      %1758 = vmatpush1.msra.mxu0 0.0
      %1759 = vmatprep.subr.mxu0 0.0
      %1760 = vmatpush1.msra.mxu0 0.0
      %1761 = vmatprep.subr.mxu0 0.0
      %1762 = vmatpush1.msra.mxu0 0.0
      %1763 = vmatprep.subr.mxu0 0.0
      %1764 = vmatpush1.msra.mxu0 0.0
      %1765 = vmatprep.subr.mxu0 0.0
      %1766 = vmatpush1.msra.mxu0 0.0
      %1767 = vmatprep.subr.mxu0 0.0
      %1768 = vmatpush1.msra.mxu0 0.0
      %1769 = vmatprep.subr.mxu0 0.0
      %1770 = vmatpush1.msra.mxu0 0.0
      %1771 = vmatprep.subr.mxu0 0.0
      %1772 = vmatpush1.msra.mxu0 0.0
      %1773 = vmatprep.subr.mxu0 0.0
      %1774 = vmatpush1.msra.mxu0 0.0
      %1775 = vmatprep.subr.mxu0 0.0
      %1776 = vmatpush1.msra.mxu0 0.0
      %1777 = vmatprep.subr.mxu0 0.0
      %1778 = vmatpush1.msra.mxu0 0.0
      %1779 = vmatprep.subr.mxu0 0.0
      %1780 = vmatpush1.msra.mxu0 %v440
      %1781 = vmatprep.subr.mxu0 0.0
      %1782 = vmatpush2.msra.mxu0 0.0
      %1783 = vmatprep.subr.mxu0 0.0
      %1784 = vmatpush2.msra.mxu0 0.0
      %1785 = vmatprep.subr.mxu0 0.0
      %1786 = vmatpush2.msra.mxu0 0.0
      %1787 = vmatprep.subr.mxu0 0.0
      %1788 = vmatpush2.msra.mxu0 0.0
      %1789 = vmatprep.subr.mxu0 0.0
      %1790 = vmatpush2.msra.mxu0 0.0
      %1791 = vmatprep.subr.mxu0 0.0
      %1792 = vmatpush2.msra.mxu0 0.0
      %1793 = vmatprep.subr.mxu0 0.0
      %1794 = vmatpush2.msra.mxu0 0.0
      %1795 = vmatprep.subr.mxu0 0.0
      %1796 = vmatpush2.msra.mxu0 0.0
      %1797 = vmatprep.subr.mxu0 0.0
      %1798 = vmatpush2.msra.mxu0 0.0
      %1799 = vmatprep.subr.mxu0 0.0
      %1800 = vmatpush2.msra.mxu0 0.0
      %1801 = vmatprep.subr.mxu0 0.0
      %1802 = vmatpush2.msra.mxu0 0.0
      %1803 = vmatprep.subr.mxu0 0.0
      %1804 = vmatpush2.msra.mxu0 0.0
      %1805 = vmatprep.subr.mxu0 0.0
      %1806 = vmatpush2.msra.mxu0 0.0
      %1807 = vmatprep.subr.mxu0 0.0
      %1808 = vmatpush2.msra.mxu0 0.0
      %1809 = vmatprep.subr.mxu0 0.0
      %1810 = vmatpush2.msra.mxu0 0.0
      %1811 = vmatprep.subr.mxu0 0.0
      %1812 = vmatpush2.msra.mxu0 0.0
      %1813 = vmatprep.mubr.f32.mxu0 0.0
      %1814 = vmatmul.mubr.f32.gmra.mxu0 %v1654
      %v1815 = vpop.f32.mrf.mxu0
      %v1816 = vadd.f32 %v495, %v1815
      %v1817 = vpop.f32.mrf.mxu0
      %1818 = vmatprep.mubr.f32.mxu0 0.0
      %1819 = vmatmul.mubr.f32.gmra.mxu0 %v1657
      %v1820 = vpop.f32.mrf.mxu0
      %v1821 = vadd.f32 %v495, %v1820
      %v1822 = vpop.f32.mrf.mxu0
      %1823 = vmatprep.mubr.f32.mxu0 0.0
      %1824 = vmatmul.mubr.f32.gmra.mxu0 %v1660
      %v1825 = vpop.f32.mrf.mxu0
      %v1826 = vadd.f32 %v495, %v1825
      %v1827 = vpop.f32.mrf.mxu0
      %1828 = vmatprep.mubr.f32.mxu0 0.0
      %1829 = vmatmul.mubr.f32.gmra.mxu0 %v1663
      %v1830 = vpop.f32.mrf.mxu0
      %v1831 = vadd.f32 %v495, %v1830
      %v1832 = vpop.f32.mrf.mxu0
      %1833 = vmatprep.mubr.f32.mxu0 0.0
      %1834 = vmatmul.mubr.f32.gmra.mxu0 %v1666
      %v1835 = vpop.f32.mrf.mxu0
      %v1836 = vadd.f32 %v495, %v1835
      %v1837 = vpop.f32.mrf.mxu0
      %1838 = vmatprep.mubr.f32.mxu0 0.0
      %1839 = vmatmul.mubr.f32.gmra.mxu0 %v1669
      %v1840 = vpop.f32.mrf.mxu0
      %v1841 = vadd.f32 %v495, %v1840
      %v1842 = vpop.f32.mrf.mxu0
      %1843 = vmatprep.mubr.f32.mxu0 0.0
      %1844 = vmatmul.mubr.f32.gmra.mxu0 %v1672
      %v1845 = vpop.f32.mrf.mxu0
      %v1846 = vadd.f32 %v495, %v1845
      %v1847 = vpop.f32.mrf.mxu0
      %1848 = vmatprep.mubr.f32.mxu0 0.0
      %1849 = vmatmul.mubr.f32.gmra.mxu0 %v1675
      %v1850 = vpop.f32.mrf.mxu0
      %v1851 = vadd.f32 %v495, %v1850
      %v1852 = vpop.f32.mrf.mxu0
      %1853 = vmatprep.mubr.f32.mxu0 0.0
      %1854 = vmatmul.mubr.f32.gmra.mxu0 %v1678
      %v1855 = vpop.f32.mrf.mxu0
      %v1856 = vadd.f32 %v495, %v1855
      %v1857 = vpop.f32.mrf.mxu0
      %1858 = vmatprep.mubr.f32.mxu0 0.0
      %1859 = vmatmul.mubr.f32.gmra.mxu0 %v1681
      %v1860 = vpop.f32.mrf.mxu0
      %v1861 = vadd.f32 %v495, %v1860
      %v1862 = vpop.f32.mrf.mxu0
      %1863 = vmatprep.mubr.f32.mxu0 0.0
      %1864 = vmatmul.mubr.f32.gmra.mxu0 %v1684
      %v1865 = vpop.f32.mrf.mxu0
      %v1866 = vadd.f32 %v495, %v1865
      %v1867 = vpop.f32.mrf.mxu0
      %1868 = vmatprep.mubr.f32.mxu0 0.0
      %1869 = vmatmul.mubr.f32.gmra.mxu0 %v1687
      %v1870 = vpop.f32.mrf.mxu0
      %v1871 = vadd.f32 %v495, %v1870
      %v1872 = vpop.f32.mrf.mxu0
      %1873 = vmatprep.mubr.f32.mxu0 0.0
      %1874 = vmatmul.mubr.f32.gmra.mxu0 %v1690
      %v1875 = vpop.f32.mrf.mxu0
      %v1876 = vadd.f32 %v495, %v1875
      %v1877 = vpop.f32.mrf.mxu0
      %1878 = vmatprep.mubr.f32.mxu0 0.0
      %1879 = vmatmul.mubr.f32.gmra.mxu0 %v1693
      %v1880 = vpop.f32.mrf.mxu0
      %v1881 = vadd.f32 %v495, %v1880
      %v1882 = vpop.f32.mrf.mxu0
      %1883 = vmatprep.mubr.f32.mxu0 0.0
      %1884 = vmatmul.mubr.f32.gmra.mxu0 %v1696
      %v1885 = vpop.f32.mrf.mxu0
      %v1886 = vadd.f32 %v495, %v1885
      %v1887 = vpop.f32.mrf.mxu0
      %1888 = vmatprep.mubr.f32.mxu0 0.0
      %1889 = vmatmul.mubr.f32.gmra.mxu0 %v1699
      %v1890 = vpop.f32.mrf.mxu0
      %v1891 = vadd.f32 %v495, %v1890
      %v1892 = vpop.f32.mrf.mxu0
      %1893 = vmatprep.mubr.f32.mxu0 0.0
      %1894 = vmatmul.mubr.f32.gmra.mxu0 %v1702
      %v1895 = vpop.f32.mrf.mxu0
      %v1896 = vadd.f32 %v495, %v1895
      %v1897 = vpop.f32.mrf.mxu0
      %1898 = vmatprep.mubr.f32.mxu0 0.0
      %1899 = vmatmul.mubr.f32.gmra.mxu0 %v1705
      %v1900 = vpop.f32.mrf.mxu0
      %v1901 = vadd.f32 %v495, %v1900
      %v1902 = vpop.f32.mrf.mxu0
      %1903 = vmatprep.mubr.f32.mxu0 0.0
      %1904 = vmatmul.mubr.f32.gmra.mxu0 %v1708
      %v1905 = vpop.f32.mrf.mxu0
      %v1906 = vadd.f32 %v495, %v1905
      %v1907 = vpop.f32.mrf.mxu0
      %1908 = vmatprep.mubr.f32.mxu0 0.0
      %1909 = vmatmul.mubr.f32.gmra.mxu0 %v1711
      %v1910 = vpop.f32.mrf.mxu0
      %v1911 = vadd.f32 %v495, %v1910
      %v1912 = vpop.f32.mrf.mxu0
      %1913 = vmatprep.mubr.f32.mxu0 0.0
      %1914 = vmatmul.mubr.f32.gmra.mxu0 %v1714
      %v1915 = vpop.f32.mrf.mxu0
      %v1916 = vadd.f32 %v495, %v1915
      %v1917 = vpop.f32.mrf.mxu0
      %1918 = vmatprep.mubr.f32.mxu0 0.0
      %1919 = vmatmul.mubr.f32.gmra.mxu0 %v1717
      %v1920 = vpop.f32.mrf.mxu0
      %v1921 = vadd.f32 %v495, %v1920
      %v1922 = vpop.f32.mrf.mxu0
      %1923 = vmatprep.mubr.f32.mxu0 0.0
      %1924 = vmatmul.mubr.f32.gmra.mxu0 %v1720
      %v1925 = vpop.f32.mrf.mxu0
      %v1926 = vadd.f32 %v495, %v1925
      %v1927 = vpop.f32.mrf.mxu0
      %1928 = vmatprep.mubr.f32.mxu0 0.0
      %1929 = vmatmul.mubr.f32.gmra.mxu0 %v1723
      %v1930 = vpop.f32.mrf.mxu0
      %v1931 = vadd.f32 %v495, %v1930
      %v1932 = vpop.f32.mrf.mxu0
      %1933 = vmatprep.mubr.f32.mxu0 0.0
      %1934 = vmatmul.mubr.f32.gmra.mxu0 %v1726
      %v1935 = vpop.f32.mrf.mxu0
      %v1936 = vadd.f32 %v495, %v1935
      %v1937 = vpop.f32.mrf.mxu0
      %1938 = vmatprep.mubr.f32.mxu0 0.0
      %1939 = vmatmul.mubr.f32.gmra.mxu0 %v1729
      %v1940 = vpop.f32.mrf.mxu0
      %v1941 = vadd.f32 %v495, %v1940
      %v1942 = vpop.f32.mrf.mxu0
      %1943 = vmatprep.mubr.f32.mxu0 0.0
      %1944 = vmatmul.mubr.f32.gmra.mxu0 %v1732
      %v1945 = vpop.f32.mrf.mxu0
      %v1946 = vadd.f32 %v495, %v1945
      %v1947 = vpop.f32.mrf.mxu0
      %1948 = vmatprep.mubr.f32.mxu0 0.0
      %1949 = vmatmul.mubr.f32.gmra.mxu0 %v1735
      %v1950 = vpop.f32.mrf.mxu0
      %v1951 = vadd.f32 %v495, %v1950
      %v1952 = vpop.f32.mrf.mxu0
      %1953 = vmatprep.mubr.f32.mxu0 0.0
      %1954 = vmatmul.mubr.f32.gmra.mxu0 %v1738
      %v1955 = vpop.f32.mrf.mxu0
      %v1956 = vadd.f32 %v495, %v1955
      %v1957 = vpop.f32.mrf.mxu0
      %1958 = vmatprep.mubr.f32.mxu0 0.0
      %1959 = vmatmul.mubr.f32.gmra.mxu0 %v1741
      %v1960 = vpop.f32.mrf.mxu0
      %v1961 = vadd.f32 %v495, %v1960
      %v1962 = vpop.f32.mrf.mxu0
      %1963 = vmatprep.mubr.f32.mxu0 0.0
      %1964 = vmatmul.mubr.f32.gmra.mxu0 %v1744
      %v1965 = vpop.f32.mrf.mxu0
      %v1966 = vadd.f32 %v495, %v1965
      %v1967 = vpop.f32.mrf.mxu0
      %1968 = vmatprep.mubr.f32.mxu0 0.0
      %1969 = vmatmul.mubr.f32.gmra.mxu0 %v1747
      %v1970 = vpop.f32.mrf.mxu0
      %v1971 = vadd.f32 %v495, %v1970
      %v1972 = vpop.f32.mrf.mxu0
      %1973 = vdwg.mxu0
      %v1974 = vtanh.pop %v1816
      %v1975 = vtanh.pop %v1821
      %v1976 = vtanh.pop %v1826
      %v1977 = vtanh.pop %v1831
      %v1978 = vtanh.pop %v1836
      %v1979 = vtanh.pop %v1841
      %v1980 = vtanh.pop %v1846
      %v1981 = vtanh.pop %v1851
      %v1982 = vtanh.pop %v1856
      %v1983 = vtanh.pop %v1861
      %v1984 = vtanh.pop %v1866
      %v1985 = vtanh.pop %v1871
      %v1986 = vtanh.pop %v1876
      %v1987 = vtanh.pop %v1881
      %v1988 = vtanh.pop %v1886
      %v1989 = vtanh.pop %v1891
      %v1990 = vtanh.pop %v1896
      %v1991 = vtanh.pop %v1901
      %v1992 = vtanh.pop %v1906
      %v1993 = vtanh.pop %v1911
      %v1994 = vtanh.pop %v1916
      %v1995 = vtanh.pop %v1921
      %v1996 = vtanh.pop %v1926
      %v1997 = vtanh.pop %v1931
      %v1998 = vtanh.pop %v1936
      %v1999 = vtanh.pop %v1941
      %v2000 = vtanh.pop %v1946
      %v2001 = vtanh.pop %v1951
      %v2002 = vtanh.pop %v1956
      %v2003 = vtanh.pop %v1961
      %v2004 = vtanh.pop %v1966
      %v2005 = vtanh.pop %v1971
      %v2007 = vlaneseq
      %v2008 = vshrl.u32 %v2007, 7
      %v2009 = vsub.s32 0, %v2008
      %v2010 = vrot.slane %v458, %v2009
      %2012 = vmatprep.subr.mxu0 0.0
      %2013 = vmatpush1.msra.mxu0 %v457
      %2014 = vmatprep.subr.mxu0 0.0
      %2015 = vmatpush1.msra.mxu0 %v456
      %2016 = vmatprep.subr.mxu0 0.0
      %2017 = vmatpush1.msra.mxu0 %v455
      %2018 = vmatprep.subr.mxu0 0.0
      %2019 = vmatpush1.msra.mxu0 %v454
      %2020 = vmatprep.subr.mxu0 0.0
      %2021 = vmatpush1.msra.mxu0 %v453
      %2022 = vmatprep.subr.mxu0 0.0
      %2023 = vmatpush1.msra.mxu0 %v452
      %2024 = vmatprep.subr.mxu0 0.0
      %2025 = vmatpush1.msra.mxu0 %v451
      %2026 = vmatprep.subr.mxu0 0.0
      %2027 = vmatpush1.msra.mxu0 %v450
      %2028 = vmatprep.subr.mxu0 0.0
      %2029 = vmatpush1.msra.mxu0 %v449
      %2030 = vmatprep.subr.mxu0 0.0
      %2031 = vmatpush1.msra.mxu0 %v448
      %2032 = vmatprep.subr.mxu0 0.0
      %2033 = vmatpush1.msra.mxu0 %v447
      %2034 = vmatprep.subr.mxu0 0.0
      %2035 = vmatpush1.msra.mxu0 %v446
      %2036 = vmatprep.subr.mxu0 0.0
      %2037 = vmatpush1.msra.mxu0 %v445
      %2038 = vmatprep.subr.mxu0 0.0
      %2039 = vmatpush1.msra.mxu0 %v444
      %2040 = vmatprep.subr.mxu0 0.0
      %2041 = vmatpush1.msra.mxu0 %v443
      %2042 = vmatprep.subr.mxu0 0.0
      %2043 = vmatpush1.msra.mxu0 %v442
      %2044 = vmatprep.subr.mxu0 0.0
      %2045 = vmatpush2.msra.mxu0 0.0
      %2046 = vmatprep.subr.mxu0 0.0
      %2047 = vmatpush2.msra.mxu0 0.0
      %2048 = vmatprep.subr.mxu0 0.0
      %2049 = vmatpush2.msra.mxu0 0.0
      %2050 = vmatprep.subr.mxu0 0.0
      %2051 = vmatpush2.msra.mxu0 0.0
      %2052 = vmatprep.subr.mxu0 0.0
      %2053 = vmatpush2.msra.mxu0 0.0
      %2054 = vmatprep.subr.mxu0 0.0
      %2055 = vmatpush2.msra.mxu0 0.0
      %2056 = vmatprep.subr.mxu0 0.0
      %2057 = vmatpush2.msra.mxu0 0.0
      %2058 = vmatprep.subr.mxu0 0.0
      %2059 = vmatpush2.msra.mxu0 0.0
      %2060 = vmatprep.subr.mxu0 0.0
      %2061 = vmatpush2.msra.mxu0 0.0
      %2062 = vmatprep.subr.mxu0 0.0
      %2063 = vmatpush2.msra.mxu0 0.0
      %2064 = vmatprep.subr.mxu0 0.0
      %2065 = vmatpush2.msra.mxu0 0.0
      %2066 = vmatprep.subr.mxu0 0.0
      %2067 = vmatpush2.msra.mxu0 0.0
      %2068 = vmatprep.subr.mxu0 0.0
      %2069 = vmatpush2.msra.mxu0 0.0
      %2070 = vmatprep.subr.mxu0 0.0
      %2071 = vmatpush2.msra.mxu0 0.0
      %2072 = vmatprep.subr.mxu0 0.0
      %2073 = vmatpush2.msra.mxu0 0.0
      %2074 = vmatprep.subr.mxu0 0.0
      %2075 = vmatpush2.msra.mxu0 0.0
      %2076 = vmatprep.mubr.f32.mxu0 0.0
      %2077 = vmatmul.mubr.f32.gmra.mxu0 %v819
      %v2078 = vpop.f32.mrf.mxu0
      %v2079 = vadd.f32 %v2010, %v2078
      %v2080 = vpop.f32.mrf.mxu0
      %2081 = vmatprep.mubr.f32.mxu0 0.0
      %2082 = vmatmul.mubr.f32.gmra.mxu0 %v820
      %v2083 = vpop.f32.mrf.mxu0
      %v2084 = vadd.f32 %v2010, %v2083
      %v2085 = vpop.f32.mrf.mxu0
      %2086 = vmatprep.mubr.f32.mxu0 0.0
      %2087 = vmatmul.mubr.f32.gmra.mxu0 %v821
      %v2088 = vpop.f32.mrf.mxu0
      %v2089 = vadd.f32 %v2010, %v2088
      %v2090 = vpop.f32.mrf.mxu0
      %2091 = vmatprep.mubr.f32.mxu0 0.0
      %2092 = vmatmul.mubr.f32.gmra.mxu0 %v822
      %v2093 = vpop.f32.mrf.mxu0
      %v2094 = vadd.f32 %v2010, %v2093
      %v2095 = vpop.f32.mrf.mxu0
      %2096 = vmatprep.mubr.f32.mxu0 0.0
      %2097 = vmatmul.mubr.f32.gmra.mxu0 %v823
      %v2098 = vpop.f32.mrf.mxu0
      %v2099 = vadd.f32 %v2010, %v2098
      %v2100 = vpop.f32.mrf.mxu0
      %2101 = vmatprep.mubr.f32.mxu0 0.0
      %2102 = vmatmul.mubr.f32.gmra.mxu0 %v824
      %v2103 = vpop.f32.mrf.mxu0
      %v2104 = vadd.f32 %v2010, %v2103
      %v2105 = vpop.f32.mrf.mxu0
      %2106 = vmatprep.mubr.f32.mxu0 0.0
      %2107 = vmatmul.mubr.f32.gmra.mxu0 %v825
      %v2108 = vpop.f32.mrf.mxu0
      %v2109 = vadd.f32 %v2010, %v2108
      %v2110 = vpop.f32.mrf.mxu0
      %2111 = vmatprep.mubr.f32.mxu0 0.0
      %2112 = vmatmul.mubr.f32.gmra.mxu0 %v826
      %v2113 = vpop.f32.mrf.mxu0
      %v2114 = vadd.f32 %v2010, %v2113
      %v2115 = vpop.f32.mrf.mxu0
      %2116 = vmatprep.mubr.f32.mxu0 0.0
      %2117 = vmatmul.mubr.f32.gmra.mxu0 %v827
      %v2118 = vpop.f32.mrf.mxu0
      %v2119 = vadd.f32 %v2010, %v2118
      %v2120 = vpop.f32.mrf.mxu0
      %2121 = vmatprep.mubr.f32.mxu0 0.0
      %2122 = vmatmul.mubr.f32.gmra.mxu0 %v828
      %v2123 = vpop.f32.mrf.mxu0
      %v2124 = vadd.f32 %v2010, %v2123
      %v2125 = vpop.f32.mrf.mxu0
      %2126 = vmatprep.mubr.f32.mxu0 0.0
      %2127 = vmatmul.mubr.f32.gmra.mxu0 %v829
      %v2128 = vpop.f32.mrf.mxu0
      %v2129 = vadd.f32 %v2010, %v2128
      %v2130 = vpop.f32.mrf.mxu0
      %2131 = vmatprep.mubr.f32.mxu0 0.0
      %2132 = vmatmul.mubr.f32.gmra.mxu0 %v830
      %v2133 = vpop.f32.mrf.mxu0
      %v2134 = vadd.f32 %v2010, %v2133
      %v2135 = vpop.f32.mrf.mxu0
      %2136 = vmatprep.mubr.f32.mxu0 0.0
      %2137 = vmatmul.mubr.f32.gmra.mxu0 %v831
      %v2138 = vpop.f32.mrf.mxu0
      %v2139 = vadd.f32 %v2010, %v2138
      %v2140 = vpop.f32.mrf.mxu0
      %2141 = vmatprep.mubr.f32.mxu0 0.0
      %2142 = vmatmul.mubr.f32.gmra.mxu0 %v832
      %v2143 = vpop.f32.mrf.mxu0
      %v2144 = vadd.f32 %v2010, %v2143
      %v2145 = vpop.f32.mrf.mxu0
      %2146 = vmatprep.mubr.f32.mxu0 0.0
      %2147 = vmatmul.mubr.f32.gmra.mxu0 %v833
      %v2148 = vpop.f32.mrf.mxu0
      %v2149 = vadd.f32 %v2010, %v2148
      %v2150 = vpop.f32.mrf.mxu0
      %2151 = vmatprep.mubr.f32.mxu0 0.0
      %2152 = vmatmul.mubr.f32.gmra.mxu0 %v834
      %v2153 = vpop.f32.mrf.mxu0
      %v2154 = vadd.f32 %v2010, %v2153
      %v2155 = vpop.f32.mrf.mxu0
      %2156 = vmatprep.mubr.f32.mxu0 0.0
      %2157 = vmatmul.mubr.f32.gmra.mxu0 %v835
      %v2158 = vpop.f32.mrf.mxu0
      %v2159 = vadd.f32 %v2010, %v2158
      %v2160 = vpop.f32.mrf.mxu0
      %2161 = vmatprep.mubr.f32.mxu0 0.0
      %2162 = vmatmul.mubr.f32.gmra.mxu0 %v836
      %v2163 = vpop.f32.mrf.mxu0
      %v2164 = vadd.f32 %v2010, %v2163
      %v2165 = vpop.f32.mrf.mxu0
      %2166 = vmatprep.mubr.f32.mxu0 0.0
      %2167 = vmatmul.mubr.f32.gmra.mxu0 %v837
      %v2168 = vpop.f32.mrf.mxu0
      %v2169 = vadd.f32 %v2010, %v2168
      %v2170 = vpop.f32.mrf.mxu0
      %2171 = vmatprep.mubr.f32.mxu0 0.0
      %2172 = vmatmul.mubr.f32.gmra.mxu0 %v838
      %v2173 = vpop.f32.mrf.mxu0
      %v2174 = vadd.f32 %v2010, %v2173
      %v2175 = vpop.f32.mrf.mxu0
      %2176 = vmatprep.mubr.f32.mxu0 0.0
      %2177 = vmatmul.mubr.f32.gmra.mxu0 %v839
      %v2178 = vpop.f32.mrf.mxu0
      %v2179 = vadd.f32 %v2010, %v2178
      %v2180 = vpop.f32.mrf.mxu0
      %2181 = vmatprep.mubr.f32.mxu0 0.0
      %2182 = vmatmul.mubr.f32.gmra.mxu0 %v840
      %v2183 = vpop.f32.mrf.mxu0
      %v2184 = vadd.f32 %v2010, %v2183
      %v2185 = vpop.f32.mrf.mxu0
      %2186 = vmatprep.mubr.f32.mxu0 0.0
      %2187 = vmatmul.mubr.f32.gmra.mxu0 %v841
      %v2188 = vpop.f32.mrf.mxu0
      %v2189 = vadd.f32 %v2010, %v2188
      %v2190 = vpop.f32.mrf.mxu0
      %2191 = vmatprep.mubr.f32.mxu0 0.0
      %2192 = vmatmul.mubr.f32.gmra.mxu0 %v842
      %v2193 = vpop.f32.mrf.mxu0
      %v2194 = vadd.f32 %v2010, %v2193
      %v2195 = vpop.f32.mrf.mxu0
      %2196 = vmatprep.mubr.f32.mxu0 0.0
      %2197 = vmatmul.mubr.f32.gmra.mxu0 %v843
      %v2198 = vpop.f32.mrf.mxu0
      %v2199 = vadd.f32 %v2010, %v2198
      %v2200 = vpop.f32.mrf.mxu0
      %2201 = vmatprep.mubr.f32.mxu0 0.0
      %2202 = vmatmul.mubr.f32.gmra.mxu0 %v844
      %v2203 = vpop.f32.mrf.mxu0
      %v2204 = vadd.f32 %v2010, %v2203
      %v2205 = vpop.f32.mrf.mxu0
      %2206 = vmatprep.mubr.f32.mxu0 0.0
      %2207 = vmatmul.mubr.f32.gmra.mxu0 %v845
      %v2208 = vpop.f32.mrf.mxu0
      %v2209 = vadd.f32 %v2010, %v2208
      %v2210 = vpop.f32.mrf.mxu0
      %2211 = vmatprep.mubr.f32.mxu0 0.0
      %2212 = vmatmul.mubr.f32.gmra.mxu0 %v846
      %v2213 = vpop.f32.mrf.mxu0
      %v2214 = vadd.f32 %v2010, %v2213
      %v2215 = vpop.f32.mrf.mxu0
      %2216 = vmatprep.mubr.f32.mxu0 0.0
      %2217 = vmatmul.mubr.f32.gmra.mxu0 %v847
      %v2218 = vpop.f32.mrf.mxu0
      %v2219 = vadd.f32 %v2010, %v2218
      %v2220 = vpop.f32.mrf.mxu0
      %2221 = vmatprep.mubr.f32.mxu0 0.0
      %2222 = vmatmul.mubr.f32.gmra.mxu0 %v848
      %v2223 = vpop.f32.mrf.mxu0
      %v2224 = vadd.f32 %v2010, %v2223
      %v2225 = vpop.f32.mrf.mxu0
      %2226 = vmatprep.mubr.f32.mxu0 0.0
      %2227 = vmatmul.mubr.f32.gmra.mxu0 %v849
      %v2228 = vpop.f32.mrf.mxu0
      %v2229 = vadd.f32 %v2010, %v2228
      %v2230 = vpop.f32.mrf.mxu0
      %2231 = vmatprep.mubr.f32.mxu0 0.0
      %2232 = vmatmul.mubr.f32.gmra.mxu0 %v850
      %v2233 = vpop.f32.mrf.mxu0
      %v2234 = vadd.f32 %v2010, %v2233
      %v2235 = vpop.f32.mrf.mxu0
      %2236 = vdwg.mxu0
      %v2237 = vtanh.pop %v2079
      %v2238 = vtanh.pop %v2084
      %v2239 = vtanh.pop %v2089
      %v2240 = vtanh.pop %v2094
      %v2241 = vtanh.pop %v2099
      %v2242 = vtanh.pop %v2104
      %v2243 = vtanh.pop %v2109
      %v2244 = vtanh.pop %v2114
      %v2245 = vtanh.pop %v2119
      %v2246 = vtanh.pop %v2124
      %v2247 = vtanh.pop %v2129
      %v2248 = vtanh.pop %v2134
      %v2249 = vtanh.pop %v2139
      %v2250 = vtanh.pop %v2144
      %v2251 = vtanh.pop %v2149
      %v2252 = vtanh.pop %v2154
      %v2253 = vtanh.pop %v2159
      %v2254 = vtanh.pop %v2164
      %v2255 = vtanh.pop %v2169
      %v2256 = vtanh.pop %v2174
      %v2257 = vtanh.pop %v2179
      %v2258 = vtanh.pop %v2184
      %v2259 = vtanh.pop %v2189
      %v2260 = vtanh.pop %v2194
      %v2261 = vtanh.pop %v2199
      %v2262 = vtanh.pop %v2204
      %v2263 = vtanh.pop %v2209
      %v2264 = vtanh.pop %v2214
      %v2265 = vtanh.pop %v2219
      %v2266 = vtanh.pop %v2224
      %v2267 = vtanh.pop %v2229
      %v2268 = vtanh.pop %v2234
      %2269 = vmatprep.subr.mxu0 0.0
      %2270 = vmatpush1.msra.mxu0 %v457
      %2271 = vmatprep.subr.mxu0 0.0
      %2272 = vmatpush1.msra.mxu0 %v456
      %2273 = vmatprep.subr.mxu0 0.0
      %2274 = vmatpush1.msra.mxu0 %v455
      %2275 = vmatprep.subr.mxu0 0.0
      %2276 = vmatpush1.msra.mxu0 %v454
      %2277 = vmatprep.subr.mxu0 0.0
      %2278 = vmatpush1.msra.mxu0 %v453
      %2279 = vmatprep.subr.mxu0 0.0
      %2280 = vmatpush1.msra.mxu0 %v452
      %2281 = vmatprep.subr.mxu0 0.0
      %2282 = vmatpush1.msra.mxu0 %v451
      %2283 = vmatprep.subr.mxu0 0.0
      %2284 = vmatpush1.msra.mxu0 %v450
      %2285 = vmatprep.subr.mxu0 0.0
      %2286 = vmatpush1.msra.mxu0 %v449
      %2287 = vmatprep.subr.mxu0 0.0
      %2288 = vmatpush1.msra.mxu0 %v448
      %2289 = vmatprep.subr.mxu0 0.0
      %2290 = vmatpush1.msra.mxu0 %v447
      %2291 = vmatprep.subr.mxu0 0.0
      %2292 = vmatpush1.msra.mxu0 %v446
      %2293 = vmatprep.subr.mxu0 0.0
      %2294 = vmatpush1.msra.mxu0 %v445
      %2295 = vmatprep.subr.mxu0 0.0
      %2296 = vmatpush1.msra.mxu0 %v444
      %2297 = vmatprep.subr.mxu0 0.0
      %2298 = vmatpush1.msra.mxu0 %v443
      %2299 = vmatprep.subr.mxu0 0.0
      %2300 = vmatpush1.msra.mxu0 %v442
      %2301 = vmatprep.subr.mxu0 0.0
      %2302 = vmatpush2.msra.mxu0 0.0
      %2303 = vmatprep.subr.mxu0 0.0
      %2304 = vmatpush2.msra.mxu0 0.0
      %2305 = vmatprep.subr.mxu0 0.0
      %2306 = vmatpush2.msra.mxu0 0.0
      %2307 = vmatprep.subr.mxu0 0.0
      %2308 = vmatpush2.msra.mxu0 0.0
      %2309 = vmatprep.subr.mxu0 0.0
      %2310 = vmatpush2.msra.mxu0 0.0
      %2311 = vmatprep.subr.mxu0 0.0
      %2312 = vmatpush2.msra.mxu0 0.0
      %2313 = vmatprep.subr.mxu0 0.0
      %2314 = vmatpush2.msra.mxu0 0.0
      %2315 = vmatprep.subr.mxu0 0.0
      %2316 = vmatpush2.msra.mxu0 0.0
      %2317 = vmatprep.subr.mxu0 0.0
      %2318 = vmatpush2.msra.mxu0 0.0
      %2319 = vmatprep.subr.mxu0 0.0
      %2320 = vmatpush2.msra.mxu0 0.0
      %2321 = vmatprep.subr.mxu0 0.0
      %2322 = vmatpush2.msra.mxu0 0.0
      %2323 = vmatprep.subr.mxu0 0.0
      %2324 = vmatpush2.msra.mxu0 0.0
      %2325 = vmatprep.subr.mxu0 0.0
      %2326 = vmatpush2.msra.mxu0 0.0
      %2327 = vmatprep.subr.mxu0 0.0
      %2328 = vmatpush2.msra.mxu0 0.0
      %2329 = vmatprep.subr.mxu0 0.0
      %2330 = vmatpush2.msra.mxu0 0.0
      %2331 = vmatprep.subr.mxu0 0.0
      %2332 = vmatpush2.msra.mxu0 0.0
      %2333 = vmatprep.mubr.f32.mxu0 0.0
      %2334 = vmatmul.mubr.f32.gmra.mxu0 %v1204
      %v2335 = vpop.f32.mrf.mxu0
      %v2336 = vadd.f32 %v2010, %v2335
      %v2337 = vpop.f32.mrf.mxu0
      %2338 = vmatprep.mubr.f32.mxu0 0.0
      %2339 = vmatmul.mubr.f32.gmra.mxu0 %v1205
      %v2340 = vpop.f32.mrf.mxu0
      %v2341 = vadd.f32 %v2010, %v2340
      %v2342 = vpop.f32.mrf.mxu0
      %2343 = vmatprep.mubr.f32.mxu0 0.0
      %2344 = vmatmul.mubr.f32.gmra.mxu0 %v1206
      %v2345 = vpop.f32.mrf.mxu0
      %v2346 = vadd.f32 %v2010, %v2345
      %v2347 = vpop.f32.mrf.mxu0
      %2348 = vmatprep.mubr.f32.mxu0 0.0
      %2349 = vmatmul.mubr.f32.gmra.mxu0 %v1207
      %v2350 = vpop.f32.mrf.mxu0
      %v2351 = vadd.f32 %v2010, %v2350
      %v2352 = vpop.f32.mrf.mxu0
      %2353 = vmatprep.mubr.f32.mxu0 0.0
      %2354 = vmatmul.mubr.f32.gmra.mxu0 %v1208
      %v2355 = vpop.f32.mrf.mxu0
      %v2356 = vadd.f32 %v2010, %v2355
      %v2357 = vpop.f32.mrf.mxu0
      %2358 = vmatprep.mubr.f32.mxu0 0.0
      %2359 = vmatmul.mubr.f32.gmra.mxu0 %v1209
      %v2360 = vpop.f32.mrf.mxu0
      %v2361 = vadd.f32 %v2010, %v2360
      %v2362 = vpop.f32.mrf.mxu0
      %2363 = vmatprep.mubr.f32.mxu0 0.0
      %2364 = vmatmul.mubr.f32.gmra.mxu0 %v1210
      %v2365 = vpop.f32.mrf.mxu0
      %v2366 = vadd.f32 %v2010, %v2365
      %v2367 = vpop.f32.mrf.mxu0
      %2368 = vmatprep.mubr.f32.mxu0 0.0
      %2369 = vmatmul.mubr.f32.gmra.mxu0 %v1211
      %v2370 = vpop.f32.mrf.mxu0
      %v2371 = vadd.f32 %v2010, %v2370
      %v2372 = vpop.f32.mrf.mxu0
      %2373 = vmatprep.mubr.f32.mxu0 0.0
      %2374 = vmatmul.mubr.f32.gmra.mxu0 %v1212
      %v2375 = vpop.f32.mrf.mxu0
      %v2376 = vadd.f32 %v2010, %v2375
      %v2377 = vpop.f32.mrf.mxu0
      %2378 = vmatprep.mubr.f32.mxu0 0.0
      %2379 = vmatmul.mubr.f32.gmra.mxu0 %v1213
      %v2380 = vpop.f32.mrf.mxu0
      %v2381 = vadd.f32 %v2010, %v2380
      %v2382 = vpop.f32.mrf.mxu0
      %2383 = vmatprep.mubr.f32.mxu0 0.0
      %2384 = vmatmul.mubr.f32.gmra.mxu0 %v1214
      %v2385 = vpop.f32.mrf.mxu0
      %v2386 = vadd.f32 %v2010, %v2385
      %v2387 = vpop.f32.mrf.mxu0
      %2388 = vmatprep.mubr.f32.mxu0 0.0
      %2389 = vmatmul.mubr.f32.gmra.mxu0 %v1215
      %v2390 = vpop.f32.mrf.mxu0
      %v2391 = vadd.f32 %v2010, %v2390
      %v2392 = vpop.f32.mrf.mxu0
      %2393 = vmatprep.mubr.f32.mxu0 0.0
      %2394 = vmatmul.mubr.f32.gmra.mxu0 %v1216
      %v2395 = vpop.f32.mrf.mxu0
      %v2396 = vadd.f32 %v2010, %v2395
      %v2397 = vpop.f32.mrf.mxu0
      %2398 = vmatprep.mubr.f32.mxu0 0.0
      %2399 = vmatmul.mubr.f32.gmra.mxu0 %v1217
      %v2400 = vpop.f32.mrf.mxu0
      %v2401 = vadd.f32 %v2010, %v2400
      %v2402 = vpop.f32.mrf.mxu0
      %2403 = vmatprep.mubr.f32.mxu0 0.0
      %2404 = vmatmul.mubr.f32.gmra.mxu0 %v1218
      %v2405 = vpop.f32.mrf.mxu0
      %v2406 = vadd.f32 %v2010, %v2405
      %v2407 = vpop.f32.mrf.mxu0
      %2408 = vmatprep.mubr.f32.mxu0 0.0
      %2409 = vmatmul.mubr.f32.gmra.mxu0 %v1219
      %v2410 = vpop.f32.mrf.mxu0
      %v2411 = vadd.f32 %v2010, %v2410
      %v2412 = vpop.f32.mrf.mxu0
      %2413 = vmatprep.mubr.f32.mxu0 0.0
      %2414 = vmatmul.mubr.f32.gmra.mxu0 %v1220
      %v2415 = vpop.f32.mrf.mxu0
      %v2416 = vadd.f32 %v2010, %v2415
      %v2417 = vpop.f32.mrf.mxu0
      %2418 = vmatprep.mubr.f32.mxu0 0.0
      %2419 = vmatmul.mubr.f32.gmra.mxu0 %v1221
      %v2420 = vpop.f32.mrf.mxu0
      %v2421 = vadd.f32 %v2010, %v2420
      %v2422 = vpop.f32.mrf.mxu0
      %2423 = vmatprep.mubr.f32.mxu0 0.0
      %2424 = vmatmul.mubr.f32.gmra.mxu0 %v1222
      %v2425 = vpop.f32.mrf.mxu0
      %v2426 = vadd.f32 %v2010, %v2425
      %v2427 = vpop.f32.mrf.mxu0
      %2428 = vmatprep.mubr.f32.mxu0 0.0
      %2429 = vmatmul.mubr.f32.gmra.mxu0 %v1223
      %v2430 = vpop.f32.mrf.mxu0
      %v2431 = vadd.f32 %v2010, %v2430
      %v2432 = vpop.f32.mrf.mxu0
      %2433 = vmatprep.mubr.f32.mxu0 0.0
      %2434 = vmatmul.mubr.f32.gmra.mxu0 %v1224
      %v2435 = vpop.f32.mrf.mxu0
      %v2436 = vadd.f32 %v2010, %v2435
      %v2437 = vpop.f32.mrf.mxu0
      %2438 = vmatprep.mubr.f32.mxu0 0.0
      %2439 = vmatmul.mubr.f32.gmra.mxu0 %v1225
      %v2440 = vpop.f32.mrf.mxu0
      %v2441 = vadd.f32 %v2010, %v2440
      %v2442 = vpop.f32.mrf.mxu0
      %2443 = vmatprep.mubr.f32.mxu0 0.0
      %2444 = vmatmul.mubr.f32.gmra.mxu0 %v1226
      %v2445 = vpop.f32.mrf.mxu0
      %v2446 = vadd.f32 %v2010, %v2445
      %v2447 = vpop.f32.mrf.mxu0
      %2448 = vmatprep.mubr.f32.mxu0 0.0
      %2449 = vmatmul.mubr.f32.gmra.mxu0 %v1227
      %v2450 = vpop.f32.mrf.mxu0
      %v2451 = vadd.f32 %v2010, %v2450
      %v2452 = vpop.f32.mrf.mxu0
      %2453 = vmatprep.mubr.f32.mxu0 0.0
      %2454 = vmatmul.mubr.f32.gmra.mxu0 %v1228
      %v2455 = vpop.f32.mrf.mxu0
      %v2456 = vadd.f32 %v2010, %v2455
      %v2457 = vpop.f32.mrf.mxu0
      %2458 = vmatprep.mubr.f32.mxu0 0.0
      %2459 = vmatmul.mubr.f32.gmra.mxu0 %v1229
      %v2460 = vpop.f32.mrf.mxu0
      %v2461 = vadd.f32 %v2010, %v2460
      %v2462 = vpop.f32.mrf.mxu0
      %2463 = vmatprep.mubr.f32.mxu0 0.0
      %2464 = vmatmul.mubr.f32.gmra.mxu0 %v1230
      %v2465 = vpop.f32.mrf.mxu0
      %v2466 = vadd.f32 %v2010, %v2465
      %v2467 = vpop.f32.mrf.mxu0
      %2468 = vmatprep.mubr.f32.mxu0 0.0
      %2469 = vmatmul.mubr.f32.gmra.mxu0 %v1231
      %v2470 = vpop.f32.mrf.mxu0
      %v2471 = vadd.f32 %v2010, %v2470
      %v2472 = vpop.f32.mrf.mxu0
      %2473 = vmatprep.mubr.f32.mxu0 0.0
      %2474 = vmatmul.mubr.f32.gmra.mxu0 %v1232
      %v2475 = vpop.f32.mrf.mxu0
      %v2476 = vadd.f32 %v2010, %v2475
      %v2477 = vpop.f32.mrf.mxu0
      %2478 = vmatprep.mubr.f32.mxu0 0.0
      %2479 = vmatmul.mubr.f32.gmra.mxu0 %v1233
      %v2480 = vpop.f32.mrf.mxu0
      %v2481 = vadd.f32 %v2010, %v2480
      %v2482 = vpop.f32.mrf.mxu0
      %2483 = vmatprep.mubr.f32.mxu0 0.0
      %2484 = vmatmul.mubr.f32.gmra.mxu0 %v1234
      %v2485 = vpop.f32.mrf.mxu0
      %v2486 = vadd.f32 %v2010, %v2485
      %v2487 = vpop.f32.mrf.mxu0
      %2488 = vmatprep.mubr.f32.mxu0 0.0
      %2489 = vmatmul.mubr.f32.gmra.mxu0 %v1235
      %v2490 = vpop.f32.mrf.mxu0
      %v2491 = vadd.f32 %v2010, %v2490
      %v2492 = vpop.f32.mrf.mxu0
      %2493 = vdwg.mxu0
      %v2494 = vtanh.pop %v2336
      %v2495 = vtanh.pop %v2341
      %v2496 = vtanh.pop %v2346
      %v2497 = vtanh.pop %v2351
      %v2498 = vtanh.pop %v2356
      %v2499 = vtanh.pop %v2361
      %v2500 = vtanh.pop %v2366
      %v2501 = vtanh.pop %v2371
      %v2502 = vtanh.pop %v2376
      %v2503 = vtanh.pop %v2381
      %v2504 = vtanh.pop %v2386
      %v2505 = vtanh.pop %v2391
      %v2506 = vtanh.pop %v2396
      %v2507 = vtanh.pop %v2401
      %v2508 = vtanh.pop %v2406
      %v2509 = vtanh.pop %v2411
      %v2510 = vtanh.pop %v2416
      %v2511 = vtanh.pop %v2421
      %v2512 = vtanh.pop %v2426
      %v2513 = vtanh.pop %v2431
      %v2514 = vtanh.pop %v2436
      %v2515 = vtanh.pop %v2441
      %v2516 = vtanh.pop %v2446
      %v2517 = vtanh.pop %v2451
      %v2518 = vtanh.pop %v2456
      %v2519 = vtanh.pop %v2461
      %v2520 = vtanh.pop %v2466
      %v2521 = vtanh.pop %v2471
      %v2522 = vtanh.pop %v2476
      %v2523 = vtanh.pop %v2481
      %v2524 = vtanh.pop %v2486
      %v2525 = vtanh.pop %v2491
      %2526 = vmatprep.subr.mxu0 0.0
      %2527 = vmatpush1.msra.mxu0 %v457
      %2528 = vmatprep.subr.mxu0 0.0
      %2529 = vmatpush1.msra.mxu0 %v456
      %2530 = vmatprep.subr.mxu0 0.0
      %2531 = vmatpush1.msra.mxu0 %v455
      %2532 = vmatprep.subr.mxu0 0.0
      %2533 = vmatpush1.msra.mxu0 %v454
      %2534 = vmatprep.subr.mxu0 0.0
      %2535 = vmatpush1.msra.mxu0 %v453
      %2536 = vmatprep.subr.mxu0 0.0
      %2537 = vmatpush1.msra.mxu0 %v452
      %2538 = vmatprep.subr.mxu0 0.0
      %2539 = vmatpush1.msra.mxu0 %v451
      %2540 = vmatprep.subr.mxu0 0.0
      %2541 = vmatpush1.msra.mxu0 %v450
      %2542 = vmatprep.subr.mxu0 0.0
      %2543 = vmatpush1.msra.mxu0 %v449
      %2544 = vmatprep.subr.mxu0 0.0
      %2545 = vmatpush1.msra.mxu0 %v448
      %2546 = vmatprep.subr.mxu0 0.0
      %2547 = vmatpush1.msra.mxu0 %v447
      %2548 = vmatprep.subr.mxu0 0.0
      %2549 = vmatpush1.msra.mxu0 %v446
      %2550 = vmatprep.subr.mxu0 0.0
      %2551 = vmatpush1.msra.mxu0 %v445
      %2552 = vmatprep.subr.mxu0 0.0
      %2553 = vmatpush1.msra.mxu0 %v444
      %2554 = vmatprep.subr.mxu0 0.0
      %2555 = vmatpush1.msra.mxu0 %v443
      %2556 = vmatprep.subr.mxu0 0.0
      %2557 = vmatpush1.msra.mxu0 %v442
      %2558 = vmatprep.subr.mxu0 0.0
      %2559 = vmatpush2.msra.mxu0 0.0
      %2560 = vmatprep.subr.mxu0 0.0
      %2561 = vmatpush2.msra.mxu0 0.0
      %2562 = vmatprep.subr.mxu0 0.0
      %2563 = vmatpush2.msra.mxu0 0.0
      %2564 = vmatprep.subr.mxu0 0.0
      %2565 = vmatpush2.msra.mxu0 0.0
      %2566 = vmatprep.subr.mxu0 0.0
      %2567 = vmatpush2.msra.mxu0 0.0
      %2568 = vmatprep.subr.mxu0 0.0
      %2569 = vmatpush2.msra.mxu0 0.0
      %2570 = vmatprep.subr.mxu0 0.0
      %2571 = vmatpush2.msra.mxu0 0.0
      %2572 = vmatprep.subr.mxu0 0.0
      %2573 = vmatpush2.msra.mxu0 0.0
      %2574 = vmatprep.subr.mxu0 0.0
      %2575 = vmatpush2.msra.mxu0 0.0
      %2576 = vmatprep.subr.mxu0 0.0
      %2577 = vmatpush2.msra.mxu0 0.0
      %2578 = vmatprep.subr.mxu0 0.0
      %2579 = vmatpush2.msra.mxu0 0.0
      %2580 = vmatprep.subr.mxu0 0.0
      %2581 = vmatpush2.msra.mxu0 0.0
      %2582 = vmatprep.subr.mxu0 0.0
      %2583 = vmatpush2.msra.mxu0 0.0
      %2584 = vmatprep.subr.mxu0 0.0
      %2585 = vmatpush2.msra.mxu0 0.0
      %2586 = vmatprep.subr.mxu0 0.0
      %2587 = vmatpush2.msra.mxu0 0.0
      %2588 = vmatprep.subr.mxu0 0.0
      %2589 = vmatpush2.msra.mxu0 0.0
      %2590 = vmatprep.mubr.f32.mxu0 0.0
      %2591 = vmatmul.mubr.f32.gmra.mxu0 %v1589
      %v2592 = vpop.f32.mrf.mxu0
      %v2593 = vadd.f32 %v2010, %v2592
      %v2594 = vpop.f32.mrf.mxu0
      %2595 = vmatprep.mubr.f32.mxu0 0.0
      %2596 = vmatmul.mubr.f32.gmra.mxu0 %v1590
      %v2597 = vpop.f32.mrf.mxu0
      %v2598 = vadd.f32 %v2010, %v2597
      %v2599 = vpop.f32.mrf.mxu0
      %2600 = vmatprep.mubr.f32.mxu0 0.0
      %2601 = vmatmul.mubr.f32.gmra.mxu0 %v1591
      %v2602 = vpop.f32.mrf.mxu0
      %v2603 = vadd.f32 %v2010, %v2602
      %v2604 = vpop.f32.mrf.mxu0
      %2605 = vmatprep.mubr.f32.mxu0 0.0
      %2606 = vmatmul.mubr.f32.gmra.mxu0 %v1592
      %v2607 = vpop.f32.mrf.mxu0
      %v2608 = vadd.f32 %v2010, %v2607
      %v2609 = vpop.f32.mrf.mxu0
      %2610 = vmatprep.mubr.f32.mxu0 0.0
      %2611 = vmatmul.mubr.f32.gmra.mxu0 %v1593
      %v2612 = vpop.f32.mrf.mxu0
      %v2613 = vadd.f32 %v2010, %v2612
      %v2614 = vpop.f32.mrf.mxu0
      %2615 = vmatprep.mubr.f32.mxu0 0.0
      %2616 = vmatmul.mubr.f32.gmra.mxu0 %v1594
      %v2617 = vpop.f32.mrf.mxu0
      %v2618 = vadd.f32 %v2010, %v2617
      %v2619 = vpop.f32.mrf.mxu0
      %2620 = vmatprep.mubr.f32.mxu0 0.0
      %2621 = vmatmul.mubr.f32.gmra.mxu0 %v1595
      %v2622 = vpop.f32.mrf.mxu0
      %v2623 = vadd.f32 %v2010, %v2622
      %v2624 = vpop.f32.mrf.mxu0
      %2625 = vmatprep.mubr.f32.mxu0 0.0
      %2626 = vmatmul.mubr.f32.gmra.mxu0 %v1596
      %v2627 = vpop.f32.mrf.mxu0
      %v2628 = vadd.f32 %v2010, %v2627
      %v2629 = vpop.f32.mrf.mxu0
      %2630 = vmatprep.mubr.f32.mxu0 0.0
      %2631 = vmatmul.mubr.f32.gmra.mxu0 %v1597
      %v2632 = vpop.f32.mrf.mxu0
      %v2633 = vadd.f32 %v2010, %v2632
      %v2634 = vpop.f32.mrf.mxu0
      %2635 = vmatprep.mubr.f32.mxu0 0.0
      %2636 = vmatmul.mubr.f32.gmra.mxu0 %v1598
      %v2637 = vpop.f32.mrf.mxu0
      %v2638 = vadd.f32 %v2010, %v2637
      %v2639 = vpop.f32.mrf.mxu0
      %2640 = vmatprep.mubr.f32.mxu0 0.0
      %2641 = vmatmul.mubr.f32.gmra.mxu0 %v1599
      %v2642 = vpop.f32.mrf.mxu0
      %v2643 = vadd.f32 %v2010, %v2642
      %v2644 = vpop.f32.mrf.mxu0
      %2645 = vmatprep.mubr.f32.mxu0 0.0
      %2646 = vmatmul.mubr.f32.gmra.mxu0 %v1600
      %v2647 = vpop.f32.mrf.mxu0
      %v2648 = vadd.f32 %v2010, %v2647
      %v2649 = vpop.f32.mrf.mxu0
      %2650 = vmatprep.mubr.f32.mxu0 0.0
      %2651 = vmatmul.mubr.f32.gmra.mxu0 %v1601
      %v2652 = vpop.f32.mrf.mxu0
      %v2653 = vadd.f32 %v2010, %v2652
      %v2654 = vpop.f32.mrf.mxu0
      %2655 = vmatprep.mubr.f32.mxu0 0.0
      %2656 = vmatmul.mubr.f32.gmra.mxu0 %v1602
      %v2657 = vpop.f32.mrf.mxu0
      %v2658 = vadd.f32 %v2010, %v2657
      %v2659 = vpop.f32.mrf.mxu0
      %2660 = vmatprep.mubr.f32.mxu0 0.0
      %2661 = vmatmul.mubr.f32.gmra.mxu0 %v1603
      %v2662 = vpop.f32.mrf.mxu0
      %v2663 = vadd.f32 %v2010, %v2662
      %v2664 = vpop.f32.mrf.mxu0
      %2665 = vmatprep.mubr.f32.mxu0 0.0
      %2666 = vmatmul.mubr.f32.gmra.mxu0 %v1604
      %v2667 = vpop.f32.mrf.mxu0
      %v2668 = vadd.f32 %v2010, %v2667
      %v2669 = vpop.f32.mrf.mxu0
      %2670 = vmatprep.mubr.f32.mxu0 0.0
      %2671 = vmatmul.mubr.f32.gmra.mxu0 %v1605
      %v2672 = vpop.f32.mrf.mxu0
      %v2673 = vadd.f32 %v2010, %v2672
      %v2674 = vpop.f32.mrf.mxu0
      %2675 = vmatprep.mubr.f32.mxu0 0.0
      %2676 = vmatmul.mubr.f32.gmra.mxu0 %v1606
      %v2677 = vpop.f32.mrf.mxu0
      %v2678 = vadd.f32 %v2010, %v2677
      %v2679 = vpop.f32.mrf.mxu0
      %2680 = vmatprep.mubr.f32.mxu0 0.0
      %2681 = vmatmul.mubr.f32.gmra.mxu0 %v1607
      %v2682 = vpop.f32.mrf.mxu0
      %v2683 = vadd.f32 %v2010, %v2682
      %v2684 = vpop.f32.mrf.mxu0
      %2685 = vmatprep.mubr.f32.mxu0 0.0
      %2686 = vmatmul.mubr.f32.gmra.mxu0 %v1608
      %v2687 = vpop.f32.mrf.mxu0
      %v2688 = vadd.f32 %v2010, %v2687
      %v2689 = vpop.f32.mrf.mxu0
      %2690 = vmatprep.mubr.f32.mxu0 0.0
      %2691 = vmatmul.mubr.f32.gmra.mxu0 %v1609
      %v2692 = vpop.f32.mrf.mxu0
      %v2693 = vadd.f32 %v2010, %v2692
      %v2694 = vpop.f32.mrf.mxu0
      %2695 = vmatprep.mubr.f32.mxu0 0.0
      %2696 = vmatmul.mubr.f32.gmra.mxu0 %v1610
      %v2697 = vpop.f32.mrf.mxu0
      %v2698 = vadd.f32 %v2010, %v2697
      %v2699 = vpop.f32.mrf.mxu0
      %2700 = vmatprep.mubr.f32.mxu0 0.0
      %2701 = vmatmul.mubr.f32.gmra.mxu0 %v1611
      %v2702 = vpop.f32.mrf.mxu0
      %v2703 = vadd.f32 %v2010, %v2702
      %v2704 = vpop.f32.mrf.mxu0
      %2705 = vmatprep.mubr.f32.mxu0 0.0
      %2706 = vmatmul.mubr.f32.gmra.mxu0 %v1612
      %v2707 = vpop.f32.mrf.mxu0
      %v2708 = vadd.f32 %v2010, %v2707
      %v2709 = vpop.f32.mrf.mxu0
      %2710 = vmatprep.mubr.f32.mxu0 0.0
      %2711 = vmatmul.mubr.f32.gmra.mxu0 %v1613
      %v2712 = vpop.f32.mrf.mxu0
      %v2713 = vadd.f32 %v2010, %v2712
      %v2714 = vpop.f32.mrf.mxu0
      %2715 = vmatprep.mubr.f32.mxu0 0.0
      %2716 = vmatmul.mubr.f32.gmra.mxu0 %v1614
      %v2717 = vpop.f32.mrf.mxu0
      %v2718 = vadd.f32 %v2010, %v2717
      %v2719 = vpop.f32.mrf.mxu0
      %2720 = vmatprep.mubr.f32.mxu0 0.0
      %2721 = vmatmul.mubr.f32.gmra.mxu0 %v1615
      %v2722 = vpop.f32.mrf.mxu0
      %v2723 = vadd.f32 %v2010, %v2722
      %v2724 = vpop.f32.mrf.mxu0
      %2725 = vmatprep.mubr.f32.mxu0 0.0
      %2726 = vmatmul.mubr.f32.gmra.mxu0 %v1616
      %v2727 = vpop.f32.mrf.mxu0
      %v2728 = vadd.f32 %v2010, %v2727
      %v2729 = vpop.f32.mrf.mxu0
      %2730 = vmatprep.mubr.f32.mxu0 0.0
      %2731 = vmatmul.mubr.f32.gmra.mxu0 %v1617
      %v2732 = vpop.f32.mrf.mxu0
      %v2733 = vadd.f32 %v2010, %v2732
      %v2734 = vpop.f32.mrf.mxu0
      %2735 = vmatprep.mubr.f32.mxu0 0.0
      %2736 = vmatmul.mubr.f32.gmra.mxu0 %v1618
      %v2737 = vpop.f32.mrf.mxu0
      %v2738 = vadd.f32 %v2010, %v2737
      %v2739 = vpop.f32.mrf.mxu0
      %2740 = vmatprep.mubr.f32.mxu0 0.0
      %2741 = vmatmul.mubr.f32.gmra.mxu0 %v1619
      %v2742 = vpop.f32.mrf.mxu0
      %v2743 = vadd.f32 %v2010, %v2742
      %v2744 = vpop.f32.mrf.mxu0
      %2745 = vmatprep.mubr.f32.mxu0 0.0
      %2746 = vmatmul.mubr.f32.gmra.mxu0 %v1620
      %v2747 = vpop.f32.mrf.mxu0
      %v2748 = vadd.f32 %v2010, %v2747
      %v2749 = vpop.f32.mrf.mxu0
      %2750 = vdwg.mxu0
      %v2751 = vtanh.pop %v2593
      %v2752 = vtanh.pop %v2598
      %v2753 = vtanh.pop %v2603
      %v2754 = vtanh.pop %v2608
      %v2755 = vtanh.pop %v2613
      %v2756 = vtanh.pop %v2618
      %v2757 = vtanh.pop %v2623
      %v2758 = vtanh.pop %v2628
      %v2759 = vtanh.pop %v2633
      %v2760 = vtanh.pop %v2638
      %v2761 = vtanh.pop %v2643
      %v2762 = vtanh.pop %v2648
      %v2763 = vtanh.pop %v2653
      %v2764 = vtanh.pop %v2658
      %v2765 = vtanh.pop %v2663
      %v2766 = vtanh.pop %v2668
      %v2767 = vtanh.pop %v2673
      %v2768 = vtanh.pop %v2678
      %v2769 = vtanh.pop %v2683
      %v2770 = vtanh.pop %v2688
      %v2771 = vtanh.pop %v2693
      %v2772 = vtanh.pop %v2698
      %v2773 = vtanh.pop %v2703
      %v2774 = vtanh.pop %v2708
      %v2775 = vtanh.pop %v2713
      %v2776 = vtanh.pop %v2718
      %v2777 = vtanh.pop %v2723
      %v2778 = vtanh.pop %v2728
      %v2779 = vtanh.pop %v2733
      %v2780 = vtanh.pop %v2738
      %v2781 = vtanh.pop %v2743
      %v2782 = vtanh.pop %v2748
      %2783 = vmatprep.subr.mxu0 0.0
      %2784 = vmatpush1.msra.mxu0 %v457
      %2785 = vmatprep.subr.mxu0 0.0
      %2786 = vmatpush1.msra.mxu0 %v456
      %2787 = vmatprep.subr.mxu0 0.0
      %2788 = vmatpush1.msra.mxu0 %v455
      %2789 = vmatprep.subr.mxu0 0.0
      %2790 = vmatpush1.msra.mxu0 %v454
      %2791 = vmatprep.subr.mxu0 0.0
      %2792 = vmatpush1.msra.mxu0 %v453
      %2793 = vmatprep.subr.mxu0 0.0
      %2794 = vmatpush1.msra.mxu0 %v452
      %2795 = vmatprep.subr.mxu0 0.0
      %2796 = vmatpush1.msra.mxu0 %v451
      %2797 = vmatprep.subr.mxu0 0.0
      %2798 = vmatpush1.msra.mxu0 %v450
      %2799 = vmatprep.subr.mxu0 0.0
      %2800 = vmatpush1.msra.mxu0 %v449
      %2801 = vmatprep.subr.mxu0 0.0
      %2802 = vmatpush1.msra.mxu0 %v448
      %2803 = vmatprep.subr.mxu0 0.0
      %2804 = vmatpush1.msra.mxu0 %v447
      %2805 = vmatprep.subr.mxu0 0.0
      %2806 = vmatpush1.msra.mxu0 %v446
      %2807 = vmatprep.subr.mxu0 0.0
      %2808 = vmatpush1.msra.mxu0 %v445
      %2809 = vmatprep.subr.mxu0 0.0
      %2810 = vmatpush1.msra.mxu0 %v444
      %2811 = vmatprep.subr.mxu0 0.0
      %2812 = vmatpush1.msra.mxu0 %v443
      %2813 = vmatprep.subr.mxu0 0.0
      %2814 = vmatpush1.msra.mxu0 %v442
      %2815 = vmatprep.subr.mxu0 0.0
      %2816 = vmatpush2.msra.mxu0 0.0
      %2817 = vmatprep.subr.mxu0 0.0
      %2818 = vmatpush2.msra.mxu0 0.0
      %2819 = vmatprep.subr.mxu0 0.0
      %2820 = vmatpush2.msra.mxu0 0.0
      %2821 = vmatprep.subr.mxu0 0.0
      %2822 = vmatpush2.msra.mxu0 0.0
      %2823 = vmatprep.subr.mxu0 0.0
      %2824 = vmatpush2.msra.mxu0 0.0
      %2825 = vmatprep.subr.mxu0 0.0
      %2826 = vmatpush2.msra.mxu0 0.0
      %2827 = vmatprep.subr.mxu0 0.0
      %2828 = vmatpush2.msra.mxu0 0.0
      %2829 = vmatprep.subr.mxu0 0.0
      %2830 = vmatpush2.msra.mxu0 0.0
      %2831 = vmatprep.subr.mxu0 0.0
      %2832 = vmatpush2.msra.mxu0 0.0
      %2833 = vmatprep.subr.mxu0 0.0
      %2834 = vmatpush2.msra.mxu0 0.0
      %2835 = vmatprep.subr.mxu0 0.0
      %2836 = vmatpush2.msra.mxu0 0.0
      %2837 = vmatprep.subr.mxu0 0.0
      %2838 = vmatpush2.msra.mxu0 0.0
      %2839 = vmatprep.subr.mxu0 0.0
      %2840 = vmatpush2.msra.mxu0 0.0
      %2841 = vmatprep.subr.mxu0 0.0
      %2842 = vmatpush2.msra.mxu0 0.0
      %2843 = vmatprep.subr.mxu0 0.0
      %2844 = vmatpush2.msra.mxu0 0.0
      %2845 = vmatprep.subr.mxu0 0.0
      %2846 = vmatpush2.msra.mxu0 0.0
      %2847 = vmatprep.mubr.f32.mxu0 0.0
      %2848 = vmatmul.mubr.f32.gmra.mxu0 %v1974
      %v2849 = vpop.f32.mrf.mxu0
      %v2850 = vadd.f32 %v2010, %v2849
      %v2851 = vpop.f32.mrf.mxu0
      %2852 = vmatprep.mubr.f32.mxu0 0.0
      %2853 = vmatmul.mubr.f32.gmra.mxu0 %v1975
      %v2854 = vpop.f32.mrf.mxu0
      %v2855 = vadd.f32 %v2010, %v2854
      %v2856 = vpop.f32.mrf.mxu0
      %2857 = vmatprep.mubr.f32.mxu0 0.0
      %2858 = vmatmul.mubr.f32.gmra.mxu0 %v1976
      %v2859 = vpop.f32.mrf.mxu0
      %v2860 = vadd.f32 %v2010, %v2859
      %v2861 = vpop.f32.mrf.mxu0
      %2862 = vmatprep.mubr.f32.mxu0 0.0
      %2863 = vmatmul.mubr.f32.gmra.mxu0 %v1977
      %v2864 = vpop.f32.mrf.mxu0
      %v2865 = vadd.f32 %v2010, %v2864
      %v2866 = vpop.f32.mrf.mxu0
      %2867 = vmatprep.mubr.f32.mxu0 0.0
      %2868 = vmatmul.mubr.f32.gmra.mxu0 %v1978
      %v2869 = vpop.f32.mrf.mxu0
      %v2870 = vadd.f32 %v2010, %v2869
      %v2871 = vpop.f32.mrf.mxu0
      %2872 = vmatprep.mubr.f32.mxu0 0.0
      %2873 = vmatmul.mubr.f32.gmra.mxu0 %v1979
      %v2874 = vpop.f32.mrf.mxu0
      %v2875 = vadd.f32 %v2010, %v2874
      %v2876 = vpop.f32.mrf.mxu0
      %2877 = vmatprep.mubr.f32.mxu0 0.0
      %2878 = vmatmul.mubr.f32.gmra.mxu0 %v1980
      %v2879 = vpop.f32.mrf.mxu0
      %v2880 = vadd.f32 %v2010, %v2879
      %v2881 = vpop.f32.mrf.mxu0
      %2882 = vmatprep.mubr.f32.mxu0 0.0
      %2883 = vmatmul.mubr.f32.gmra.mxu0 %v1981
      %v2884 = vpop.f32.mrf.mxu0
      %v2885 = vadd.f32 %v2010, %v2884
      %v2886 = vpop.f32.mrf.mxu0
      %2887 = vmatprep.mubr.f32.mxu0 0.0
      %2888 = vmatmul.mubr.f32.gmra.mxu0 %v1982
      %v2889 = vpop.f32.mrf.mxu0
      %v2890 = vadd.f32 %v2010, %v2889
      %v2891 = vpop.f32.mrf.mxu0
      %2892 = vmatprep.mubr.f32.mxu0 0.0
      %2893 = vmatmul.mubr.f32.gmra.mxu0 %v1983
      %v2894 = vpop.f32.mrf.mxu0
      %v2895 = vadd.f32 %v2010, %v2894
      %v2896 = vpop.f32.mrf.mxu0
      %2897 = vmatprep.mubr.f32.mxu0 0.0
      %2898 = vmatmul.mubr.f32.gmra.mxu0 %v1984
      %v2899 = vpop.f32.mrf.mxu0
      %v2900 = vadd.f32 %v2010, %v2899
      %v2901 = vpop.f32.mrf.mxu0
      %2902 = vmatprep.mubr.f32.mxu0 0.0
      %2903 = vmatmul.mubr.f32.gmra.mxu0 %v1985
      %v2904 = vpop.f32.mrf.mxu0
      %v2905 = vadd.f32 %v2010, %v2904
      %v2906 = vpop.f32.mrf.mxu0
      %2907 = vmatprep.mubr.f32.mxu0 0.0
      %2908 = vmatmul.mubr.f32.gmra.mxu0 %v1986
      %v2909 = vpop.f32.mrf.mxu0
      %v2910 = vadd.f32 %v2010, %v2909
      %v2911 = vpop.f32.mrf.mxu0
      %2912 = vmatprep.mubr.f32.mxu0 0.0
      %2913 = vmatmul.mubr.f32.gmra.mxu0 %v1987
      %v2914 = vpop.f32.mrf.mxu0
      %v2915 = vadd.f32 %v2010, %v2914
      %v2916 = vpop.f32.mrf.mxu0
      %2917 = vmatprep.mubr.f32.mxu0 0.0
      %2918 = vmatmul.mubr.f32.gmra.mxu0 %v1988
      %v2919 = vpop.f32.mrf.mxu0
      %v2920 = vadd.f32 %v2010, %v2919
      %v2921 = vpop.f32.mrf.mxu0
      %2922 = vmatprep.mubr.f32.mxu0 0.0
      %2923 = vmatmul.mubr.f32.gmra.mxu0 %v1989
      %v2924 = vpop.f32.mrf.mxu0
      %v2925 = vadd.f32 %v2010, %v2924
      %v2926 = vpop.f32.mrf.mxu0
      %2927 = vmatprep.mubr.f32.mxu0 0.0
      %2928 = vmatmul.mubr.f32.gmra.mxu0 %v1990
      %v2929 = vpop.f32.mrf.mxu0
      %v2930 = vadd.f32 %v2010, %v2929
      %v2931 = vpop.f32.mrf.mxu0
      %2932 = vmatprep.mubr.f32.mxu0 0.0
      %2933 = vmatmul.mubr.f32.gmra.mxu0 %v1991
      %v2934 = vpop.f32.mrf.mxu0
      %v2935 = vadd.f32 %v2010, %v2934
      %v2936 = vpop.f32.mrf.mxu0
      %2937 = vmatprep.mubr.f32.mxu0 0.0
      %2938 = vmatmul.mubr.f32.gmra.mxu0 %v1992
      %v2939 = vpop.f32.mrf.mxu0
      %v2940 = vadd.f32 %v2010, %v2939
      %v2941 = vpop.f32.mrf.mxu0
      %2942 = vmatprep.mubr.f32.mxu0 0.0
      %2943 = vmatmul.mubr.f32.gmra.mxu0 %v1993
      %v2944 = vpop.f32.mrf.mxu0
      %v2945 = vadd.f32 %v2010, %v2944
      %v2946 = vpop.f32.mrf.mxu0
      %2947 = vmatprep.mubr.f32.mxu0 0.0
      %2948 = vmatmul.mubr.f32.gmra.mxu0 %v1994
      %v2949 = vpop.f32.mrf.mxu0
      %v2950 = vadd.f32 %v2010, %v2949
      %v2951 = vpop.f32.mrf.mxu0
      %2952 = vmatprep.mubr.f32.mxu0 0.0
      %2953 = vmatmul.mubr.f32.gmra.mxu0 %v1995
      %v2954 = vpop.f32.mrf.mxu0
      %v2955 = vadd.f32 %v2010, %v2954
      %v2956 = vpop.f32.mrf.mxu0
      %2957 = vmatprep.mubr.f32.mxu0 0.0
      %2958 = vmatmul.mubr.f32.gmra.mxu0 %v1996
      %v2959 = vpop.f32.mrf.mxu0
      %v2960 = vadd.f32 %v2010, %v2959
      %v2961 = vpop.f32.mrf.mxu0
      %2962 = vmatprep.mubr.f32.mxu0 0.0
      %2963 = vmatmul.mubr.f32.gmra.mxu0 %v1997
      %v2964 = vpop.f32.mrf.mxu0
      %v2965 = vadd.f32 %v2010, %v2964
      %v2966 = vpop.f32.mrf.mxu0
      %2967 = vmatprep.mubr.f32.mxu0 0.0
      %2968 = vmatmul.mubr.f32.gmra.mxu0 %v1998
      %v2969 = vpop.f32.mrf.mxu0
      %v2970 = vadd.f32 %v2010, %v2969
      %v2971 = vpop.f32.mrf.mxu0
      %2972 = vmatprep.mubr.f32.mxu0 0.0
      %2973 = vmatmul.mubr.f32.gmra.mxu0 %v1999
      %v2974 = vpop.f32.mrf.mxu0
      %v2975 = vadd.f32 %v2010, %v2974
      %v2976 = vpop.f32.mrf.mxu0
      %2977 = vmatprep.mubr.f32.mxu0 0.0
      %2978 = vmatmul.mubr.f32.gmra.mxu0 %v2000
      %v2979 = vpop.f32.mrf.mxu0
      %v2980 = vadd.f32 %v2010, %v2979
      %v2981 = vpop.f32.mrf.mxu0
      %2982 = vmatprep.mubr.f32.mxu0 0.0
      %2983 = vmatmul.mubr.f32.gmra.mxu0 %v2001
      %v2984 = vpop.f32.mrf.mxu0
      %v2985 = vadd.f32 %v2010, %v2984
      %v2986 = vpop.f32.mrf.mxu0
      %2987 = vmatprep.mubr.f32.mxu0 0.0
      %2988 = vmatmul.mubr.f32.gmra.mxu0 %v2002
      %v2989 = vpop.f32.mrf.mxu0
      %v2990 = vadd.f32 %v2010, %v2989
      %v2991 = vpop.f32.mrf.mxu0
      %2992 = vmatprep.mubr.f32.mxu0 0.0
      %2993 = vmatmul.mubr.f32.gmra.mxu0 %v2003
      %v2994 = vpop.f32.mrf.mxu0
      %v2995 = vadd.f32 %v2010, %v2994
      %v2996 = vpop.f32.mrf.mxu0
      %2997 = vmatprep.mubr.f32.mxu0 0.0
      %2998 = vmatmul.mubr.f32.gmra.mxu0 %v2004
      %v2999 = vpop.f32.mrf.mxu0
      %v3000 = vadd.f32 %v2010, %v2999
      %v3001 = vpop.f32.mrf.mxu0
      %3002 = vmatprep.mubr.f32.mxu0 0.0
      %3003 = vmatmul.mubr.f32.gmra.mxu0 %v2005
      %v3004 = vpop.f32.mrf.mxu0
      %v3005 = vadd.f32 %v2010, %v3004
      %v3006 = vpop.f32.mrf.mxu0
      %3007 = vdwg.mxu0
      %v3008 = vtanh.pop %v2850
      %v3009 = vtanh.pop %v2855
      %v3010 = vtanh.pop %v2860
      %v3011 = vtanh.pop %v2865
      %v3012 = vtanh.pop %v2870
      %v3013 = vtanh.pop %v2875
      %v3014 = vtanh.pop %v2880
      %v3015 = vtanh.pop %v2885
      %v3016 = vtanh.pop %v2890
      %v3017 = vtanh.pop %v2895
      %v3018 = vtanh.pop %v2900
      %v3019 = vtanh.pop %v2905
      %v3020 = vtanh.pop %v2910
      %v3021 = vtanh.pop %v2915
      %v3022 = vtanh.pop %v2920
      %v3023 = vtanh.pop %v2925
      %v3024 = vtanh.pop %v2930
      %v3025 = vtanh.pop %v2935
      %v3026 = vtanh.pop %v2940
      %v3027 = vtanh.pop %v2945
      %v3028 = vtanh.pop %v2950
      %v3029 = vtanh.pop %v2955
      %v3030 = vtanh.pop %v2960
      %v3031 = vtanh.pop %v2965
      %v3032 = vtanh.pop %v2970
      %v3033 = vtanh.pop %v2975
      %v3034 = vtanh.pop %v2980
      %v3035 = vtanh.pop %v2985
      %v3036 = vtanh.pop %v2990
      %v3037 = vtanh.pop %v2995
      %v3038 = vtanh.pop %v3000
      %v3039 = vtanh.pop %v3005
      %v3040 = vpack.c.bf16 %v820, %v819
      %v3041 = vpack.c.bf16 %v822, %v821
      %v3042 = vpack.c.bf16 %v824, %v823
      %v3043 = vpack.c.bf16 %v826, %v825
      %v3044 = vpack.c.bf16 %v828, %v827
      %v3045 = vpack.c.bf16 %v830, %v829
      %v3046 = vpack.c.bf16 %v832, %v831
      %v3047 = vpack.c.bf16 %v834, %v833
      %v3048 = vpack.c.bf16 %v836, %v835
      %v3049 = vpack.c.bf16 %v838, %v837
      %v3050 = vpack.c.bf16 %v840, %v839
      %v3051 = vpack.c.bf16 %v842, %v841
      %v3052 = vpack.c.bf16 %v844, %v843
      %v3053 = vpack.c.bf16 %v846, %v845
      %v3054 = vpack.c.bf16 %v848, %v847
      %v3055 = vpack.c.bf16 %v850, %v849
      %v3072 = vunpack.c.l.b16 %v3040
      %v3073 = vunpack.c.h.b16 %v3040
      %v3074 = vunpack.c.l.b16 %v3041
      %v3075 = vunpack.c.h.b16 %v3041
      %v3076 = vunpack.c.l.b16 %v3042
      %v3077 = vunpack.c.h.b16 %v3042
      %v3078 = vunpack.c.l.b16 %v3043
      %v3079 = vunpack.c.h.b16 %v3043
      %v3080 = vunpack.c.l.b16 %v3044
      %v3081 = vunpack.c.h.b16 %v3044
      %v3082 = vunpack.c.l.b16 %v3045
      %v3083 = vunpack.c.h.b16 %v3045
      %v3084 = vunpack.c.l.b16 %v3046
      %v3085 = vunpack.c.h.b16 %v3046
      %v3086 = vunpack.c.l.b16 %v3047
      %v3087 = vunpack.c.h.b16 %v3047
      %v3088 = vunpack.c.l.b16 %v3048
      %v3089 = vunpack.c.h.b16 %v3048
      %v3090 = vunpack.c.l.b16 %v3049
      %v3091 = vunpack.c.h.b16 %v3049
      %v3092 = vunpack.c.l.b16 %v3050
      %v3093 = vunpack.c.h.b16 %v3050
      %v3094 = vunpack.c.l.b16 %v3051
      %v3095 = vunpack.c.h.b16 %v3051
      %v3096 = vunpack.c.l.b16 %v3052
      %v3097 = vunpack.c.h.b16 %v3052
      %v3098 = vunpack.c.l.b16 %v3053
      %v3099 = vunpack.c.h.b16 %v3053
      %v3100 = vunpack.c.l.b16 %v3054
      %v3101 = vunpack.c.h.b16 %v3054
      %v3102 = vunpack.c.l.b16 %v3055
      %v3103 = vunpack.c.h.b16 %v3055
      %v3104 = vpack.c.b16 %v3072, %v3072
      %v3105 = vpack.c.b16 %v3073, %v3073
      %v3106 = vpack.c.b16 %v3074, %v3074
      %v3107 = vpack.c.b16 %v3075, %v3075
      %v3108 = vpack.c.b16 %v3076, %v3076
      %v3109 = vpack.c.b16 %v3077, %v3077
      %v3110 = vpack.c.b16 %v3078, %v3078
      %v3111 = vpack.c.b16 %v3079, %v3079
      %v3112 = vpack.c.b16 %v3080, %v3080
      %v3113 = vpack.c.b16 %v3081, %v3081
      %v3114 = vpack.c.b16 %v3082, %v3082
      %v3115 = vpack.c.b16 %v3083, %v3083
      %v3116 = vpack.c.b16 %v3084, %v3084
      %v3117 = vpack.c.b16 %v3085, %v3085
      %v3118 = vpack.c.b16 %v3086, %v3086
      %v3119 = vpack.c.b16 %v3087, %v3087
      %v3120 = vpack.c.b16 %v3088, %v3088
      %v3121 = vpack.c.b16 %v3089, %v3089
      %v3122 = vpack.c.b16 %v3090, %v3090
      %v3123 = vpack.c.b16 %v3091, %v3091
      %v3124 = vpack.c.b16 %v3092, %v3092
      %v3125 = vpack.c.b16 %v3093, %v3093
      %v3126 = vpack.c.b16 %v3094, %v3094
      %v3127 = vpack.c.b16 %v3095, %v3095
      %v3128 = vpack.c.b16 %v3096, %v3096
      %v3129 = vpack.c.b16 %v3097, %v3097
      %v3130 = vpack.c.b16 %v3098, %v3098
      %v3131 = vpack.c.b16 %v3099, %v3099
      %v3132 = vpack.c.b16 %v3100, %v3100
      %v3133 = vpack.c.b16 %v3101, %v3101
      %v3134 = vpack.c.b16 %v3102, %v3102
      %v3135 = vpack.c.b16 %v3103, %v3103
      %3168 = vst [vmem:[%s432] sm:$0xf] %v3104
      %3169 = vst [vmem:[%s432 + $0x4] sm:$0xf] %v3105
      %3170 = vst [vmem:[%s432 + $0x8] sm:$0xf] %v3106
      %3171 = vst [vmem:[%s432 + $0xc] sm:$0xf] %v3107
      %3172 = vst [vmem:[%s432 + $0x10] sm:$0xf] %v3108
      %3173 = vst [vmem:[%s432 + $0x14] sm:$0xf] %v3109
      %3174 = vst [vmem:[%s432 + $0x18] sm:$0xf] %v3110
      %3175 = vst [vmem:[%s432 + $0x1c] sm:$0xf] %v3111
      %3176 = vst [vmem:[%s432 + $0x20] sm:$0xf] %v3112
      %3177 = vst [vmem:[%s432 + $0x24] sm:$0xf] %v3113
      %3178 = vst [vmem:[%s432 + $0x28] sm:$0xf] %v3114
      %3179 = vst [vmem:[%s432 + $0x2c] sm:$0xf] %v3115
      %3180 = vst [vmem:[%s432 + $0x30] sm:$0xf] %v3116
      %3181 = vst [vmem:[%s432 + $0x34] sm:$0xf] %v3117
      %3182 = vst [vmem:[%s432 + $0x38] sm:$0xf] %v3118
      %3183 = vst [vmem:[%s432 + $0x3c] sm:$0xf] %v3119
      %3184 = vst [vmem:[%s432 + $0x40] sm:$0xf] %v3120
      %3185 = vst [vmem:[%s432 + $0x44] sm:$0xf] %v3121
      %3186 = vst [vmem:[%s432 + $0x48] sm:$0xf] %v3122
      %3187 = vst [vmem:[%s432 + $0x4c] sm:$0xf] %v3123
      %3188 = vst [vmem:[%s432 + $0x50] sm:$0xf] %v3124
      %3189 = vst [vmem:[%s432 + $0x54] sm:$0xf] %v3125
      %3190 = vst [vmem:[%s432 + $0x58] sm:$0xf] %v3126
      %3191 = vst [vmem:[%s432 + $0x5c] sm:$0xf] %v3127
      %3192 = vst [vmem:[%s432 + $0x60] sm:$0xf] %v3128
      %3193 = vst [vmem:[%s432 + $0x64] sm:$0xf] %v3129
      %3194 = vst [vmem:[%s432 + $0x68] sm:$0xf] %v3130
      %3195 = vst [vmem:[%s432 + $0x6c] sm:$0xf] %v3131
      %3196 = vst [vmem:[%s432 + $0x70] sm:$0xf] %v3132
      %3197 = vst [vmem:[%s432 + $0x74] sm:$0xf] %v3133
      %3198 = vst [vmem:[%s432 + $0x78] sm:$0xf] %v3134
      %3199 = vst [vmem:[%s432 + $0x7c] sm:$0xf] %v3135
      %v3200 = vpack.c.bf16 %v1205, %v1204
      %v3201 = vpack.c.bf16 %v1207, %v1206
      %v3202 = vpack.c.bf16 %v1209, %v1208
      %v3203 = vpack.c.bf16 %v1211, %v1210
      %v3204 = vpack.c.bf16 %v1213, %v1212
      %v3205 = vpack.c.bf16 %v1215, %v1214
      %v3206 = vpack.c.bf16 %v1217, %v1216
      %v3207 = vpack.c.bf16 %v1219, %v1218
      %v3208 = vpack.c.bf16 %v1221, %v1220
      %v3209 = vpack.c.bf16 %v1223, %v1222
      %v3210 = vpack.c.bf16 %v1225, %v1224
      %v3211 = vpack.c.bf16 %v1227, %v1226
      %v3212 = vpack.c.bf16 %v1229, %v1228
      %v3213 = vpack.c.bf16 %v1231, %v1230
      %v3214 = vpack.c.bf16 %v1233, %v1232
      %v3215 = vpack.c.bf16 %v1235, %v1234
      %v3232 = vunpack.c.l.b16 %v3200
      %v3233 = vunpack.c.h.b16 %v3200
      %v3234 = vunpack.c.l.b16 %v3201
      %v3235 = vunpack.c.h.b16 %v3201
      %v3236 = vunpack.c.l.b16 %v3202
      %v3237 = vunpack.c.h.b16 %v3202
      %v3238 = vunpack.c.l.b16 %v3203
      %v3239 = vunpack.c.h.b16 %v3203
      %v3240 = vunpack.c.l.b16 %v3204
      %v3241 = vunpack.c.h.b16 %v3204
      %v3242 = vunpack.c.l.b16 %v3205
      %v3243 = vunpack.c.h.b16 %v3205
      %v3244 = vunpack.c.l.b16 %v3206
      %v3245 = vunpack.c.h.b16 %v3206
      %v3246 = vunpack.c.l.b16 %v3207
      %v3247 = vunpack.c.h.b16 %v3207
      %v3248 = vunpack.c.l.b16 %v3208
      %v3249 = vunpack.c.h.b16 %v3208
      %v3250 = vunpack.c.l.b16 %v3209
      %v3251 = vunpack.c.h.b16 %v3209
      %v3252 = vunpack.c.l.b16 %v3210
      %v3253 = vunpack.c.h.b16 %v3210
      %v3254 = vunpack.c.l.b16 %v3211
      %v3255 = vunpack.c.h.b16 %v3211
      %v3256 = vunpack.c.l.b16 %v3212
      %v3257 = vunpack.c.h.b16 %v3212
      %v3258 = vunpack.c.l.b16 %v3213
      %v3259 = vunpack.c.h.b16 %v3213
      %v3260 = vunpack.c.l.b16 %v3214
      %v3261 = vunpack.c.h.b16 %v3214
      %v3262 = vunpack.c.l.b16 %v3215
      %v3263 = vunpack.c.h.b16 %v3215
      %v3264 = vpack.c.b16 %v3232, %v3232
      %v3265 = vpack.c.b16 %v3233, %v3233
      %v3266 = vpack.c.b16 %v3234, %v3234
      %v3267 = vpack.c.b16 %v3235, %v3235
      %v3268 = vpack.c.b16 %v3236, %v3236
      %v3269 = vpack.c.b16 %v3237, %v3237
      %v3270 = vpack.c.b16 %v3238, %v3238
      %v3271 = vpack.c.b16 %v3239, %v3239
      %v3272 = vpack.c.b16 %v3240, %v3240
      %v3273 = vpack.c.b16 %v3241, %v3241
      %v3274 = vpack.c.b16 %v3242, %v3242
      %v3275 = vpack.c.b16 %v3243, %v3243
      %v3276 = vpack.c.b16 %v3244, %v3244
      %v3277 = vpack.c.b16 %v3245, %v3245
      %v3278 = vpack.c.b16 %v3246, %v3246
      %v3279 = vpack.c.b16 %v3247, %v3247
      %v3280 = vpack.c.b16 %v3248, %v3248
      %v3281 = vpack.c.b16 %v3249, %v3249
      %v3282 = vpack.c.b16 %v3250, %v3250
      %v3283 = vpack.c.b16 %v3251, %v3251
      %v3284 = vpack.c.b16 %v3252, %v3252
      %v3285 = vpack.c.b16 %v3253, %v3253
      %v3286 = vpack.c.b16 %v3254, %v3254
      %v3287 = vpack.c.b16 %v3255, %v3255
      %v3288 = vpack.c.b16 %v3256, %v3256
      %v3289 = vpack.c.b16 %v3257, %v3257
      %v3290 = vpack.c.b16 %v3258, %v3258
      %v3291 = vpack.c.b16 %v3259, %v3259
      %v3292 = vpack.c.b16 %v3260, %v3260
      %v3293 = vpack.c.b16 %v3261, %v3261
      %v3294 = vpack.c.b16 %v3262, %v3262
      %v3295 = vpack.c.b16 %v3263, %v3263
      %3328 = vst [vmem:[%s438] sm:$0xf] %v3264
      %3329 = vst [vmem:[%s438 + $0x4] sm:$0xf] %v3265
      %3330 = vst [vmem:[%s438 + $0x8] sm:$0xf] %v3266
      %3331 = vst [vmem:[%s438 + $0xc] sm:$0xf] %v3267
      %3332 = vst [vmem:[%s438 + $0x10] sm:$0xf] %v3268
      %3333 = vst [vmem:[%s438 + $0x14] sm:$0xf] %v3269
      %3334 = vst [vmem:[%s438 + $0x18] sm:$0xf] %v3270
      %3335 = vst [vmem:[%s438 + $0x1c] sm:$0xf] %v3271
      %3336 = vst [vmem:[%s438 + $0x20] sm:$0xf] %v3272
      %3337 = vst [vmem:[%s438 + $0x24] sm:$0xf] %v3273
      %3338 = vst [vmem:[%s438 + $0x28] sm:$0xf] %v3274
      %3339 = vst [vmem:[%s438 + $0x2c] sm:$0xf] %v3275
      %3340 = vst [vmem:[%s438 + $0x30] sm:$0xf] %v3276
      %3341 = vst [vmem:[%s438 + $0x34] sm:$0xf] %v3277
      %3342 = vst [vmem:[%s438 + $0x38] sm:$0xf] %v3278
      %3343 = vst [vmem:[%s438 + $0x3c] sm:$0xf] %v3279
      %3344 = vst [vmem:[%s438 + $0x40] sm:$0xf] %v3280
      %3345 = vst [vmem:[%s438 + $0x44] sm:$0xf] %v3281
      %3346 = vst [vmem:[%s438 + $0x48] sm:$0xf] %v3282
      %3347 = vst [vmem:[%s438 + $0x4c] sm:$0xf] %v3283
      %3348 = vst [vmem:[%s438 + $0x50] sm:$0xf] %v3284
      %3349 = vst [vmem:[%s438 + $0x54] sm:$0xf] %v3285
      %3350 = vst [vmem:[%s438 + $0x58] sm:$0xf] %v3286
      %3351 = vst [vmem:[%s438 + $0x5c] sm:$0xf] %v3287
      %3352 = vst [vmem:[%s438 + $0x60] sm:$0xf] %v3288
      %3353 = vst [vmem:[%s438 + $0x64] sm:$0xf] %v3289
      %3354 = vst [vmem:[%s438 + $0x68] sm:$0xf] %v3290
      %3355 = vst [vmem:[%s438 + $0x6c] sm:$0xf] %v3291
      %3356 = vst [vmem:[%s438 + $0x70] sm:$0xf] %v3292
      %3357 = vst [vmem:[%s438 + $0x74] sm:$0xf] %v3293
      %3358 = vst [vmem:[%s438 + $0x78] sm:$0xf] %v3294
      %3359 = vst [vmem:[%s438 + $0x7c] sm:$0xf] %v3295
      %v3360 = vsub.f32 %v1589, %v2237
      %v3361 = vsub.f32 %v1590, %v2238
      %v3362 = vsub.f32 %v1591, %v2239
      %v3363 = vsub.f32 %v1592, %v2240
      %v3364 = vsub.f32 %v1593, %v2241
      %v3365 = vsub.f32 %v1594, %v2242
      %v3366 = vsub.f32 %v1595, %v2243
      %v3367 = vsub.f32 %v1596, %v2244
      %v3368 = vsub.f32 %v1597, %v2245
      %v3369 = vsub.f32 %v1598, %v2246
      %v3370 = vsub.f32 %v1599, %v2247
      %v3371 = vsub.f32 %v1600, %v2248
      %v3372 = vsub.f32 %v1601, %v2249
      %v3373 = vsub.f32 %v1602, %v2250
      %v3374 = vsub.f32 %v1603, %v2251
      %v3375 = vsub.f32 %v1604, %v2252
      %v3376 = vsub.f32 %v1605, %v2253
      %v3377 = vsub.f32 %v1606, %v2254
      %v3378 = vsub.f32 %v1607, %v2255
      %v3379 = vsub.f32 %v1608, %v2256
      %v3380 = vsub.f32 %v1609, %v2257
      %v3381 = vsub.f32 %v1610, %v2258
      %v3382 = vsub.f32 %v1611, %v2259
      %v3383 = vsub.f32 %v1612, %v2260
      %v3384 = vsub.f32 %v1613, %v2261
      %v3385 = vsub.f32 %v1614, %v2262
      %v3386 = vsub.f32 %v1615, %v2263
      %v3387 = vsub.f32 %v1616, %v2264
      %v3388 = vsub.f32 %v1617, %v2265
      %v3389 = vsub.f32 %v1618, %v2266
      %v3390 = vsub.f32 %v1619, %v2267
      %v3391 = vsub.f32 %v1620, %v2268
      %v3392 = vand.u32 2147483647, %v3360
      %v3393 = vand.u32 2147483647, %v3361
      %v3394 = vand.u32 2147483647, %v3362
      %v3395 = vand.u32 2147483647, %v3363
      %v3396 = vand.u32 2147483647, %v3364
      %v3397 = vand.u32 2147483647, %v3365
      %v3398 = vand.u32 2147483647, %v3366
      %v3399 = vand.u32 2147483647, %v3367
      %v3400 = vand.u32 2147483647, %v3368
      %v3401 = vand.u32 2147483647, %v3369
      %v3402 = vand.u32 2147483647, %v3370
      %v3403 = vand.u32 2147483647, %v3371
      %v3404 = vand.u32 2147483647, %v3372
      %v3405 = vand.u32 2147483647, %v3373
      %v3406 = vand.u32 2147483647, %v3374
      %v3407 = vand.u32 2147483647, %v3375
      %v3408 = vand.u32 2147483647, %v3376
      %v3409 = vand.u32 2147483647, %v3377
      %v3410 = vand.u32 2147483647, %v3378
      %v3411 = vand.u32 2147483647, %v3379
      %v3412 = vand.u32 2147483647, %v3380
      %v3413 = vand.u32 2147483647, %v3381
      %v3414 = vand.u32 2147483647, %v3382
      %v3415 = vand.u32 2147483647, %v3383
      %v3416 = vand.u32 2147483647, %v3384
      %v3417 = vand.u32 2147483647, %v3385
      %v3418 = vand.u32 2147483647, %v3386
      %v3419 = vand.u32 2147483647, %v3387
      %v3420 = vand.u32 2147483647, %v3388
      %v3421 = vand.u32 2147483647, %v3389
      %v3422 = vand.u32 2147483647, %v3390
      %v3423 = vand.u32 2147483647, %v3391
      %v3424 = vsub.f32 %v1974, %v2494
      %v3425 = vsub.f32 %v1975, %v2495
      %v3426 = vsub.f32 %v1976, %v2496
      %v3427 = vsub.f32 %v1977, %v2497
      %v3428 = vsub.f32 %v1978, %v2498
      %v3429 = vsub.f32 %v1979, %v2499
      %v3430 = vsub.f32 %v1980, %v2500
      %v3431 = vsub.f32 %v1981, %v2501
      %v3432 = vsub.f32 %v1982, %v2502
      %v3433 = vsub.f32 %v1983, %v2503
      %v3434 = vsub.f32 %v1984, %v2504
      %v3435 = vsub.f32 %v1985, %v2505
      %v3436 = vsub.f32 %v1986, %v2506
      %v3437 = vsub.f32 %v1987, %v2507
      %v3438 = vsub.f32 %v1988, %v2508
      %v3439 = vsub.f32 %v1989, %v2509
      %v3440 = vsub.f32 %v1990, %v2510
      %v3441 = vsub.f32 %v1991, %v2511
      %v3442 = vsub.f32 %v1992, %v2512
      %v3443 = vsub.f32 %v1993, %v2513
      %v3444 = vsub.f32 %v1994, %v2514
      %v3445 = vsub.f32 %v1995, %v2515
      %v3446 = vsub.f32 %v1996, %v2516
      %v3447 = vsub.f32 %v1997, %v2517
      %v3448 = vsub.f32 %v1998, %v2518
      %v3449 = vsub.f32 %v1999, %v2519
      %v3450 = vsub.f32 %v2000, %v2520
      %v3451 = vsub.f32 %v2001, %v2521
      %v3452 = vsub.f32 %v2002, %v2522
      %v3453 = vsub.f32 %v2003, %v2523
      %v3454 = vsub.f32 %v2004, %v2524
      %v3455 = vsub.f32 %v2005, %v2525
      %v3456 = vand.u32 2147483647, %v3424
      %v3457 = vand.u32 2147483647, %v3425
      %v3458 = vand.u32 2147483647, %v3426
      %v3459 = vand.u32 2147483647, %v3427
      %v3460 = vand.u32 2147483647, %v3428
      %v3461 = vand.u32 2147483647, %v3429
      %v3462 = vand.u32 2147483647, %v3430
      %v3463 = vand.u32 2147483647, %v3431
      %v3464 = vand.u32 2147483647, %v3432
      %v3465 = vand.u32 2147483647, %v3433
      %v3466 = vand.u32 2147483647, %v3434
      %v3467 = vand.u32 2147483647, %v3435
      %v3468 = vand.u32 2147483647, %v3436
      %v3469 = vand.u32 2147483647, %v3437
      %v3470 = vand.u32 2147483647, %v3438
      %v3471 = vand.u32 2147483647, %v3439
      %v3472 = vand.u32 2147483647, %v3440
      %v3473 = vand.u32 2147483647, %v3441
      %v3474 = vand.u32 2147483647, %v3442
      %v3475 = vand.u32 2147483647, %v3443
      %v3476 = vand.u32 2147483647, %v3444
      %v3477 = vand.u32 2147483647, %v3445
      %v3478 = vand.u32 2147483647, %v3446
      %v3479 = vand.u32 2147483647, %v3447
      %v3480 = vand.u32 2147483647, %v3448
      %v3481 = vand.u32 2147483647, %v3449
      %v3482 = vand.u32 2147483647, %v3450
      %v3483 = vand.u32 2147483647, %v3451
      %v3484 = vand.u32 2147483647, %v3452
      %v3485 = vand.u32 2147483647, %v3453
      %v3486 = vand.u32 2147483647, %v3454
      %v3487 = vand.u32 2147483647, %v3455
      %v3488 = vadd.f32 %v3392, %v3456
      %v3489 = vadd.f32 %v3393, %v3457
      %v3490 = vadd.f32 %v3394, %v3458
      %v3491 = vadd.f32 %v3395, %v3459
      %v3492 = vadd.f32 %v3396, %v3460
      %v3493 = vadd.f32 %v3397, %v3461
      %v3494 = vadd.f32 %v3398, %v3462
      %v3495 = vadd.f32 %v3399, %v3463
      %v3496 = vadd.f32 %v3400, %v3464
      %v3497 = vadd.f32 %v3401, %v3465
      %v3498 = vadd.f32 %v3402, %v3466
      %v3499 = vadd.f32 %v3403, %v3467
      %v3500 = vadd.f32 %v3404, %v3468
      %v3501 = vadd.f32 %v3405, %v3469
      %v3502 = vadd.f32 %v3406, %v3470
      %v3503 = vadd.f32 %v3407, %v3471
      %v3504 = vadd.f32 %v3408, %v3472
      %v3505 = vadd.f32 %v3409, %v3473
      %v3506 = vadd.f32 %v3410, %v3474
      %v3507 = vadd.f32 %v3411, %v3475
      %v3508 = vadd.f32 %v3412, %v3476
      %v3509 = vadd.f32 %v3413, %v3477
      %v3510 = vadd.f32 %v3414, %v3478
      %v3511 = vadd.f32 %v3415, %v3479
      %v3512 = vadd.f32 %v3416, %v3480
      %v3513 = vadd.f32 %v3417, %v3481
      %v3514 = vadd.f32 %v3418, %v3482
      %v3515 = vadd.f32 %v3419, %v3483
      %v3516 = vadd.f32 %v3420, %v3484
      %v3517 = vadd.f32 %v3421, %v3485
      %v3518 = vadd.f32 %v3422, %v3486
      %v3519 = vadd.f32 %v3423, %v3487
      %v3520 = vsub.f32 %v2751, %v819
      %v3521 = vsub.f32 %v2752, %v820
      %v3522 = vsub.f32 %v2753, %v821
      %v3523 = vsub.f32 %v2754, %v822
      %v3524 = vsub.f32 %v2755, %v823
      %v3525 = vsub.f32 %v2756, %v824
      %v3526 = vsub.f32 %v2757, %v825
      %v3527 = vsub.f32 %v2758, %v826
      %v3528 = vsub.f32 %v2759, %v827
      %v3529 = vsub.f32 %v2760, %v828
      %v3530 = vsub.f32 %v2761, %v829
      %v3531 = vsub.f32 %v2762, %v830
      %v3532 = vsub.f32 %v2763, %v831
      %v3533 = vsub.f32 %v2764, %v832
      %v3534 = vsub.f32 %v2765, %v833
      %v3535 = vsub.f32 %v2766, %v834
      %v3536 = vsub.f32 %v2767, %v835
      %v3537 = vsub.f32 %v2768, %v836
      %v3538 = vsub.f32 %v2769, %v837
      %v3539 = vsub.f32 %v2770, %v838
      %v3540 = vsub.f32 %v2771, %v839
      %v3541 = vsub.f32 %v2772, %v840
      %v3542 = vsub.f32 %v2773, %v841
      %v3543 = vsub.f32 %v2774, %v842
      %v3544 = vsub.f32 %v2775, %v843
      %v3545 = vsub.f32 %v2776, %v844
      %v3546 = vsub.f32 %v2777, %v845
      %v3547 = vsub.f32 %v2778, %v846
      %v3548 = vsub.f32 %v2779, %v847
      %v3549 = vsub.f32 %v2780, %v848
      %v3550 = vsub.f32 %v2781, %v849
      %v3551 = vsub.f32 %v2782, %v850
      %v3552 = vand.u32 2147483647, %v3520
      %v3553 = vand.u32 2147483647, %v3521
      %v3554 = vand.u32 2147483647, %v3522
      %v3555 = vand.u32 2147483647, %v3523
      %v3556 = vand.u32 2147483647, %v3524
      %v3557 = vand.u32 2147483647, %v3525
      %v3558 = vand.u32 2147483647, %v3526
      %v3559 = vand.u32 2147483647, %v3527
      %v3560 = vand.u32 2147483647, %v3528
      %v3561 = vand.u32 2147483647, %v3529
      %v3562 = vand.u32 2147483647, %v3530
      %v3563 = vand.u32 2147483647, %v3531
      %v3564 = vand.u32 2147483647, %v3532
      %v3565 = vand.u32 2147483647, %v3533
      %v3566 = vand.u32 2147483647, %v3534
      %v3567 = vand.u32 2147483647, %v3535
      %v3568 = vand.u32 2147483647, %v3536
      %v3569 = vand.u32 2147483647, %v3537
      %v3570 = vand.u32 2147483647, %v3538
      %v3571 = vand.u32 2147483647, %v3539
      %v3572 = vand.u32 2147483647, %v3540
      %v3573 = vand.u32 2147483647, %v3541
      %v3574 = vand.u32 2147483647, %v3542
      %v3575 = vand.u32 2147483647, %v3543
      %v3576 = vand.u32 2147483647, %v3544
      %v3577 = vand.u32 2147483647, %v3545
      %v3578 = vand.u32 2147483647, %v3546
      %v3579 = vand.u32 2147483647, %v3547
      %v3580 = vand.u32 2147483647, %v3548
      %v3581 = vand.u32 2147483647, %v3549
      %v3582 = vand.u32 2147483647, %v3550
      %v3583 = vand.u32 2147483647, %v3551
      %v3584 = vadd.f32 %v3488, %v3552
      %v3585 = vadd.f32 %v3489, %v3553
      %v3586 = vadd.f32 %v3490, %v3554
      %v3587 = vadd.f32 %v3491, %v3555
      %v3588 = vadd.f32 %v3492, %v3556
      %v3589 = vadd.f32 %v3493, %v3557
      %v3590 = vadd.f32 %v3494, %v3558
      %v3591 = vadd.f32 %v3495, %v3559
      %v3592 = vadd.f32 %v3496, %v3560
      %v3593 = vadd.f32 %v3497, %v3561
      %v3594 = vadd.f32 %v3498, %v3562
      %v3595 = vadd.f32 %v3499, %v3563
      %v3596 = vadd.f32 %v3500, %v3564
      %v3597 = vadd.f32 %v3501, %v3565
      %v3598 = vadd.f32 %v3502, %v3566
      %v3599 = vadd.f32 %v3503, %v3567
      %v3600 = vadd.f32 %v3504, %v3568
      %v3601 = vadd.f32 %v3505, %v3569
      %v3602 = vadd.f32 %v3506, %v3570
      %v3603 = vadd.f32 %v3507, %v3571
      %v3604 = vadd.f32 %v3508, %v3572
      %v3605 = vadd.f32 %v3509, %v3573
      %v3606 = vadd.f32 %v3510, %v3574
      %v3607 = vadd.f32 %v3511, %v3575
      %v3608 = vadd.f32 %v3512, %v3576
      %v3609 = vadd.f32 %v3513, %v3577
      %v3610 = vadd.f32 %v3514, %v3578
      %v3611 = vadd.f32 %v3515, %v3579
      %v3612 = vadd.f32 %v3516, %v3580
      %v3613 = vadd.f32 %v3517, %v3581
      %v3614 = vadd.f32 %v3518, %v3582
      %v3615 = vadd.f32 %v3519, %v3583
      %v3616 = vsub.f32 %v3008, %v1204
      %v3617 = vsub.f32 %v3009, %v1205
      %v3618 = vsub.f32 %v3010, %v1206
      %v3619 = vsub.f32 %v3011, %v1207
      %v3620 = vsub.f32 %v3012, %v1208
      %v3621 = vsub.f32 %v3013, %v1209
      %v3622 = vsub.f32 %v3014, %v1210
      %v3623 = vsub.f32 %v3015, %v1211
      %v3624 = vsub.f32 %v3016, %v1212
      %v3625 = vsub.f32 %v3017, %v1213
      %v3626 = vsub.f32 %v3018, %v1214
      %v3627 = vsub.f32 %v3019, %v1215
      %v3628 = vsub.f32 %v3020, %v1216
      %v3629 = vsub.f32 %v3021, %v1217
      %v3630 = vsub.f32 %v3022, %v1218
      %v3631 = vsub.f32 %v3023, %v1219
      %v3632 = vsub.f32 %v3024, %v1220
      %v3633 = vsub.f32 %v3025, %v1221
      %v3634 = vsub.f32 %v3026, %v1222
      %v3635 = vsub.f32 %v3027, %v1223
      %v3636 = vsub.f32 %v3028, %v1224
      %v3637 = vsub.f32 %v3029, %v1225
      %v3638 = vsub.f32 %v3030, %v1226
      %v3639 = vsub.f32 %v3031, %v1227
      %v3640 = vsub.f32 %v3032, %v1228
      %v3641 = vsub.f32 %v3033, %v1229
      %v3642 = vsub.f32 %v3034, %v1230
      %v3643 = vsub.f32 %v3035, %v1231
      %v3644 = vsub.f32 %v3036, %v1232
      %v3645 = vsub.f32 %v3037, %v1233
      %v3646 = vsub.f32 %v3038, %v1234
      %v3647 = vsub.f32 %v3039, %v1235
      %v3648 = vand.u32 2147483647, %v3616
      %v3649 = vand.u32 2147483647, %v3617
      %v3650 = vand.u32 2147483647, %v3618
      %v3651 = vand.u32 2147483647, %v3619
      %v3652 = vand.u32 2147483647, %v3620
      %v3653 = vand.u32 2147483647, %v3621
      %v3654 = vand.u32 2147483647, %v3622
      %v3655 = vand.u32 2147483647, %v3623
      %v3656 = vand.u32 2147483647, %v3624
      %v3657 = vand.u32 2147483647, %v3625
      %v3658 = vand.u32 2147483647, %v3626
      %v3659 = vand.u32 2147483647, %v3627
      %v3660 = vand.u32 2147483647, %v3628
      %v3661 = vand.u32 2147483647, %v3629
      %v3662 = vand.u32 2147483647, %v3630
      %v3663 = vand.u32 2147483647, %v3631
      %v3664 = vand.u32 2147483647, %v3632
      %v3665 = vand.u32 2147483647, %v3633
      %v3666 = vand.u32 2147483647, %v3634
      %v3667 = vand.u32 2147483647, %v3635
      %v3668 = vand.u32 2147483647, %v3636
      %v3669 = vand.u32 2147483647, %v3637
      %v3670 = vand.u32 2147483647, %v3638
      %v3671 = vand.u32 2147483647, %v3639
      %v3672 = vand.u32 2147483647, %v3640
      %v3673 = vand.u32 2147483647, %v3641
      %v3674 = vand.u32 2147483647, %v3642
      %v3675 = vand.u32 2147483647, %v3643
      %v3676 = vand.u32 2147483647, %v3644
      %v3677 = vand.u32 2147483647, %v3645
      %v3678 = vand.u32 2147483647, %v3646
      %v3679 = vand.u32 2147483647, %v3647
      %v3680 = vadd.f32 %v3584, %v3648
      %v3681 = vadd.f32 %v3585, %v3649
      %v3682 = vadd.f32 %v3586, %v3650
      %v3683 = vadd.f32 %v3587, %v3651
      %v3684 = vadd.f32 %v3588, %v3652
      %v3685 = vadd.f32 %v3589, %v3653
      %v3686 = vadd.f32 %v3590, %v3654
      %v3687 = vadd.f32 %v3591, %v3655
      %v3688 = vadd.f32 %v3592, %v3656
      %v3689 = vadd.f32 %v3593, %v3657
      %v3690 = vadd.f32 %v3594, %v3658
      %v3691 = vadd.f32 %v3595, %v3659
      %v3692 = vadd.f32 %v3596, %v3660
      %v3693 = vadd.f32 %v3597, %v3661
      %v3694 = vadd.f32 %v3598, %v3662
      %v3695 = vadd.f32 %v3599, %v3663
      %v3696 = vadd.f32 %v3600, %v3664
      %v3697 = vadd.f32 %v3601, %v3665
      %v3698 = vadd.f32 %v3602, %v3666
      %v3699 = vadd.f32 %v3603, %v3667
      %v3700 = vadd.f32 %v3604, %v3668
      %v3701 = vadd.f32 %v3605, %v3669
      %v3702 = vadd.f32 %v3606, %v3670
      %v3703 = vadd.f32 %v3607, %v3671
      %v3704 = vadd.f32 %v3608, %v3672
      %v3705 = vadd.f32 %v3609, %v3673
      %v3706 = vadd.f32 %v3610, %v3674
      %v3707 = vadd.f32 %v3611, %v3675
      %v3708 = vadd.f32 %v3612, %v3676
      %v3709 = vadd.f32 %v3613, %v3677
      %v3710 = vadd.f32 %v3614, %v3678
      %v3711 = vadd.f32 %v3615, %v3679
      %v3712 = vadd.f32 %v3680, %v3681
      %v3713 = vadd.f32 %v3712, %v3682
      %v3714 = vadd.f32 %v3713, %v3683
      %v3715 = vadd.f32 %v3714, %v3684
      %v3716 = vadd.f32 %v3715, %v3685
      %v3717 = vadd.f32 %v3716, %v3686
      %v3718 = vadd.f32 %v3717, %v3687
      %v3719 = vadd.f32 %v3718, %v3688
      %v3720 = vadd.f32 %v3719, %v3689
      %v3721 = vadd.f32 %v3720, %v3690
      %v3722 = vadd.f32 %v3721, %v3691
      %v3723 = vadd.f32 %v3722, %v3692
      %v3724 = vadd.f32 %v3723, %v3693
      %v3725 = vadd.f32 %v3724, %v3694
      %v3726 = vadd.f32 %v3725, %v3695
      %v3727 = vadd.f32 %v3726, %v3696
      %v3728 = vadd.f32 %v3727, %v3697
      %v3729 = vadd.f32 %v3728, %v3698
      %v3730 = vadd.f32 %v3729, %v3699
      %v3731 = vadd.f32 %v3730, %v3700
      %v3732 = vadd.f32 %v3731, %v3701
      %v3733 = vadd.f32 %v3732, %v3702
      %v3734 = vadd.f32 %v3733, %v3703
      %v3735 = vadd.f32 %v3734, %v3704
      %v3736 = vadd.f32 %v3735, %v3705
      %v3737 = vadd.f32 %v3736, %v3706
      %v3738 = vadd.f32 %v3737, %v3707
      %v3739 = vadd.f32 %v3738, %v3708
      %v3740 = vadd.f32 %v3739, %v3709
      %v3741 = vadd.f32 %v3740, %v3710
      %v3742 = vadd.f32 %v3741, %v3711
      %v3743 = vrot.slane %v3742, 4
      %v3744 = vadd.f32 %v3742, %v3743
      %v3745 = vrot.slane %v3744, 2
      %v3746 = vadd.f32 %v3744, %v3745
      %v3747 = vrot.slane %v3746, 1
      %v3748 = vadd.f32 %v3746, %v3747
      %p3749 = scmp.eq.s32.totalorder %s22, 0
      // Predicated region
      $region53: #{loss_module_forward.2} parent=51 // pred_check
        %p3750 = pneg %p3749
      $region54: #{loss_module_forward.2} parent=51 // pred_check_branch
        %3752 = sbr.rel (%p3750) target = $region56
      $region55: #{loss_module_forward.2} parent=51 // pred_region
        %3753 = vst [vmem:[%s10] sm:$0x1] 0.0
      $region56: #{loss_module_forward.2} parent=51 // pred_fallthru
        _
      %v3754 = vld [vmem:[%s10] sm:$0x1]
      %v3755 = vadd.f32 %v3754, %v3748
      %3756 = vst [vmem:[%s10] sm:$0x1] %v3755
      %s3757 = smul.u32 32, %s22
      %p3758 = scmp.lt.s32.totalorder %s3757, 63
      %s3759 = scalar_select %p3758, %s3757, 63
      %s3760 = smul.addr %s3759, 4
      %s3761 = scalar_lea.vmem %s8, %s3760
      %s3762 = smul.u32 32, %s22
      %p3763 = scmp.lt.s32.totalorder %s3762, 63
      %s3764 = scalar_select %p3763, %s3762, 63
      %s3765 = smul.addr %s3764, 4
      %s3766 = scalar_lea.vmem %s9, %s3765
      // Predicated region
      $region57: #{loss_module_forward.2} parent=51 // pred_check
        %p3767 = pneg %p228
      $region58: #{loss_module_forward.2} parent=51 // pred_check_branch
        %3769 = sbr.rel (%p3767) target = $region60
      $region59: #{loss_module_forward.2} parent=51 // pred_region
        %s3770 = smul.u32 32, %s22
      $region60: #{loss_module_forward.2} parent=51 // pred_fallthru
        _
      // Predicated region
      $region61: #{loss_module_forward.2} parent=51 // pred_check
        %p3771 = pneg %p254
      $region62: #{loss_module_forward.2} parent=51 // pred_check_branch
        %3773 = sbr.rel (%p3771) target = $region64
      $region63: #{loss_module_forward.2} parent=51 // pred_region
        %s3774 = smul.u32 32, %s22
      $region64: #{loss_module_forward.2} parent=51 // pred_fallthru
        _
      // Predicated region
      $region65: #{loss_module_forward.2} parent=51 // pred_check
        %p3775 = pneg %p275
      $region66: #{loss_module_forward.2} parent=51 // pred_check_branch
        %3777 = sbr.rel (%p3775) target = $region68
      $region67: #{loss_module_forward.2} parent=51 // pred_region
        _
      $region68: #{loss_module_forward.2} parent=51 // pred_fallthru
        _
      // Predicated region
      $region69: #{loss_module_forward.2} parent=51 // pred_check
        %p3778 = pneg %p275
      $region70: #{loss_module_forward.2} parent=51 // pred_check_branch
        %3780 = sbr.rel (%p3778) target = $region72
      $region71: #{loss_module_forward.2} parent=51 // pred_region
        _
      $region72: #{loss_module_forward.2} parent=51 // pred_fallthru
        _
    $region52: #{loss_module_forward.2} parent=5 // pred_fallthru
      _
    %p3781 = scmp.le.s32.totalorder 2, %s17
    // Predicated region
    $region73: #{loss_module_forward.2} parent=5 // pred_check
      %p3782 = pneg %p3781
    $region74: #{loss_module_forward.2} parent=5 // pred_check_branch
      %3784 = sbr.rel (%p3782) target = $region76
    $region75: #{loss_module_forward.2} parent=5 // pred_region
      %s3785 = ssub.s32 %s17, 2
      // Predicated region
      $region77: #{loss_module_forward.2} parent=75 // pred_check
        %p3786 = pneg %p234
      $region78: #{loss_module_forward.2} parent=75 // pred_check_branch
        %3788 = sbr.rel (%p3786) target = $region80
      $region79: #{loss_module_forward.2} parent=75 // pred_region
        %s3789 = smul.u32 32, %s23
        %p3790 = scmp.lt.s32.totalorder %s3789, 63
        %s3791 = scalar_select %p3790, %s3789, 63
        %s3792 = smul.addr %s3791, 4
        %s3793 = scalar_lea.vmem %s8, %s3792
      $region80: #{loss_module_forward.2} parent=75 // pred_fallthru
        _
      // Predicated region
      $region81: #{loss_module_forward.2} parent=75 // pred_check
        %p3794 = pneg %p260
      $region82: #{loss_module_forward.2} parent=75 // pred_check_branch
        %3796 = sbr.rel (%p3794) target = $region84
      $region83: #{loss_module_forward.2} parent=75 // pred_region
        %s3797 = smul.u32 32, %s23
        %p3798 = scmp.lt.s32.totalorder %s3797, 63
        %s3799 = scalar_select %p3798, %s3797, 63
        %s3800 = smul.addr %s3799, 4
        %s3801 = scalar_lea.vmem %s9, %s3800
      $region84: #{loss_module_forward.2} parent=75 // pred_fallthru
        _
    $region76: #{loss_module_forward.2} parent=5 // pred_fallthru
      _
  $region6: #{loss_module_forward.2} parent=0 // loop_footer
    %s21 = sadd.s32 1, %s17
  $region7: #{loss_module_forward.2} parent=0 // loop_footer_branch
    %16 = sbr.rel target = $region3
  $region8: #{loss_module_forward.2} parent=0 // loop_exit
    _

</llo_original>
